<compile_context>
chip_gen: v7x
topology: tpu7x:2x2x1
jax: 0.10.0
libtpu: 0.0.40
codegen_flags: <defaults>
</compile_context>

<pallas_src>
from itertools import combinations

import numpy as np
import jax
import jax.numpy as jnp
from jax import lax
from jax.experimental import pallas as pl
from jax.experimental.pallas import tpu as pltpu


def distance_loss_kernel(x_ref, w_ref, b_ref, pen_ref, pool_ref, o_ref):
    # x_ref   : (NQ*T + NS*T, F)  flattened query tuples followed by support tuples
    # w_ref   : (F, H)            clsW weight (x @ W layout), H = in_dim // 2
    # b_ref   : (1, H)            clsW bias
    # pen_ref : (WAY, NS*T)       additive mask: 0.0 where support row is in class c, else 1e30
    # pool_ref: (NQ, NQ*T)        -1/T on each query's own tuple rows (negated mean pool)
    # o_ref   : (NQ, WAY)         raw logits (= -mean_t min_j dist); absent classes fixed in glue

    # Fused clsW linear + ReLU for queries and supports (one MXU matmul, f32 accumulation).
    emb = jnp.maximum(
        jnp.dot(x_ref[...], w_ref[...], preferred_element_type=jnp.float32) + b_ref[...],
        0.0)
    nq_rows = pool_ref.shape[1]                       # NQ*T (static)
    qe = emb[:nq_rows, :]                             # (NQ*T, H)  static sublane slice
    se = emb[nq_rows:, :]                             # (NS*T, H)

    # Fused cdist: d2[i,j] = ||q_i||^2 + ||s_j||^2 - 2 <q_i, s_j> as a single matmul
    # over augmented operands (K grows H -> H+2, free on the MXU).
    qn = jnp.sum(qe * qe, axis=-1, keepdims=True)                       # (NQ*T, 1)
    sn = jnp.sum(se * se, axis=-1, keepdims=True)                       # (NS*T, 1)
    a_aug = jnp.concatenate([-2.0 * qe, qn, jnp.ones_like(qn)], axis=-1)  # (NQ*T, H+2)
    b_aug = jnp.concatenate([se, jnp.ones_like(sn), sn], axis=-1)         # (NS*T, H+2)
    d2 = lax.dot_general(a_aug, b_aug, (((1,), (1,)), ((), ())),
                         preferred_element_type=jnp.float32)            # (NQ*T, NS*T)

    # Per-class min over supports via additive penalty (no compare/select); WAY is a
    # small static constant -> unrolled.
    way = pen_ref.shape[0]
    mins = [jnp.min(d2 + pen_ref[c:c + 1, :], axis=-1, keepdims=True)   # (NQ*T, 1)
            for c in range(way)]
    min_d2 = jnp.concatenate(mins, axis=-1)                             # (NQ*T, WAY)

    # sqrt only after the min (monotonic), on the small stacked matrix.
    min_dist = jnp.sqrt(jnp.maximum(min_d2, 0.0))                       # (NQ*T, WAY)

    # Negated mean pool over each query's T tuple rows, all classes in one matmul.
    o_ref[...] = jnp.dot(pool_ref[...], min_dist,
                         preferred_element_type=jnp.float32)            # (NQ, WAY)


def distance_loss_forward(support_set, support_labels, queries, W, b,
                          *, seq_len, temporal_set_size, way):
    """Glue: tuple gather/flatten + mask/pool construction, then one pallas_call."""
    n_support = support_set.shape[0]
    n_queries = queries.shape[0]
    in_dim = support_set.shape[-1]
    F = in_dim * temporal_set_size

    tuples = jnp.asarray(list(combinations(range(seq_len), temporal_set_size)),
                         dtype=jnp.int32)                               # (T, tss)
    T = tuples.shape[0]

    # index_select over frames + flatten + stack over tuples (matches torch ordering).
    q_flat = queries[:, tuples, :].reshape(n_queries * T, F).astype(jnp.float32)
    s_flat = support_set[:, tuples, :].reshape(n_support * T, F).astype(jnp.float32)
    x_flat = jnp.concatenate([q_flat, s_flat], axis=0)                  # (NQ*T + NS*T, F)

    # Per-class additive penalty over flattened support rows (0 in-class, 1e30 otherwise).
    onehot = (support_labels[None, :] ==
              jnp.arange(way, dtype=support_labels.dtype)[:, None])     # (WAY, NS)
    onehot_rep = jnp.repeat(onehot, T, axis=1)                          # (WAY, NS*T)
    penalty = jnp.where(onehot_rep, 0.0, 1e30).astype(jnp.float32)

    # Negated mean-pool over each query's T tuple rows (sign folded in here).
    pool = jnp.kron(jnp.eye(n_queries, dtype=jnp.float32),
                    jnp.full((1, T), -1.0 / T, dtype=jnp.float32))      # (NQ, NQ*T)

    raw = pl.pallas_call(
        distance_loss_kernel,
        out_shape=jax.ShapeDtypeStruct((n_queries, way), jnp.float32),
        in_specs=[pl.BlockSpec(memory_space=pltpu.MemorySpace.VMEM)] * 5,
        out_specs=pl.BlockSpec(memory_space=pltpu.MemorySpace.VMEM),
    )(x_flat, W, b, penalty, pool)

    # Classes with no support examples keep logit 0 (matches torch.zeros init).
    present = jnp.any(onehot, axis=1)                                   # (WAY,)
    logits = jnp.where(present[None, :], raw, 0.0)
    return {"logits": logits}


def reference_forward(support_set, support_labels, queries, W, b,
                      *, seq_len, temporal_set_size, way):
    """Pure-JAX reference (same semantics as the PyTorch module in eval mode)."""
    n_support = support_set.shape[0]
    n_queries = queries.shape[0]
    in_dim = support_set.shape[-1]
    F = in_dim * temporal_set_size
    tuples = np.asarray(list(combinations(range(seq_len), temporal_set_size)))
    T = tuples.shape[0]
    s_flat = support_set[:, tuples, :].reshape(n_support * T, F)
    q_flat = queries[:, tuples, :].reshape(n_queries * T, F)
    qe = jax.nn.relu(q_flat @ W + b)
    se = jax.nn.relu(s_flat @ W + b)
    d2 = (jnp.sum(qe * qe, -1, keepdims=True) + jnp.sum(se * se, -1)[None, :]
          - 2.0 * qe @ se.T)
    dist = jnp.sqrt(jnp.maximum(d2, 0.0))
    labels_rep = jnp.repeat(support_labels, T)
    logits = jnp.zeros((n_queries, way), jnp.float32)
    for c in range(way):
        m = (labels_rep == c)
        if not bool(jnp.any(m)):
            continue
        masked = jnp.where(m[None, :], dist, jnp.inf)
        min_d = masked.min(axis=1).reshape(n_queries, T)
        logits = logits.at[:, c].set(-min_d.mean(axis=1))
    return logits


if __name__ == "__main__":
    # cfg: DATA.SEQ_LEN=8, trans_linear_in_dim=32, TRAIN.WAY=5, temporal_set_size=3
    SEQ_LEN = 8
    IN_DIM = 32
    WAY = 5
    TSS = 3
    N_SUPPORT = 5   # 5-way 1-shot
    N_QUERIES = 4

    key = jax.random.PRNGKey(0)
    k1, k2, k3, k4 = jax.random.split(key, 4)
    support_set = jax.random.normal(k1, (N_SUPPORT, SEQ_LEN, IN_DIM), jnp.float32)
    queries = jax.random.normal(k2, (N_QUERIES, SEQ_LEN, IN_DIM), jnp.float32)
    support_labels = jnp.arange(N_SUPPORT, dtype=jnp.int32)

    # clsW: Linear(in_dim * temporal_set_size -> in_dim // 2); stored as (F, H) for x @ W.
    F = IN_DIM * TSS
    H = IN_DIM // 2
    W = (jax.random.normal(k3, (F, H), jnp.float32) * (1.0 / np.sqrt(F))).astype(jnp.float32)
    b = (jax.random.normal(k4, (1, H), jnp.float32) * 0.01).astype(jnp.float32)

    out = distance_loss_forward(support_set, support_labels, queries, W, b,
                                seq_len=SEQ_LEN, temporal_set_size=TSS, way=WAY)
    logits = jax.block_until_ready(out["logits"])

    ref = reference_forward(support_set, support_labels, queries, W, b,
                            seq_len=SEQ_LEN, temporal_set_size=TSS, way=WAY)
    np.testing.assert_allclose(np.asarray(logits), np.asarray(ref), rtol=1e-4, atol=1e-4)

    print("KERNEL_OK")
</pallas_src>

<mosaic_0001>
module attributes {stable_mosaic.version = 11 : i64} {
  func.func @distance_loss_kernel(%arg0: memref<504x96xf32, #tpu.memory_space<vmem>>, %arg1: memref<96x16xf32, #tpu.memory_space<vmem>>, %arg2: memref<1x16xf32, #tpu.memory_space<vmem>>, %arg3: memref<5x280xf32, #tpu.memory_space<vmem>>, %arg4: memref<4x224xf32, #tpu.memory_space<vmem>>, %arg5: memref<4x5xf32, #tpu.memory_space<vmem>>) attributes {dimension_semantics = [], scalar_prefetch = 0 : i64, scratch_operands = 0 : i64, tpu.core_type = #tpu.core_type<tc>} {
    %c0 = arith.constant 0 : index
    %c0_0 = arith.constant 0 : index
    %0 = vector.load %arg0[%c0, %c0_0] : memref<504x96xf32, #tpu.memory_space<vmem>>, vector<504x96xf32>
    %c0_1 = arith.constant 0 : index
    %c0_2 = arith.constant 0 : index
    %1 = vector.load %arg1[%c0_1, %c0_2] : memref<96x16xf32, #tpu.memory_space<vmem>>, vector<96x16xf32>
    %cst = arith.constant dense<0.000000e+00> : vector<504x16xf32>
    %2 = tpu.matmul %0, %1, %cst {dimension_numbers = #tpu.dot_dimension_numbers<[1], [0], [0], [1], [0, 0, 1, 1], [], []>} : vector<504x96xf32>, vector<96x16xf32>, vector<504x16xf32> -> vector<504x16xf32>
    %c0_3 = arith.constant 0 : index
    %c0_4 = arith.constant 0 : index
    %3 = vector.load %arg2[%c0_3, %c0_4] : memref<1x16xf32, #tpu.memory_space<vmem>>, vector<1x16xf32>
    %4 = vector.broadcast %3 : vector<1x16xf32> to vector<504x16xf32>
    %5 = arith.addf %2, %4 : vector<504x16xf32>
    %cst_5 = arith.constant 0.000000e+00 : f32
    %6 = vector.broadcast %cst_5 : f32 to vector<504x16xf32>
    %7 = arith.maximumf %5, %6 : vector<504x16xf32>
    %8 = vector.extract_strided_slice %7 {offsets = [0, 0], sizes = [224, 16], strides = [1, 1]} : vector<504x16xf32> to vector<224x16xf32>
    %9 = vector.extract_strided_slice %7 {offsets = [224, 0], sizes = [280, 16], strides = [1, 1]} : vector<504x16xf32> to vector<280x16xf32>
    %10 = arith.mulf %8, %8 : vector<224x16xf32>
    %cst_6 = arith.constant dense<0.000000e+00> : vector<224xf32>
    %11 = vector.multi_reduction <add>, %10, %cst_6 [1] : vector<224x16xf32> to vector<224xf32>
    %12 = vector.shape_cast %11 : vector<224xf32> to vector<224x1xf32>
    %13 = arith.mulf %9, %9 : vector<280x16xf32>
    %cst_7 = arith.constant dense<0.000000e+00> : vector<280xf32>
    %14 = vector.multi_reduction <add>, %13, %cst_7 [1] : vector<280x16xf32> to vector<280xf32>
    %15 = vector.shape_cast %14 : vector<280xf32> to vector<280x1xf32>
    %cst_8 = arith.constant -2.000000e+00 : f32
    %16 = vector.broadcast %cst_8 : f32 to vector<224x16xf32>
    %17 = arith.mulf %16, %8 : vector<224x16xf32>
    %cst_9 = arith.constant 1.000000e+00 : f32
    %18 = vector.broadcast %cst_9 : f32 to vector<224x1xf32>
    %19 = tpu.concatenate %17, %12, %18 in 1 : vector<224x16xf32>, vector<224x1xf32>, vector<224x1xf32> -> vector<224x18xf32>
    %cst_10 = arith.constant 1.000000e+00 : f32
    %20 = vector.broadcast %cst_10 : f32 to vector<280x1xf32>
    %21 = tpu.concatenate %9, %20, %15 in 1 : vector<280x16xf32>, vector<280x1xf32>, vector<280x1xf32> -> vector<280x18xf32>
    %cst_11 = arith.constant dense<0.000000e+00> : vector<224x280xf32>
    %22 = tpu.matmul %19, %21, %cst_11 {dimension_numbers = #tpu.dot_dimension_numbers<[1], [1], [0], [0], [0, 0, 1, 0], [], []>} : vector<224x18xf32>, vector<280x18xf32>, vector<224x280xf32> -> vector<224x280xf32>
    %c0_12 = arith.constant 0 : index
    %c0_13 = arith.constant 0 : index
    %23 = vector.load %arg3[%c0_12, %c0_13] : memref<5x280xf32, #tpu.memory_space<vmem>>, vector<1x280xf32>
    %24 = vector.broadcast %23 : vector<1x280xf32> to vector<224x280xf32>
    %25 = arith.addf %22, %24 : vector<224x280xf32>
    %cst_14 = arith.constant dense<0x7F800000> : vector<224xf32>
    %26 = vector.multi_reduction <minimumf>, %25, %cst_14 [1] : vector<224x280xf32> to vector<224xf32>
    %27 = vector.shape_cast %26 : vector<224xf32> to vector<224x1xf32>
    %c1 = arith.constant 1 : index
    %c0_15 = arith.constant 0 : index
    %28 = vector.load %arg3[%c1, %c0_15] : memref<5x280xf32, #tpu.memory_space<vmem>>, vector<1x280xf32>
    %29 = vector.broadcast %28 : vector<1x280xf32> to vector<224x280xf32>
    %30 = arith.addf %22, %29 : vector<224x280xf32>
    %cst_16 = arith.constant dense<0x7F800000> : vector<224xf32>
    %31 = vector.multi_reduction <minimumf>, %30, %cst_16 [1] : vector<224x280xf32> to vector<224xf32>
    %32 = vector.shape_cast %31 : vector<224xf32> to vector<224x1xf32>
    %c2 = arith.constant 2 : index
    %c0_17 = arith.constant 0 : index
    %33 = vector.load %arg3[%c2, %c0_17] : memref<5x280xf32, #tpu.memory_space<vmem>>, vector<1x280xf32>
    %34 = vector.broadcast %33 : vector<1x280xf32> to vector<224x280xf32>
    %35 = arith.addf %22, %34 : vector<224x280xf32>
    %cst_18 = arith.constant dense<0x7F800000> : vector<224xf32>
    %36 = vector.multi_reduction <minimumf>, %35, %cst_18 [1] : vector<224x280xf32> to vector<224xf32>
    %37 = vector.shape_cast %36 : vector<224xf32> to vector<224x1xf32>
    %c3 = arith.constant 3 : index
    %c0_19 = arith.constant 0 : index
    %38 = vector.load %arg3[%c3, %c0_19] : memref<5x280xf32, #tpu.memory_space<vmem>>, vector<1x280xf32>
    %39 = vector.broadcast %38 : vector<1x280xf32> to vector<224x280xf32>
    %40 = arith.addf %22, %39 : vector<224x280xf32>
    %cst_20 = arith.constant dense<0x7F800000> : vector<224xf32>
    %41 = vector.multi_reduction <minimumf>, %40, %cst_20 [1] : vector<224x280xf32> to vector<224xf32>
    %42 = vector.shape_cast %41 : vector<224xf32> to vector<224x1xf32>
    %c4 = arith.constant 4 : index
    %c0_21 = arith.constant 0 : index
    %43 = vector.load %arg3[%c4, %c0_21] : memref<5x280xf32, #tpu.memory_space<vmem>>, vector<1x280xf32>
    %44 = vector.broadcast %43 : vector<1x280xf32> to vector<224x280xf32>
    %45 = arith.addf %22, %44 : vector<224x280xf32>
    %cst_22 = arith.constant dense<0x7F800000> : vector<224xf32>
    %46 = vector.multi_reduction <minimumf>, %45, %cst_22 [1] : vector<224x280xf32> to vector<224xf32>
    %47 = vector.shape_cast %46 : vector<224xf32> to vector<224x1xf32>
    %48 = tpu.concatenate %27, %32, %37, %42, %47 in 1 : vector<224x1xf32>, vector<224x1xf32>, vector<224x1xf32>, vector<224x1xf32>, vector<224x1xf32> -> vector<224x5xf32>
    %cst_23 = arith.constant 0.000000e+00 : f32
    %49 = vector.broadcast %cst_23 : f32 to vector<224x5xf32>
    %50 = arith.maximumf %48, %49 : vector<224x5xf32>
    %51 = math.sqrt %50 : vector<224x5xf32>
    %c0_24 = arith.constant 0 : index
    %c0_25 = arith.constant 0 : index
    %52 = vector.load %arg4[%c0_24, %c0_25] : memref<4x224xf32, #tpu.memory_space<vmem>>, vector<4x224xf32>
    %cst_26 = arith.constant dense<0.000000e+00> : vector<4x5xf32>
    %53 = tpu.matmul %52, %51, %cst_26 {dimension_numbers = #tpu.dot_dimension_numbers<[1], [0], [0], [1], [0, 0, 1, 1], [], []>} : vector<4x224xf32>, vector<224x5xf32>, vector<4x5xf32> -> vector<4x5xf32>
    %c0_27 = arith.constant 0 : index
    %c0_28 = arith.constant 0 : index
    %54 = vector.load %arg5[%c0_27, %c0_28] : memref<4x5xf32, #tpu.memory_space<vmem>>, vector<4x5xf32>
    tpu.vector_store %arg5[%c0_27, %c0_28], %53 {strides = array<i32>} : memref<4x5xf32, #tpu.memory_space<vmem>>, vector<4x5xf32>,
    return
  }
}

</mosaic_0001>

<llo_original>
// kernel: tpu_custom_call.1
$region0: #{tpu_custom_call.1}
  #allocation0 [shape = 'u32[]', space=smem, size = 0x4, offset = 0x4, fixed_abs, tag = 'smem constant byte address 0x4 - core index']
  #allocation1 [shape = 'u32[144,128]{1,0:T(1,128)}', space=vmem, size = 0x12000, scoped, tag = 'internal scratch']
  %s0 = inlined_call_operand.vmem [shape: f32[504,96], index: 0, kind: input, shape index: {}]
  %s1 = inlined_call_operand.vmem [shape: f32[96,16], index: 1, kind: input, shape index: {}]
  %s2 = inlined_call_operand.vmem [shape: f32[1,16], index: 2, kind: input, shape index: {}]
  %s3 = inlined_call_operand.vmem [shape: f32[5,280], index: 3, kind: input, shape index: {}]
  %s4 = inlined_call_operand.vmem [shape: f32[4,224], index: 4, kind: input, shape index: {}]
  %s5 = inlined_call_operand.hbm [shape: f32[4,5], index: 5, kind: output, shape index: {}]
  %s6 = sld [smem:[#allocation0]]
  $region30: #{tpu_custom_call.1} parent=0
    _
  %s8 = ssub.s32 1, %s6
  %s9 = scalar_select 0, %s8, %s6
  $region1: #{tpu_custom_call.1} parent=0
    #allocation2 [shape = 'u8[2048]{0}', space=vmem, size = 0x800, scoped, tag = 'output window, operand 0, single buffered']
    #allocation3 [shape = 's32[1]{0}', space=sflag, size = 0x4, scoped, tag = 'scoped memory for tpu_custom_call.1']
    %10 = vsyncpa [#allocation3], 0
    // Predicated region
    $region2: #{tpu_custom_call.1} parent=1 // pred_check
      _
    $region3: #{tpu_custom_call.1} parent=1 // pred_check_branch
      %12 = sbr.rel (0) target = $region5
    $region4: #{tpu_custom_call.1} parent=1 // pred_region
      _
    $region5: #{tpu_custom_call.1} parent=1 // pred_fallthru
      _
    // Predicated region
    $region6: #{tpu_custom_call.1} parent=1 // pred_check
      _
    $region7: #{tpu_custom_call.1} parent=1 // pred_check_branch
      %14 = sbr.rel (0) target = $region9
    $region8: #{tpu_custom_call.1} parent=1 // pred_region
      _
    $region9: #{tpu_custom_call.1} parent=1 // pred_fallthru
      _
    // Predicated region
    $region10: #{tpu_custom_call.1} parent=1 // pred_check
      _
    $region11: #{tpu_custom_call.1} parent=1 // pred_check_branch
      %16 = sbr.rel (0) target = $region13
    $region12: #{tpu_custom_call.1} parent=1 // pred_region
      _
    $region13: #{tpu_custom_call.1} parent=1 // pred_fallthru
      _
    // Predicated region
    $region14: #{tpu_custom_call.1} parent=1 // pred_check
      _
    $region15: #{tpu_custom_call.1} parent=1 // pred_check_branch
      %18 = sbr.rel (0) target = $region17
    $region16: #{tpu_custom_call.1} parent=1 // pred_region
      _
    $region17: #{tpu_custom_call.1} parent=1 // pred_fallthru
      _
    // Predicated region
    $region18: #{tpu_custom_call.1} parent=1 // pred_check
      _
    $region19: #{tpu_custom_call.1} parent=1 // pred_check_branch
      %20 = sbr.rel (0) target = $region21
    $region20: #{tpu_custom_call.1} parent=1 // pred_region
      _
    $region21: #{tpu_custom_call.1} parent=1 // pred_fallthru
      _
    %v21 = vld [vmem:[%s0] sm:$0xff]
    %v22 = vld [vmem:[%s0 + $0x8] sm:$0xff]
    %v23 = vld [vmem:[%s0 + $0x10] sm:$0xff]
    %v24 = vld [vmem:[%s0 + $0x18] sm:$0xff]
    %v25 = vld [vmem:[%s0 + $0x20] sm:$0xff]
    %v26 = vld [vmem:[%s0 + $0x28] sm:$0xff]
    %v27 = vld [vmem:[%s0 + $0x30] sm:$0xff]
    %v28 = vld [vmem:[%s0 + $0x38] sm:$0xff]
    %v29 = vld [vmem:[%s0 + $0x40] sm:$0xff]
    %v30 = vld [vmem:[%s0 + $0x48] sm:$0xff]
    %v31 = vld [vmem:[%s0 + $0x50] sm:$0xff]
    %v32 = vld [vmem:[%s0 + $0x58] sm:$0xff]
    %v33 = vld [vmem:[%s0 + $0x60] sm:$0xff]
    %v34 = vld [vmem:[%s0 + $0x68] sm:$0xff]
    %v35 = vld [vmem:[%s0 + $0x70] sm:$0xff]
    %v36 = vld [vmem:[%s0 + $0x78] sm:$0xff]
    %v37 = vld [vmem:[%s0 + $0x80] sm:$0xff]
    %v38 = vld [vmem:[%s0 + $0x88] sm:$0xff]
    %v39 = vld [vmem:[%s0 + $0x90] sm:$0xff]
    %v40 = vld [vmem:[%s0 + $0x98] sm:$0xff]
    %v41 = vld [vmem:[%s0 + $0xa0] sm:$0xff]
    %v42 = vld [vmem:[%s0 + $0xa8] sm:$0xff]
    %v43 = vld [vmem:[%s0 + $0xb0] sm:$0xff]
    %v44 = vld [vmem:[%s0 + $0xb8] sm:$0xff]
    %v45 = vld [vmem:[%s0 + $0xc0] sm:$0xff]
    %v46 = vld [vmem:[%s0 + $0xc8] sm:$0xff]
    %v47 = vld [vmem:[%s0 + $0xd0] sm:$0xff]
    %v48 = vld [vmem:[%s0 + $0xd8] sm:$0xff]
    %v49 = vld [vmem:[%s0 + $0xe0] sm:$0xff]
    %v50 = vld [vmem:[%s0 + $0xe8] sm:$0xff]
    %v51 = vld [vmem:[%s0 + $0xf0] sm:$0xff]
    %v52 = vld [vmem:[%s0 + $0xf8] sm:$0xff]
    %v53 = vld [vmem:[%s0 + $0x100] sm:$0xff]
    %v54 = vld [vmem:[%s0 + $0x108] sm:$0xff]
    %v55 = vld [vmem:[%s0 + $0x110] sm:$0xff]
    %v56 = vld [vmem:[%s0 + $0x118] sm:$0xff]
    %v57 = vld [vmem:[%s0 + $0x120] sm:$0xff]
    %v58 = vld [vmem:[%s0 + $0x128] sm:$0xff]
    %v59 = vld [vmem:[%s0 + $0x130] sm:$0xff]
    %v60 = vld [vmem:[%s0 + $0x138] sm:$0xff]
    %v61 = vld [vmem:[%s0 + $0x140] sm:$0xff]
    %v62 = vld [vmem:[%s0 + $0x148] sm:$0xff]
    %v63 = vld [vmem:[%s0 + $0x150] sm:$0xff]
    %v64 = vld [vmem:[%s0 + $0x158] sm:$0xff]
    %v65 = vld [vmem:[%s0 + $0x160] sm:$0xff]
    %v66 = vld [vmem:[%s0 + $0x168] sm:$0xff]
    %v67 = vld [vmem:[%s0 + $0x170] sm:$0xff]
    %v68 = vld [vmem:[%s0 + $0x178] sm:$0xff]
    %v69 = vld [vmem:[%s0 + $0x180] sm:$0xff]
    %v70 = vld [vmem:[%s0 + $0x188] sm:$0xff]
    %v71 = vld [vmem:[%s0 + $0x190] sm:$0xff]
    %v72 = vld [vmem:[%s0 + $0x198] sm:$0xff]
    %v73 = vld [vmem:[%s0 + $0x1a0] sm:$0xff]
    %v74 = vld [vmem:[%s0 + $0x1a8] sm:$0xff]
    %v75 = vld [vmem:[%s0 + $0x1b0] sm:$0xff]
    %v76 = vld [vmem:[%s0 + $0x1b8] sm:$0xff]
    %v77 = vld [vmem:[%s0 + $0x1c0] sm:$0xff]
    %v78 = vld [vmem:[%s0 + $0x1c8] sm:$0xff]
    %v79 = vld [vmem:[%s0 + $0x1d0] sm:$0xff]
    %v80 = vld [vmem:[%s0 + $0x1d8] sm:$0xff]
    %v81 = vld [vmem:[%s0 + $0x1e0] sm:$0xff]
    %v82 = vld [vmem:[%s0 + $0x1e8] sm:$0xff]
    %v83 = vld [vmem:[%s0 + $0x1f0] sm:$0xff]
    %v84 = vld [vmem:[%s1] sm:$0xff]
    %v85 = vld [vmem:[%s1 + $0x8] sm:$0xff]
    %v86 = vld [vmem:[%s1 + $0x10] sm:$0xff]
    %v87 = vld [vmem:[%s1 + $0x18] sm:$0xff]
    %v88 = vld [vmem:[%s1 + $0x20] sm:$0xff]
    %v89 = vld [vmem:[%s1 + $0x28] sm:$0xff]
    %v90 = vld [vmem:[%s1 + $0x30] sm:$0xff]
    %v91 = vld [vmem:[%s1 + $0x38] sm:$0xff]
    %v92 = vld [vmem:[%s1 + $0x40] sm:$0xff]
    %v93 = vld [vmem:[%s1 + $0x48] sm:$0xff]
    %v94 = vld [vmem:[%s1 + $0x50] sm:$0xff]
    %v95 = vld [vmem:[%s1 + $0x58] sm:$0xff]
    %v96 = vld [vmem:[%s2] sm:$0x1]
    %v98 = vlaneseq
    %v99 = vshrl.u32 %v98, 7
    %v100 = vsub.s32 0, %v99
    %v101 = vrot.slane %v96, %v100
    %vm103 = vcmask 785408
    %v105 = vsel %vm103, %v21, 0
    %v108 = vsel %vm103, %v22, 0
    %v111 = vsel %vm103, %v23, 0
    %v114 = vsel %vm103, %v24, 0
    %v117 = vsel %vm103, %v25, 0
    %v120 = vsel %vm103, %v26, 0
    %v123 = vsel %vm103, %v27, 0
    %v126 = vsel %vm103, %v28, 0
    %v129 = vsel %vm103, %v29, 0
    %v132 = vsel %vm103, %v30, 0
    %v135 = vsel %vm103, %v31, 0
    %v138 = vsel %vm103, %v32, 0
    %v141 = vsel %vm103, %v33, 0
    %v144 = vsel %vm103, %v34, 0
    %v147 = vsel %vm103, %v35, 0
    %v150 = vsel %vm103, %v36, 0
    %v153 = vsel %vm103, %v37, 0
    %v156 = vsel %vm103, %v38, 0
    %v159 = vsel %vm103, %v39, 0
    %v162 = vsel %vm103, %v40, 0
    %v165 = vsel %vm103, %v41, 0
    %v168 = vsel %vm103, %v42, 0
    %v171 = vsel %vm103, %v43, 0
    %v174 = vsel %vm103, %v44, 0
    %v177 = vsel %vm103, %v45, 0
    %v180 = vsel %vm103, %v46, 0
    %v183 = vsel %vm103, %v47, 0
    %v186 = vsel %vm103, %v48, 0
    %v189 = vsel %vm103, %v49, 0
    %v192 = vsel %vm103, %v50, 0
    %v195 = vsel %vm103, %v51, 0
    %v198 = vsel %vm103, %v52, 0
    %v201 = vsel %vm103, %v53, 0
    %v204 = vsel %vm103, %v54, 0
    %v207 = vsel %vm103, %v55, 0
    %v210 = vsel %vm103, %v56, 0
    %v213 = vsel %vm103, %v57, 0
    %v216 = vsel %vm103, %v58, 0
    %v219 = vsel %vm103, %v59, 0
    %v222 = vsel %vm103, %v60, 0
    %v225 = vsel %vm103, %v61, 0
    %v228 = vsel %vm103, %v62, 0
    %v231 = vsel %vm103, %v63, 0
    %v234 = vsel %vm103, %v64, 0
    %v237 = vsel %vm103, %v65, 0
    %v240 = vsel %vm103, %v66, 0
    %v243 = vsel %vm103, %v67, 0
    %v246 = vsel %vm103, %v68, 0
    %v249 = vsel %vm103, %v69, 0
    %v252 = vsel %vm103, %v70, 0
    %v255 = vsel %vm103, %v71, 0
    %v258 = vsel %vm103, %v72, 0
    %v261 = vsel %vm103, %v73, 0
    %v264 = vsel %vm103, %v74, 0
    %v267 = vsel %vm103, %v75, 0
    %v270 = vsel %vm103, %v76, 0
    %v273 = vsel %vm103, %v77, 0
    %v276 = vsel %vm103, %v78, 0
    %v279 = vsel %vm103, %v79, 0
    %v282 = vsel %vm103, %v80, 0
    %v285 = vsel %vm103, %v81, 0
    %v288 = vsel %vm103, %v82, 0
    %v291 = vsel %vm103, %v83, 0
    %293 = vmatprep.subr.mxu0 0.0
    %294 = vmatpush1.msra.mxu0 %v84
    %295 = vmatprep.subr.mxu0 0.0
    %296 = vmatpush1.msra.mxu0 %v85
    %297 = vmatprep.subr.mxu0 0.0
    %298 = vmatpush1.msra.mxu0 %v86
    %299 = vmatprep.subr.mxu0 0.0
    %300 = vmatpush1.msra.mxu0 %v87
    %301 = vmatprep.subr.mxu0 0.0
    %302 = vmatpush1.msra.mxu0 %v88
    %303 = vmatprep.subr.mxu0 0.0
    %304 = vmatpush1.msra.mxu0 %v89
    %305 = vmatprep.subr.mxu0 0.0
    %306 = vmatpush1.msra.mxu0 %v90
    %307 = vmatprep.subr.mxu0 0.0
    %308 = vmatpush1.msra.mxu0 %v91
    %309 = vmatprep.subr.mxu0 0.0
    %310 = vmatpush1.msra.mxu0 %v92
    %311 = vmatprep.subr.mxu0 0.0
    %312 = vmatpush1.msra.mxu0 %v93
    %313 = vmatprep.subr.mxu0 0.0
    %314 = vmatpush1.msra.mxu0 %v94
    %315 = vmatprep.subr.mxu0 0.0
    %316 = vmatpush1.msra.mxu0 %v95
    %317 = vmatprep.subr.mxu0 0.0
    %318 = vmatpush1.msra.mxu0 0.0
    %319 = vmatprep.subr.mxu0 0.0
    %320 = vmatpush1.msra.mxu0 0.0
    %321 = vmatprep.subr.mxu0 0.0
    %322 = vmatpush1.msra.mxu0 0.0
    %323 = vmatprep.subr.mxu0 0.0
    %324 = vmatpush1.msra.mxu0 0.0
    %325 = vmatprep.subr.mxu0 0.0
    %326 = vmatpush1.msra.mxu0 0.0
    %327 = vmatprep.subr.mxu0 0.0
    %328 = vmatpush1.msra.mxu0 0.0
    %329 = vmatprep.subr.mxu0 0.0
    %330 = vmatpush1.msra.mxu0 0.0
    %331 = vmatprep.subr.mxu0 0.0
    %332 = vmatpush1.msra.mxu0 0.0
    %333 = vmatprep.subr.mxu0 0.0
    %334 = vmatpush1.msra.mxu0 0.0
    %335 = vmatprep.subr.mxu0 0.0
    %336 = vmatpush1.msra.mxu0 0.0
    %337 = vmatprep.subr.mxu0 0.0
    %338 = vmatpush1.msra.mxu0 0.0
    %339 = vmatprep.subr.mxu0 0.0
    %340 = vmatpush1.msra.mxu0 0.0
    %341 = vmatprep.subr.mxu0 0.0
    %342 = vmatpush1.msra.mxu0 0.0
    %343 = vmatprep.subr.mxu0 0.0
    %344 = vmatpush1.msra.mxu0 0.0
    %345 = vmatprep.subr.mxu0 0.0
    %346 = vmatpush1.msra.mxu0 0.0
    %347 = vmatprep.subr.mxu0 0.0
    %348 = vmatpush1.msra.mxu0 0.0
    %349 = vmatprep.subr.mxu0 0.0
    %350 = vmatpush1.msra.mxu0 0.0
    %351 = vmatprep.subr.mxu0 0.0
    %352 = vmatpush1.msra.mxu0 0.0
    %353 = vmatprep.subr.mxu0 0.0
    %354 = vmatpush1.msra.mxu0 0.0
    %355 = vmatprep.subr.mxu0 0.0
    %356 = vmatpush1.msra.mxu0 0.0
    %357 = vmatprep.mubr.f32.mxu0 0.0
    %358 = vmatmul.mubr.f32.gmra.mrb[0].mxu0 %v105
    %v359 = vpop.f32.mrb[0].mxu0
    %v360 = vadd.f32 %v101, %v359
    %v361 = vpop.f32.mrb[0].mxu0
    %362 = vmatprep.mubr.f32.mxu0 0.0
    %363 = vmatmul.mubr.f32.gmra.mrb[0].mxu0 %v108
    %v364 = vpop.f32.mrb[0].mxu0
    %v365 = vadd.f32 %v101, %v364
    %v366 = vpop.f32.mrb[0].mxu0
    %367 = vmatprep.mubr.f32.mxu0 0.0
    %368 = vmatmul.mubr.f32.gmra.mrb[0].mxu0 %v111
    %v369 = vpop.f32.mrb[0].mxu0
    %v370 = vadd.f32 %v101, %v369
    %v371 = vpop.f32.mrb[0].mxu0
    %372 = vmatprep.mubr.f32.mxu0 0.0
    %373 = vmatmul.mubr.f32.gmra.mrb[0].mxu0 %v114
    %v374 = vpop.f32.mrb[0].mxu0
    %v375 = vadd.f32 %v101, %v374
    %v376 = vpop.f32.mrb[0].mxu0
    %377 = vmatprep.mubr.f32.mxu0 0.0
    %378 = vmatmul.mubr.f32.gmra.mrb[0].mxu0 %v117
    %v379 = vpop.f32.mrb[0].mxu0
    %v380 = vadd.f32 %v101, %v379
    %v381 = vpop.f32.mrb[0].mxu0
    %382 = vmatprep.mubr.f32.mxu0 0.0
    %383 = vmatmul.mubr.f32.gmra.mrb[0].mxu0 %v120
    %v384 = vpop.f32.mrb[0].mxu0
    %v385 = vadd.f32 %v101, %v384
    %v386 = vpop.f32.mrb[0].mxu0
    %387 = vmatprep.mubr.f32.mxu0 0.0
    %388 = vmatmul.mubr.f32.gmra.mrb[0].mxu0 %v123
    %v389 = vpop.f32.mrb[0].mxu0
    %v390 = vadd.f32 %v101, %v389
    %v391 = vpop.f32.mrb[0].mxu0
    %392 = vmatprep.mubr.f32.mxu0 0.0
    %393 = vmatmul.mubr.f32.gmra.mrb[0].mxu0 %v126
    %v394 = vpop.f32.mrb[0].mxu0
    %v395 = vadd.f32 %v101, %v394
    %v396 = vpop.f32.mrb[0].mxu0
    %397 = vmatprep.mubr.f32.mxu0 0.0
    %398 = vmatmul.mubr.f32.gmra.mrb[0].mxu0 %v129
    %v399 = vpop.f32.mrb[0].mxu0
    %v400 = vadd.f32 %v101, %v399
    %v401 = vpop.f32.mrb[0].mxu0
    %402 = vmatprep.mubr.f32.mxu0 0.0
    %403 = vmatmul.mubr.f32.gmra.mrb[0].mxu0 %v132
    %v404 = vpop.f32.mrb[0].mxu0
    %v405 = vadd.f32 %v101, %v404
    %v406 = vpop.f32.mrb[0].mxu0
    %407 = vmatprep.mubr.f32.mxu0 0.0
    %408 = vmatmul.mubr.f32.gmra.mrb[0].mxu0 %v135
    %v409 = vpop.f32.mrb[0].mxu0
    %v410 = vadd.f32 %v101, %v409
    %v411 = vpop.f32.mrb[0].mxu0
    %412 = vmatprep.mubr.f32.mxu0 0.0
    %413 = vmatmul.mubr.f32.gmra.mrb[0].mxu0 %v138
    %v414 = vpop.f32.mrb[0].mxu0
    %v415 = vadd.f32 %v101, %v414
    %v416 = vpop.f32.mrb[0].mxu0
    %417 = vmatprep.mubr.f32.mxu0 0.0
    %418 = vmatmul.mubr.f32.gmra.mrb[0].mxu0 %v141
    %v419 = vpop.f32.mrb[0].mxu0
    %v420 = vadd.f32 %v101, %v419
    %v421 = vpop.f32.mrb[0].mxu0
    %422 = vmatprep.mubr.f32.mxu0 0.0
    %423 = vmatmul.mubr.f32.gmra.mrb[0].mxu0 %v144
    %v424 = vpop.f32.mrb[0].mxu0
    %v425 = vadd.f32 %v101, %v424
    %v426 = vpop.f32.mrb[0].mxu0
    %427 = vmatprep.mubr.f32.mxu0 0.0
    %428 = vmatmul.mubr.f32.gmra.mrb[0].mxu0 %v147
    %v429 = vpop.f32.mrb[0].mxu0
    %v430 = vadd.f32 %v101, %v429
    %v431 = vpop.f32.mrb[0].mxu0
    %432 = vmatprep.mubr.f32.mxu0 0.0
    %433 = vmatmul.mubr.f32.gmra.mrb[0].mxu0 %v150
    %v434 = vpop.f32.mrb[0].mxu0
    %v435 = vadd.f32 %v101, %v434
    %v436 = vpop.f32.mrb[0].mxu0
    %437 = vmatprep.mubr.f32.mxu0 0.0
    %438 = vmatmul.mubr.f32.gmra.mrb[0].mxu0 %v153
    %v439 = vpop.f32.mrb[0].mxu0
    %v440 = vadd.f32 %v101, %v439
    %v441 = vpop.f32.mrb[0].mxu0
    %442 = vmatprep.mubr.f32.mxu0 0.0
    %443 = vmatmul.mubr.f32.gmra.mrb[0].mxu0 %v156
    %v444 = vpop.f32.mrb[0].mxu0
    %v445 = vadd.f32 %v101, %v444
    %v446 = vpop.f32.mrb[0].mxu0
    %447 = vmatprep.mubr.f32.mxu0 0.0
    %448 = vmatmul.mubr.f32.gmra.mrb[0].mxu0 %v159
    %v449 = vpop.f32.mrb[0].mxu0
    %v450 = vadd.f32 %v101, %v449
    %v451 = vpop.f32.mrb[0].mxu0
    %452 = vmatprep.mubr.f32.mxu0 0.0
    %453 = vmatmul.mubr.f32.gmra.mrb[0].mxu0 %v162
    %v454 = vpop.f32.mrb[0].mxu0
    %v455 = vadd.f32 %v101, %v454
    %v456 = vpop.f32.mrb[0].mxu0
    %457 = vmatprep.mubr.f32.mxu0 0.0
    %458 = vmatmul.mubr.f32.gmra.mrb[0].mxu0 %v165
    %v459 = vpop.f32.mrb[0].mxu0
    %v460 = vadd.f32 %v101, %v459
    %v461 = vpop.f32.mrb[0].mxu0
    %462 = vmatprep.mubr.f32.mxu0 0.0
    %463 = vmatmul.mubr.f32.gmra.mrb[0].mxu0 %v168
    %v464 = vpop.f32.mrb[0].mxu0
    %v465 = vadd.f32 %v101, %v464
    %v466 = vpop.f32.mrb[0].mxu0
    %467 = vmatprep.mubr.f32.mxu0 0.0
    %468 = vmatmul.mubr.f32.gmra.mrb[0].mxu0 %v171
    %v469 = vpop.f32.mrb[0].mxu0
    %v470 = vadd.f32 %v101, %v469
    %v471 = vpop.f32.mrb[0].mxu0
    %472 = vmatprep.mubr.f32.mxu0 0.0
    %473 = vmatmul.mubr.f32.gmra.mrb[0].mxu0 %v174
    %v474 = vpop.f32.mrb[0].mxu0
    %v475 = vadd.f32 %v101, %v474
    %v476 = vpop.f32.mrb[0].mxu0
    %477 = vmatprep.mubr.f32.mxu0 0.0
    %478 = vmatmul.mubr.f32.gmra.mrb[0].mxu0 %v177
    %v479 = vpop.f32.mrb[0].mxu0
    %v480 = vadd.f32 %v101, %v479
    %v481 = vpop.f32.mrb[0].mxu0
    %482 = vmatprep.mubr.f32.mxu0 0.0
    %483 = vmatmul.mubr.f32.gmra.mrb[0].mxu0 %v180
    %v484 = vpop.f32.mrb[0].mxu0
    %v485 = vadd.f32 %v101, %v484
    %v486 = vpop.f32.mrb[0].mxu0
    %487 = vmatprep.mubr.f32.mxu0 0.0
    %488 = vmatmul.mubr.f32.gmra.mrb[0].mxu0 %v183
    %v489 = vpop.f32.mrb[0].mxu0
    %v490 = vadd.f32 %v101, %v489
    %v491 = vpop.f32.mrb[0].mxu0
    %492 = vmatprep.mubr.f32.mxu0 0.0
    %493 = vmatmul.mubr.f32.gmra.mrb[0].mxu0 %v186
    %v494 = vpop.f32.mrb[0].mxu0
    %v495 = vadd.f32 %v101, %v494
    %v496 = vpop.f32.mrb[0].mxu0
    %497 = vmatprep.mubr.f32.mxu0 0.0
    %498 = vmatmul.mubr.f32.gmra.mrb[0].mxu0 %v189
    %v499 = vpop.f32.mrb[0].mxu0
    %v500 = vadd.f32 %v101, %v499
    %v501 = vpop.f32.mrb[0].mxu0
    %502 = vmatprep.mubr.f32.mxu0 0.0
    %503 = vmatmul.mubr.f32.gmra.mrb[0].mxu0 %v192
    %v504 = vpop.f32.mrb[0].mxu0
    %v505 = vadd.f32 %v101, %v504
    %v506 = vpop.f32.mrb[0].mxu0
    %507 = vmatprep.mubr.f32.mxu0 0.0
    %508 = vmatmul.mubr.f32.gmra.mrb[0].mxu0 %v195
    %v509 = vpop.f32.mrb[0].mxu0
    %v510 = vadd.f32 %v101, %v509
    %v511 = vpop.f32.mrb[0].mxu0
    %512 = vmatprep.mubr.f32.mxu0 0.0
    %513 = vmatmul.mubr.f32.gmra.mrb[0].mxu0 %v198
    %v514 = vpop.f32.mrb[0].mxu0
    %v515 = vadd.f32 %v101, %v514
    %v516 = vpop.f32.mrb[0].mxu0
    %517 = vmatprep.mubr.f32.mxu0 0.0
    %518 = vmatmul.mubr.f32.gmra.mrb[0].mxu0 %v201
    %v519 = vpop.f32.mrb[0].mxu0
    %v520 = vadd.f32 %v101, %v519
    %v521 = vpop.f32.mrb[0].mxu0
    %522 = vmatprep.mubr.f32.mxu0 0.0
    %523 = vmatmul.mubr.f32.gmra.mrb[0].mxu0 %v204
    %v524 = vpop.f32.mrb[0].mxu0
    %v525 = vadd.f32 %v101, %v524
    %v526 = vpop.f32.mrb[0].mxu0
    %527 = vmatprep.mubr.f32.mxu0 0.0
    %528 = vmatmul.mubr.f32.gmra.mrb[0].mxu0 %v207
    %v529 = vpop.f32.mrb[0].mxu0
    %v530 = vadd.f32 %v101, %v529
    %v531 = vpop.f32.mrb[0].mxu0
    %532 = vmatprep.mubr.f32.mxu0 0.0
    %533 = vmatmul.mubr.f32.gmra.mrb[0].mxu0 %v210
    %v534 = vpop.f32.mrb[0].mxu0
    %v535 = vadd.f32 %v101, %v534
    %v536 = vpop.f32.mrb[0].mxu0
    %537 = vmatprep.mubr.f32.mxu0 0.0
    %538 = vmatmul.mubr.f32.gmra.mrb[0].mxu0 %v213
    %v539 = vpop.f32.mrb[0].mxu0
    %v540 = vadd.f32 %v101, %v539
    %v541 = vpop.f32.mrb[0].mxu0
    %542 = vmatprep.mubr.f32.mxu0 0.0
    %543 = vmatmul.mubr.f32.gmra.mrb[0].mxu0 %v216
    %v544 = vpop.f32.mrb[0].mxu0
    %v545 = vadd.f32 %v101, %v544
    %v546 = vpop.f32.mrb[0].mxu0
    %547 = vmatprep.mubr.f32.mxu0 0.0
    %548 = vmatmul.mubr.f32.gmra.mrb[0].mxu0 %v219
    %v549 = vpop.f32.mrb[0].mxu0
    %v550 = vadd.f32 %v101, %v549
    %v551 = vpop.f32.mrb[0].mxu0
    %552 = vmatprep.mubr.f32.mxu0 0.0
    %553 = vmatmul.mubr.f32.gmra.mrb[0].mxu0 %v222
    %v554 = vpop.f32.mrb[0].mxu0
    %v555 = vadd.f32 %v101, %v554
    %v556 = vpop.f32.mrb[0].mxu0
    %557 = vmatprep.mubr.f32.mxu0 0.0
    %558 = vmatmul.mubr.f32.gmra.mrb[0].mxu0 %v225
    %v559 = vpop.f32.mrb[0].mxu0
    %v560 = vadd.f32 %v101, %v559
    %v561 = vpop.f32.mrb[0].mxu0
    %562 = vmatprep.mubr.f32.mxu0 0.0
    %563 = vmatmul.mubr.f32.gmra.mrb[0].mxu0 %v228
    %v564 = vpop.f32.mrb[0].mxu0
    %v565 = vadd.f32 %v101, %v564
    %v566 = vpop.f32.mrb[0].mxu0
    %567 = vmatprep.mubr.f32.mxu0 0.0
    %568 = vmatmul.mubr.f32.gmra.mrb[0].mxu0 %v231
    %v569 = vpop.f32.mrb[0].mxu0
    %v570 = vadd.f32 %v101, %v569
    %v571 = vpop.f32.mrb[0].mxu0
    %572 = vmatprep.mubr.f32.mxu0 0.0
    %573 = vmatmul.mubr.f32.gmra.mrb[0].mxu0 %v234
    %v574 = vpop.f32.mrb[0].mxu0
    %v575 = vadd.f32 %v101, %v574
    %v576 = vpop.f32.mrb[0].mxu0
    %577 = vmatprep.mubr.f32.mxu0 0.0
    %578 = vmatmul.mubr.f32.gmra.mrb[0].mxu0 %v237
    %v579 = vpop.f32.mrb[0].mxu0
    %v580 = vadd.f32 %v101, %v579
    %v581 = vpop.f32.mrb[0].mxu0
    %582 = vmatprep.mubr.f32.mxu0 0.0
    %583 = vmatmul.mubr.f32.gmra.mrb[0].mxu0 %v240
    %v584 = vpop.f32.mrb[0].mxu0
    %v585 = vadd.f32 %v101, %v584
    %v586 = vpop.f32.mrb[0].mxu0
    %587 = vmatprep.mubr.f32.mxu0 0.0
    %588 = vmatmul.mubr.f32.gmra.mrb[0].mxu0 %v243
    %v589 = vpop.f32.mrb[0].mxu0
    %v590 = vadd.f32 %v101, %v589
    %v591 = vpop.f32.mrb[0].mxu0
    %592 = vmatprep.mubr.f32.mxu0 0.0
    %593 = vmatmul.mubr.f32.gmra.mrb[0].mxu0 %v246
    %v594 = vpop.f32.mrb[0].mxu0
    %v595 = vadd.f32 %v101, %v594
    %v596 = vpop.f32.mrb[0].mxu0
    %597 = vmatprep.mubr.f32.mxu0 0.0
    %598 = vmatmul.mubr.f32.gmra.mrb[0].mxu0 %v249
    %v599 = vpop.f32.mrb[0].mxu0
    %v600 = vadd.f32 %v101, %v599
    %v601 = vpop.f32.mrb[0].mxu0
    %602 = vmatprep.mubr.f32.mxu0 0.0
    %603 = vmatmul.mubr.f32.gmra.mrb[0].mxu0 %v252
    %v604 = vpop.f32.mrb[0].mxu0
    %v605 = vadd.f32 %v101, %v604
    %v606 = vpop.f32.mrb[0].mxu0
    %607 = vmatprep.mubr.f32.mxu0 0.0
    %608 = vmatmul.mubr.f32.gmra.mrb[0].mxu0 %v255
    %v609 = vpop.f32.mrb[0].mxu0
    %v610 = vadd.f32 %v101, %v609
    %v611 = vpop.f32.mrb[0].mxu0
    %612 = vmatprep.mubr.f32.mxu0 0.0
    %613 = vmatmul.mubr.f32.gmra.mrb[0].mxu0 %v258
    %v614 = vpop.f32.mrb[0].mxu0
    %v615 = vadd.f32 %v101, %v614
    %v616 = vpop.f32.mrb[0].mxu0
    %617 = vmatprep.mubr.f32.mxu0 0.0
    %618 = vmatmul.mubr.f32.gmra.mrb[0].mxu0 %v261
    %v619 = vpop.f32.mrb[0].mxu0
    %v620 = vadd.f32 %v101, %v619
    %v621 = vpop.f32.mrb[0].mxu0
    %622 = vmatprep.mubr.f32.mxu0 0.0
    %623 = vmatmul.mubr.f32.gmra.mrb[0].mxu0 %v264
    %v624 = vpop.f32.mrb[0].mxu0
    %v625 = vadd.f32 %v101, %v624
    %v626 = vpop.f32.mrb[0].mxu0
    %627 = vmatprep.mubr.f32.mxu0 0.0
    %628 = vmatmul.mubr.f32.gmra.mrb[0].mxu0 %v267
    %v629 = vpop.f32.mrb[0].mxu0
    %v630 = vadd.f32 %v101, %v629
    %v631 = vpop.f32.mrb[0].mxu0
    %632 = vmatprep.mubr.f32.mxu0 0.0
    %633 = vmatmul.mubr.f32.gmra.mrb[0].mxu0 %v270
    %v634 = vpop.f32.mrb[0].mxu0
    %v635 = vadd.f32 %v101, %v634
    %v636 = vpop.f32.mrb[0].mxu0
    %637 = vmatprep.mubr.f32.mxu0 0.0
    %638 = vmatmul.mubr.f32.gmra.mrb[0].mxu0 %v273
    %v639 = vpop.f32.mrb[0].mxu0
    %v640 = vadd.f32 %v101, %v639
    %v641 = vpop.f32.mrb[0].mxu0
    %642 = vmatprep.mubr.f32.mxu0 0.0
    %643 = vmatmul.mubr.f32.gmra.mrb[0].mxu0 %v276
    %v644 = vpop.f32.mrb[0].mxu0
    %v645 = vadd.f32 %v101, %v644
    %v646 = vpop.f32.mrb[0].mxu0
    %647 = vmatprep.mubr.f32.mxu0 0.0
    %648 = vmatmul.mubr.f32.gmra.mrb[0].mxu0 %v279
    %v649 = vpop.f32.mrb[0].mxu0
    %v650 = vadd.f32 %v101, %v649
    %v651 = vpop.f32.mrb[0].mxu0
    %652 = vmatprep.mubr.f32.mxu0 0.0
    %653 = vmatmul.mubr.f32.gmra.mrb[0].mxu0 %v282
    %v654 = vpop.f32.mrb[0].mxu0
    %v655 = vadd.f32 %v101, %v654
    %v656 = vpop.f32.mrb[0].mxu0
    %657 = vmatprep.mubr.f32.mxu0 0.0
    %658 = vmatmul.mubr.f32.gmra.mrb[0].mxu0 %v285
    %v659 = vpop.f32.mrb[0].mxu0
    %v660 = vadd.f32 %v101, %v659
    %v661 = vpop.f32.mrb[0].mxu0
    %662 = vmatprep.mubr.f32.mxu0 0.0
    %663 = vmatmul.mubr.f32.gmra.mrb[0].mxu0 %v288
    %v664 = vpop.f32.mrb[0].mxu0
    %v665 = vadd.f32 %v101, %v664
    %v666 = vpop.f32.mrb[0].mxu0
    %667 = vmatprep.mubr.f32.mxu0 0.0
    %668 = vmatmul.mubr.f32.gmra.mrb[0].mxu0 %v291
    %v669 = vpop.f32.mrb[0].mxu0
    %v670 = vadd.f32 %v101, %v669
    %v671 = vpop.f32.mrb[0].mxu0
    %672 = vdwg.mxu0
    %v673 = vmax.f32 %v360, 0.0
    %v674 = vmax.f32 %v365, 0.0
    %v675 = vmax.f32 %v370, 0.0
    %v676 = vmax.f32 %v375, 0.0
    %v677 = vmax.f32 %v380, 0.0
    %v678 = vmax.f32 %v385, 0.0
    %v679 = vmax.f32 %v390, 0.0
    %v680 = vmax.f32 %v395, 0.0
    %v681 = vmax.f32 %v400, 0.0
    %v682 = vmax.f32 %v405, 0.0
    %v683 = vmax.f32 %v410, 0.0
    %v684 = vmax.f32 %v415, 0.0
    %v685 = vmax.f32 %v420, 0.0
    %v686 = vmax.f32 %v425, 0.0
    %v687 = vmax.f32 %v430, 0.0
    %v688 = vmax.f32 %v435, 0.0
    %v689 = vmax.f32 %v440, 0.0
    %v690 = vmax.f32 %v445, 0.0
    %v691 = vmax.f32 %v450, 0.0
    %v692 = vmax.f32 %v455, 0.0
    %v693 = vmax.f32 %v460, 0.0
    %v694 = vmax.f32 %v465, 0.0
    %v695 = vmax.f32 %v470, 0.0
    %v696 = vmax.f32 %v475, 0.0
    %v697 = vmax.f32 %v480, 0.0
    %v698 = vmax.f32 %v485, 0.0
    %v699 = vmax.f32 %v490, 0.0
    %v700 = vmax.f32 %v495, 0.0
    %v701 = vmax.f32 %v500, 0.0
    %v702 = vmax.f32 %v505, 0.0
    %v703 = vmax.f32 %v510, 0.0
    %v704 = vmax.f32 %v515, 0.0
    %v705 = vmax.f32 %v520, 0.0
    %v706 = vmax.f32 %v525, 0.0
    %v707 = vmax.f32 %v530, 0.0
    %v708 = vmax.f32 %v535, 0.0
    %v709 = vmax.f32 %v540, 0.0
    %v710 = vmax.f32 %v545, 0.0
    %v711 = vmax.f32 %v550, 0.0
    %v712 = vmax.f32 %v555, 0.0
    %v713 = vmax.f32 %v560, 0.0
    %v714 = vmax.f32 %v565, 0.0
    %v715 = vmax.f32 %v570, 0.0
    %v716 = vmax.f32 %v575, 0.0
    %v717 = vmax.f32 %v580, 0.0
    %v718 = vmax.f32 %v585, 0.0
    %v719 = vmax.f32 %v590, 0.0
    %v720 = vmax.f32 %v595, 0.0
    %v721 = vmax.f32 %v600, 0.0
    %v722 = vmax.f32 %v605, 0.0
    %v723 = vmax.f32 %v610, 0.0
    %v724 = vmax.f32 %v615, 0.0
    %v725 = vmax.f32 %v620, 0.0
    %v726 = vmax.f32 %v625, 0.0
    %v727 = vmax.f32 %v630, 0.0
    %v728 = vmax.f32 %v635, 0.0
    %v729 = vmax.f32 %v640, 0.0
    %v730 = vmax.f32 %v645, 0.0
    %v731 = vmax.f32 %v650, 0.0
    %v732 = vmax.f32 %v655, 0.0
    %v733 = vmax.f32 %v660, 0.0
    %v734 = vmax.f32 %v665, 0.0
    %v735 = vmax.f32 %v670, 0.0
    %v736 = vmul.f32 %v673, %v673
    %v737 = vmul.f32 %v674, %v674
    %v738 = vmul.f32 %v675, %v675
    %v739 = vmul.f32 %v676, %v676
    %v740 = vmul.f32 %v677, %v677
    %v741 = vmul.f32 %v678, %v678
    %v742 = vmul.f32 %v679, %v679
    %v743 = vmul.f32 %v680, %v680
    %v744 = vmul.f32 %v681, %v681
    %v745 = vmul.f32 %v682, %v682
    %v746 = vmul.f32 %v683, %v683
    %v747 = vmul.f32 %v684, %v684
    %v748 = vmul.f32 %v685, %v685
    %v749 = vmul.f32 %v686, %v686
    %v750 = vmul.f32 %v687, %v687
    %v751 = vmul.f32 %v688, %v688
    %v752 = vmul.f32 %v689, %v689
    %v753 = vmul.f32 %v690, %v690
    %v754 = vmul.f32 %v691, %v691
    %v755 = vmul.f32 %v692, %v692
    %v756 = vmul.f32 %v693, %v693
    %v757 = vmul.f32 %v694, %v694
    %v758 = vmul.f32 %v695, %v695
    %v759 = vmul.f32 %v696, %v696
    %v760 = vmul.f32 %v697, %v697
    %v761 = vmul.f32 %v698, %v698
    %v762 = vmul.f32 %v699, %v699
    %v763 = vmul.f32 %v700, %v700
    %vm764 = vcmask 130048
    %v765 = vsel %vm764, %v736, 0.0
    %766 = vadd.xlane.f32.xlu0 %v765
    %v767 = vpop.xlane.xlu0 %766
    %v768 = vsel %vm764, %v737, 0.0
    %769 = vadd.xlane.f32.xlu0 %v768
    %v770 = vpop.xlane.xlu0 %769
    %v771 = vsel %vm764, %v738, 0.0
    %772 = vadd.xlane.f32.xlu0 %v771
    %v773 = vpop.xlane.xlu0 %772
    %v774 = vsel %vm764, %v739, 0.0
    %775 = vadd.xlane.f32.xlu0 %v774
    %v776 = vpop.xlane.xlu0 %775
    %v777 = vsel %vm764, %v740, 0.0
    %778 = vadd.xlane.f32.xlu0 %v777
    %v779 = vpop.xlane.xlu0 %778
    %v780 = vsel %vm764, %v741, 0.0
    %781 = vadd.xlane.f32.xlu0 %v780
    %v782 = vpop.xlane.xlu0 %781
    %v783 = vsel %vm764, %v742, 0.0
    %784 = vadd.xlane.f32.xlu0 %v783
    %v785 = vpop.xlane.xlu0 %784
    %v786 = vsel %vm764, %v743, 0.0
    %787 = vadd.xlane.f32.xlu0 %v786
    %v788 = vpop.xlane.xlu0 %787
    %v789 = vsel %vm764, %v744, 0.0
    %790 = vadd.xlane.f32.xlu0 %v789
    %v791 = vpop.xlane.xlu0 %790
    %v792 = vsel %vm764, %v745, 0.0
    %793 = vadd.xlane.f32.xlu0 %v792
    %v794 = vpop.xlane.xlu0 %793
    %v795 = vsel %vm764, %v746, 0.0
    %796 = vadd.xlane.f32.xlu0 %v795
    %v797 = vpop.xlane.xlu0 %796
    %v798 = vsel %vm764, %v747, 0.0
    %799 = vadd.xlane.f32.xlu0 %v798
    %v800 = vpop.xlane.xlu0 %799
    %v801 = vsel %vm764, %v748, 0.0
    %802 = vadd.xlane.f32.xlu0 %v801
    %v803 = vpop.xlane.xlu0 %802
    %v804 = vsel %vm764, %v749, 0.0
    %805 = vadd.xlane.f32.xlu0 %v804
    %v806 = vpop.xlane.xlu0 %805
    %v807 = vsel %vm764, %v750, 0.0
    %808 = vadd.xlane.f32.xlu0 %v807
    %v809 = vpop.xlane.xlu0 %808
    %v810 = vsel %vm764, %v751, 0.0
    %811 = vadd.xlane.f32.xlu0 %v810
    %v812 = vpop.xlane.xlu0 %811
    %v813 = vsel %vm764, %v752, 0.0
    %814 = vadd.xlane.f32.xlu0 %v813
    %v815 = vpop.xlane.xlu0 %814
    %v816 = vsel %vm764, %v753, 0.0
    %817 = vadd.xlane.f32.xlu0 %v816
    %v818 = vpop.xlane.xlu0 %817
    %v819 = vsel %vm764, %v754, 0.0
    %820 = vadd.xlane.f32.xlu0 %v819
    %v821 = vpop.xlane.xlu0 %820
    %v822 = vsel %vm764, %v755, 0.0
    %823 = vadd.xlane.f32.xlu0 %v822
    %v824 = vpop.xlane.xlu0 %823
    %v825 = vsel %vm764, %v756, 0.0
    %826 = vadd.xlane.f32.xlu0 %v825
    %v827 = vpop.xlane.xlu0 %826
    %v828 = vsel %vm764, %v757, 0.0
    %829 = vadd.xlane.f32.xlu0 %v828
    %v830 = vpop.xlane.xlu0 %829
    %v831 = vsel %vm764, %v758, 0.0
    %832 = vadd.xlane.f32.xlu0 %v831
    %v833 = vpop.xlane.xlu0 %832
    %v834 = vsel %vm764, %v759, 0.0
    %835 = vadd.xlane.f32.xlu0 %v834
    %v836 = vpop.xlane.xlu0 %835
    %v837 = vsel %vm764, %v760, 0.0
    %838 = vadd.xlane.f32.xlu0 %v837
    %v839 = vpop.xlane.xlu0 %838
    %v840 = vsel %vm764, %v761, 0.0
    %841 = vadd.xlane.f32.xlu0 %v840
    %v842 = vpop.xlane.xlu0 %841
    %v843 = vsel %vm764, %v762, 0.0
    %844 = vadd.xlane.f32.xlu0 %v843
    %v845 = vpop.xlane.xlu0 %844
    %v846 = vsel %vm764, %v763, 0.0
    %847 = vadd.xlane.f32.xlu0 %v846
    %v848 = vpop.xlane.xlu0 %847
    %v849 = vmul.f32 %v701, %v701
    %v850 = vmul.f32 %v702, %v702
    %v851 = vmul.f32 %v703, %v703
    %v852 = vmul.f32 %v704, %v704
    %v853 = vmul.f32 %v705, %v705
    %v854 = vmul.f32 %v706, %v706
    %v855 = vmul.f32 %v707, %v707
    %v856 = vmul.f32 %v708, %v708
    %v857 = vmul.f32 %v709, %v709
    %v858 = vmul.f32 %v710, %v710
    %v859 = vmul.f32 %v711, %v711
    %v860 = vmul.f32 %v712, %v712
    %v861 = vmul.f32 %v713, %v713
    %v862 = vmul.f32 %v714, %v714
    %v863 = vmul.f32 %v715, %v715
    %v864 = vmul.f32 %v716, %v716
    %v865 = vmul.f32 %v717, %v717
    %v866 = vmul.f32 %v718, %v718
    %v867 = vmul.f32 %v719, %v719
    %v868 = vmul.f32 %v720, %v720
    %v869 = vmul.f32 %v721, %v721
    %v870 = vmul.f32 %v722, %v722
    %v871 = vmul.f32 %v723, %v723
    %v872 = vmul.f32 %v724, %v724
    %v873 = vmul.f32 %v725, %v725
    %v874 = vmul.f32 %v726, %v726
    %v875 = vmul.f32 %v727, %v727
    %v876 = vmul.f32 %v728, %v728
    %v877 = vmul.f32 %v729, %v729
    %v878 = vmul.f32 %v730, %v730
    %v879 = vmul.f32 %v731, %v731
    %v880 = vmul.f32 %v732, %v732
    %v881 = vmul.f32 %v733, %v733
    %v882 = vmul.f32 %v734, %v734
    %v883 = vmul.f32 %v735, %v735
    %v884 = vsel %vm764, %v849, 0.0
    %885 = vadd.xlane.f32.xlu0 %v884
    %v886 = vpop.xlane.xlu0 %885
    %v887 = vsel %vm764, %v850, 0.0
    %888 = vadd.xlane.f32.xlu0 %v887
    %v889 = vpop.xlane.xlu0 %888
    %v890 = vsel %vm764, %v851, 0.0
    %891 = vadd.xlane.f32.xlu0 %v890
    %v892 = vpop.xlane.xlu0 %891
    %v893 = vsel %vm764, %v852, 0.0
    %894 = vadd.xlane.f32.xlu0 %v893
    %v895 = vpop.xlane.xlu0 %894
    %v896 = vsel %vm764, %v853, 0.0
    %897 = vadd.xlane.f32.xlu0 %v896
    %v898 = vpop.xlane.xlu0 %897
    %v899 = vsel %vm764, %v854, 0.0
    %900 = vadd.xlane.f32.xlu0 %v899
    %v901 = vpop.xlane.xlu0 %900
    %v902 = vsel %vm764, %v855, 0.0
    %903 = vadd.xlane.f32.xlu0 %v902
    %v904 = vpop.xlane.xlu0 %903
    %v905 = vsel %vm764, %v856, 0.0
    %906 = vadd.xlane.f32.xlu0 %v905
    %v907 = vpop.xlane.xlu0 %906
    %v908 = vsel %vm764, %v857, 0.0
    %909 = vadd.xlane.f32.xlu0 %v908
    %v910 = vpop.xlane.xlu0 %909
    %v911 = vsel %vm764, %v858, 0.0
    %912 = vadd.xlane.f32.xlu0 %v911
    %v913 = vpop.xlane.xlu0 %912
    %v914 = vsel %vm764, %v859, 0.0
    %915 = vadd.xlane.f32.xlu0 %v914
    %v916 = vpop.xlane.xlu0 %915
    %v917 = vsel %vm764, %v860, 0.0
    %918 = vadd.xlane.f32.xlu0 %v917
    %v919 = vpop.xlane.xlu0 %918
    %v920 = vsel %vm764, %v861, 0.0
    %921 = vadd.xlane.f32.xlu0 %v920
    %v922 = vpop.xlane.xlu0 %921
    %v923 = vsel %vm764, %v862, 0.0
    %924 = vadd.xlane.f32.xlu0 %v923
    %v925 = vpop.xlane.xlu0 %924
    %v926 = vsel %vm764, %v863, 0.0
    %927 = vadd.xlane.f32.xlu0 %v926
    %v928 = vpop.xlane.xlu0 %927
    %v929 = vsel %vm764, %v864, 0.0
    %930 = vadd.xlane.f32.xlu0 %v929
    %v931 = vpop.xlane.xlu0 %930
    %v932 = vsel %vm764, %v865, 0.0
    %933 = vadd.xlane.f32.xlu0 %v932
    %v934 = vpop.xlane.xlu0 %933
    %v935 = vsel %vm764, %v866, 0.0
    %936 = vadd.xlane.f32.xlu0 %v935
    %v937 = vpop.xlane.xlu0 %936
    %v938 = vsel %vm764, %v867, 0.0
    %939 = vadd.xlane.f32.xlu0 %v938
    %v940 = vpop.xlane.xlu0 %939
    %v941 = vsel %vm764, %v868, 0.0
    %942 = vadd.xlane.f32.xlu0 %v941
    %v943 = vpop.xlane.xlu0 %942
    %v944 = vsel %vm764, %v869, 0.0
    %945 = vadd.xlane.f32.xlu0 %v944
    %v946 = vpop.xlane.xlu0 %945
    %v947 = vsel %vm764, %v870, 0.0
    %948 = vadd.xlane.f32.xlu0 %v947
    %v949 = vpop.xlane.xlu0 %948
    %v950 = vsel %vm764, %v871, 0.0
    %951 = vadd.xlane.f32.xlu0 %v950
    %v952 = vpop.xlane.xlu0 %951
    %v953 = vsel %vm764, %v872, 0.0
    %954 = vadd.xlane.f32.xlu0 %v953
    %v955 = vpop.xlane.xlu0 %954
    %v956 = vsel %vm764, %v873, 0.0
    %957 = vadd.xlane.f32.xlu0 %v956
    %v958 = vpop.xlane.xlu0 %957
    %v959 = vsel %vm764, %v874, 0.0
    %960 = vadd.xlane.f32.xlu0 %v959
    %v961 = vpop.xlane.xlu0 %960
    %v962 = vsel %vm764, %v875, 0.0
    %963 = vadd.xlane.f32.xlu0 %v962
    %v964 = vpop.xlane.xlu0 %963
    %v965 = vsel %vm764, %v876, 0.0
    %966 = vadd.xlane.f32.xlu0 %v965
    %v967 = vpop.xlane.xlu0 %966
    %v968 = vsel %vm764, %v877, 0.0
    %969 = vadd.xlane.f32.xlu0 %v968
    %v970 = vpop.xlane.xlu0 %969
    %v971 = vsel %vm764, %v878, 0.0
    %972 = vadd.xlane.f32.xlu0 %v971
    %v973 = vpop.xlane.xlu0 %972
    %v974 = vsel %vm764, %v879, 0.0
    %975 = vadd.xlane.f32.xlu0 %v974
    %v976 = vpop.xlane.xlu0 %975
    %v977 = vsel %vm764, %v880, 0.0
    %978 = vadd.xlane.f32.xlu0 %v977
    %v979 = vpop.xlane.xlu0 %978
    %v980 = vsel %vm764, %v881, 0.0
    %981 = vadd.xlane.f32.xlu0 %v980
    %v982 = vpop.xlane.xlu0 %981
    %v983 = vsel %vm764, %v882, 0.0
    %984 = vadd.xlane.f32.xlu0 %v983
    %v985 = vpop.xlane.xlu0 %984
    %v986 = vsel %vm764, %v883, 0.0
    %987 = vadd.xlane.f32.xlu0 %v986
    %v988 = vpop.xlane.xlu0 %987
    %v989 = vmul.f32 %v673, -2.0
    %v990 = vmul.f32 %v674, -2.0
    %v991 = vmul.f32 %v675, -2.0
    %v992 = vmul.f32 %v676, -2.0
    %v993 = vmul.f32 %v677, -2.0
    %v994 = vmul.f32 %v678, -2.0
    %v995 = vmul.f32 %v679, -2.0
    %v996 = vmul.f32 %v680, -2.0
    %v997 = vmul.f32 %v681, -2.0
    %v998 = vmul.f32 %v682, -2.0
    %v999 = vmul.f32 %v683, -2.0
    %v1000 = vmul.f32 %v684, -2.0
    %v1001 = vmul.f32 %v685, -2.0
    %v1002 = vmul.f32 %v686, -2.0
    %v1003 = vmul.f32 %v687, -2.0
    %v1004 = vmul.f32 %v688, -2.0
    %v1005 = vmul.f32 %v689, -2.0
    %v1006 = vmul.f32 %v690, -2.0
    %v1007 = vmul.f32 %v691, -2.0
    %v1008 = vmul.f32 %v692, -2.0
    %v1009 = vmul.f32 %v693, -2.0
    %v1010 = vmul.f32 %v694, -2.0
    %v1011 = vmul.f32 %v695, -2.0
    %v1012 = vmul.f32 %v696, -2.0
    %v1013 = vmul.f32 %v697, -2.0
    %v1014 = vmul.f32 %v698, -2.0
    %v1015 = vmul.f32 %v699, -2.0
    %v1016 = vmul.f32 %v700, -2.0
    %v1017 = vsel %vm764, %v989, %v767
    %v1018 = vsel %vm764, %v990, %v770
    %v1019 = vsel %vm764, %v991, %v773
    %v1020 = vsel %vm764, %v992, %v776
    %v1021 = vsel %vm764, %v993, %v779
    %v1022 = vsel %vm764, %v994, %v782
    %v1023 = vsel %vm764, %v995, %v785
    %v1024 = vsel %vm764, %v996, %v788
    %v1025 = vsel %vm764, %v997, %v791
    %v1026 = vsel %vm764, %v998, %v794
    %v1027 = vsel %vm764, %v999, %v797
    %v1028 = vsel %vm764, %v1000, %v800
    %v1029 = vsel %vm764, %v1001, %v803
    %v1030 = vsel %vm764, %v1002, %v806
    %v1031 = vsel %vm764, %v1003, %v809
    %v1032 = vsel %vm764, %v1004, %v812
    %v1033 = vsel %vm764, %v1005, %v815
    %v1034 = vsel %vm764, %v1006, %v818
    %v1035 = vsel %vm764, %v1007, %v821
    %v1036 = vsel %vm764, %v1008, %v824
    %v1037 = vsel %vm764, %v1009, %v827
    %v1038 = vsel %vm764, %v1010, %v830
    %v1039 = vsel %vm764, %v1011, %v833
    %v1040 = vsel %vm764, %v1012, %v836
    %v1041 = vsel %vm764, %v1013, %v839
    %v1042 = vsel %vm764, %v1014, %v842
    %v1043 = vsel %vm764, %v1015, %v845
    %v1044 = vsel %vm764, %v1016, %v848
    %vm1045 = vcmask 138240
    %v1046 = vsel %vm1045, %v1017, 1.0
    %v1047 = vsel %vm1045, %v1018, 1.0
    %v1048 = vsel %vm1045, %v1019, 1.0
    %v1049 = vsel %vm1045, %v1020, 1.0
    %v1050 = vsel %vm1045, %v1021, 1.0
    %v1051 = vsel %vm1045, %v1022, 1.0
    %v1052 = vsel %vm1045, %v1023, 1.0
    %v1053 = vsel %vm1045, %v1024, 1.0
    %v1054 = vsel %vm1045, %v1025, 1.0
    %v1055 = vsel %vm1045, %v1026, 1.0
    %v1056 = vsel %vm1045, %v1027, 1.0
    %v1057 = vsel %vm1045, %v1028, 1.0
    %v1058 = vsel %vm1045, %v1029, 1.0
    %v1059 = vsel %vm1045, %v1030, 1.0
    %v1060 = vsel %vm1045, %v1031, 1.0
    %v1061 = vsel %vm1045, %v1032, 1.0
    %v1062 = vsel %vm1045, %v1033, 1.0
    %v1063 = vsel %vm1045, %v1034, 1.0
    %v1064 = vsel %vm1045, %v1035, 1.0
    %v1065 = vsel %vm1045, %v1036, 1.0
    %v1066 = vsel %vm1045, %v1037, 1.0
    %v1067 = vsel %vm1045, %v1038, 1.0
    %v1068 = vsel %vm1045, %v1039, 1.0
    %v1069 = vsel %vm1045, %v1040, 1.0
    %v1070 = vsel %vm1045, %v1041, 1.0
    %v1071 = vsel %vm1045, %v1042, 1.0
    %v1072 = vsel %vm1045, %v1043, 1.0
    %v1073 = vsel %vm1045, %v1044, 1.0
    %v1074 = vsel %vm764, %v701, 1.0
    %v1075 = vsel %vm764, %v702, 1.0
    %v1076 = vsel %vm764, %v703, 1.0
    %v1077 = vsel %vm764, %v704, 1.0
    %v1078 = vsel %vm764, %v705, 1.0
    %v1079 = vsel %vm764, %v706, 1.0
    %v1080 = vsel %vm764, %v707, 1.0
    %v1081 = vsel %vm764, %v708, 1.0
    %v1082 = vsel %vm764, %v709, 1.0
    %v1083 = vsel %vm764, %v710, 1.0
    %v1084 = vsel %vm764, %v711, 1.0
    %v1085 = vsel %vm764, %v712, 1.0
    %v1086 = vsel %vm764, %v713, 1.0
    %v1087 = vsel %vm764, %v714, 1.0
    %v1088 = vsel %vm764, %v715, 1.0
    %v1089 = vsel %vm764, %v716, 1.0
    %v1090 = vsel %vm764, %v717, 1.0
    %v1091 = vsel %vm764, %v718, 1.0
    %v1092 = vsel %vm764, %v719, 1.0
    %v1093 = vsel %vm764, %v720, 1.0
    %v1094 = vsel %vm764, %v721, 1.0
    %v1095 = vsel %vm764, %v722, 1.0
    %v1096 = vsel %vm764, %v723, 1.0
    %v1097 = vsel %vm764, %v724, 1.0
    %v1098 = vsel %vm764, %v725, 1.0
    %v1099 = vsel %vm764, %v726, 1.0
    %v1100 = vsel %vm764, %v727, 1.0
    %v1101 = vsel %vm764, %v728, 1.0
    %v1102 = vsel %vm764, %v729, 1.0
    %v1103 = vsel %vm764, %v730, 1.0
    %v1104 = vsel %vm764, %v731, 1.0
    %v1105 = vsel %vm764, %v732, 1.0
    %v1106 = vsel %vm764, %v733, 1.0
    %v1107 = vsel %vm764, %v734, 1.0
    %v1108 = vsel %vm764, %v735, 1.0
    %v1109 = vsel %vm1045, %v1074, %v886
    %v1110 = vsel %vm1045, %v1075, %v889
    %v1111 = vsel %vm1045, %v1076, %v892
    %v1112 = vsel %vm1045, %v1077, %v895
    %v1113 = vsel %vm1045, %v1078, %v898
    %v1114 = vsel %vm1045, %v1079, %v901
    %v1115 = vsel %vm1045, %v1080, %v904
    %v1116 = vsel %vm1045, %v1081, %v907
    %v1117 = vsel %vm1045, %v1082, %v910
    %v1118 = vsel %vm1045, %v1083, %v913
    %v1119 = vsel %vm1045, %v1084, %v916
    %v1120 = vsel %vm1045, %v1085, %v919
    %v1121 = vsel %vm1045, %v1086, %v922
    %v1122 = vsel %vm1045, %v1087, %v925
    %v1123 = vsel %vm1045, %v1088, %v928
    %v1124 = vsel %vm1045, %v1089, %v931
    %v1125 = vsel %vm1045, %v1090, %v934
    %v1126 = vsel %vm1045, %v1091, %v937
    %v1127 = vsel %vm1045, %v1092, %v940
    %v1128 = vsel %vm1045, %v1093, %v943
    %v1129 = vsel %vm1045, %v1094, %v946
    %v1130 = vsel %vm1045, %v1095, %v949
    %v1131 = vsel %vm1045, %v1096, %v952
    %v1132 = vsel %vm1045, %v1097, %v955
    %v1133 = vsel %vm1045, %v1098, %v958
    %v1134 = vsel %vm1045, %v1099, %v961
    %v1135 = vsel %vm1045, %v1100, %v964
    %v1136 = vsel %vm1045, %v1101, %v967
    %v1137 = vsel %vm1045, %v1102, %v970
    %v1138 = vsel %vm1045, %v1103, %v973
    %v1139 = vsel %vm1045, %v1104, %v976
    %v1140 = vsel %vm1045, %v1105, %v979
    %v1141 = vsel %vm1045, %v1106, %v982
    %v1142 = vsel %vm1045, %v1107, %v985
    %v1143 = vsel %vm1045, %v1108, %v988
    %vm1144 = vcmask 146432
    %v1146 = vsel %vm1144, %v1046, 0
    %v1149 = vsel %vm1144, %v1047, 0
    %v1152 = vsel %vm1144, %v1048, 0
    %v1155 = vsel %vm1144, %v1049, 0
    %v1158 = vsel %vm1144, %v1050, 0
    %v1161 = vsel %vm1144, %v1051, 0
    %v1164 = vsel %vm1144, %v1052, 0
    %v1167 = vsel %vm1144, %v1053, 0
    %v1170 = vsel %vm1144, %v1054, 0
    %v1173 = vsel %vm1144, %v1055, 0
    %v1176 = vsel %vm1144, %v1056, 0
    %v1179 = vsel %vm1144, %v1057, 0
    %v1182 = vsel %vm1144, %v1058, 0
    %v1185 = vsel %vm1144, %v1059, 0
    %v1188 = vsel %vm1144, %v1060, 0
    %v1191 = vsel %vm1144, %v1061, 0
    %v1194 = vsel %vm1144, %v1062, 0
    %v1197 = vsel %vm1144, %v1063, 0
    %v1200 = vsel %vm1144, %v1064, 0
    %v1203 = vsel %vm1144, %v1065, 0
    %v1206 = vsel %vm1144, %v1066, 0
    %v1209 = vsel %vm1144, %v1067, 0
    %v1212 = vsel %vm1144, %v1068, 0
    %v1215 = vsel %vm1144, %v1069, 0
    %v1218 = vsel %vm1144, %v1070, 0
    %v1221 = vsel %vm1144, %v1071, 0
    %v1224 = vsel %vm1144, %v1072, 0
    %v1227 = vsel %vm1144, %v1073, 0
    %v1230 = vsel %vm1144, %v1109, 0
    %v1233 = vsel %vm1144, %v1110, 0
    %v1236 = vsel %vm1144, %v1111, 0
    %v1239 = vsel %vm1144, %v1112, 0
    %v1242 = vsel %vm1144, %v1113, 0
    %v1245 = vsel %vm1144, %v1114, 0
    %v1248 = vsel %vm1144, %v1115, 0
    %v1251 = vsel %vm1144, %v1116, 0
    %v1254 = vsel %vm1144, %v1117, 0
    %v1257 = vsel %vm1144, %v1118, 0
    %v1260 = vsel %vm1144, %v1119, 0
    %v1263 = vsel %vm1144, %v1120, 0
    %v1266 = vsel %vm1144, %v1121, 0
    %v1269 = vsel %vm1144, %v1122, 0
    %v1272 = vsel %vm1144, %v1123, 0
    %v1275 = vsel %vm1144, %v1124, 0
    %v1278 = vsel %vm1144, %v1125, 0
    %v1281 = vsel %vm1144, %v1126, 0
    %v1284 = vsel %vm1144, %v1127, 0
    %v1287 = vsel %vm1144, %v1128, 0
    %v1290 = vsel %vm1144, %v1129, 0
    %v1293 = vsel %vm1144, %v1130, 0
    %v1296 = vsel %vm1144, %v1131, 0
    %v1299 = vsel %vm1144, %v1132, 0
    %v1302 = vsel %vm1144, %v1133, 0
    %v1305 = vsel %vm1144, %v1134, 0
    %v1308 = vsel %vm1144, %v1135, 0
    %v1311 = vsel %vm1144, %v1136, 0
    %v1314 = vsel %vm1144, %v1137, 0
    %v1317 = vsel %vm1144, %v1138, 0
    %v1320 = vsel %vm1144, %v1139, 0
    %v1323 = vsel %vm1144, %v1140, 0
    %v1326 = vsel %vm1144, %v1141, 0
    %v1329 = vsel %vm1144, %v1142, 0
    %v1332 = vsel %vm1144, %v1143, 0
    %1334 = vmatprep.subr.mxu0 0.0
    %1335 = vmatpush1.xpose.msra.mxu0 %v1230
    %1336 = vmatprep.subr.mxu0 0.0
    %1337 = vmatpush1.xpose.msra.mxu0 %v1233
    %1338 = vmatprep.subr.mxu0 0.0
    %1339 = vmatpush1.xpose.msra.mxu0 %v1236
    %1340 = vmatprep.subr.mxu0 0.0
    %1341 = vmatpush1.xpose.msra.mxu0 %v1239
    %1342 = vmatprep.subr.mxu0 0.0
    %1343 = vmatpush1.xpose.msra.mxu0 %v1242
    %1344 = vmatprep.subr.mxu0 0.0
    %1345 = vmatpush1.xpose.msra.mxu0 %v1245
    %1346 = vmatprep.subr.mxu0 0.0
    %1347 = vmatpush1.xpose.msra.mxu0 %v1248
    %1348 = vmatprep.subr.mxu0 0.0
    %1349 = vmatpush1.xpose.msra.mxu0 %v1251
    %1350 = vmatprep.subr.mxu0 0.0
    %1351 = vmatpush1.xpose.msra.mxu0 %v1254
    %1352 = vmatprep.subr.mxu0 0.0
    %1353 = vmatpush1.xpose.msra.mxu0 %v1257
    %1354 = vmatprep.subr.mxu0 0.0
    %1355 = vmatpush1.xpose.msra.mxu0 %v1260
    %1356 = vmatprep.subr.mxu0 0.0
    %1357 = vmatpush1.xpose.msra.mxu0 %v1263
    %1358 = vmatprep.subr.mxu0 0.0
    %1359 = vmatpush1.xpose.msra.mxu0 %v1266
    %1360 = vmatprep.subr.mxu0 0.0
    %1361 = vmatpush1.xpose.msra.mxu0 %v1269
    %1362 = vmatprep.subr.mxu0 0.0
    %1363 = vmatpush1.xpose.msra.mxu0 %v1272
    %1364 = vmatprep.subr.mxu0 0.0
    %1365 = vmatpush1.xpose.msra.mxu0 %v1275
    %1366 = vmatprep.subr.mxu0 0.0
    %1367 = vmatpush1.xpose.msra.mxu0 %v1278
    %1368 = vmatprep.subr.mxu0 0.0
    %1369 = vmatpush1.xpose.msra.mxu0 %v1281
    %1370 = vmatprep.subr.mxu0 0.0
    %1371 = vmatpush1.xpose.msra.mxu0 %v1284
    %1372 = vmatprep.subr.mxu0 0.0
    %1373 = vmatpush1.xpose.msra.mxu0 %v1287
    %1374 = vmatprep.subr.mxu0 0.0
    %1375 = vmatpush1.xpose.msra.mxu0 %v1290
    %1376 = vmatprep.subr.mxu0 0.0
    %1377 = vmatpush1.xpose.msra.mxu0 %v1293
    %1378 = vmatprep.subr.mxu0 0.0
    %1379 = vmatpush1.xpose.msra.mxu0 %v1296
    %1380 = vmatprep.subr.mxu0 0.0
    %1381 = vmatpush1.xpose.msra.mxu0 %v1299
    %1382 = vmatprep.subr.mxu0 0.0
    %1383 = vmatpush1.xpose.msra.mxu0 %v1302
    %1384 = vmatprep.subr.mxu0 0.0
    %1385 = vmatpush1.xpose.msra.mxu0 %v1305
    %1386 = vmatprep.subr.mxu0 0.0
    %1387 = vmatpush1.xpose.msra.mxu0 %v1308
    %1388 = vmatprep.subr.mxu0 0.0
    %1389 = vmatpush1.xpose.msra.mxu0 %v1311
    %1390 = vmatprep.subr.mxu0 0.0
    %1391 = vmatpush1.xpose.msra.mxu0 %v1314
    %1392 = vmatprep.subr.mxu0 0.0
    %1393 = vmatpush1.xpose.msra.mxu0 %v1317
    %1394 = vmatprep.subr.mxu0 0.0
    %1395 = vmatpush1.xpose.msra.mxu0 %v1320
    %1396 = vmatprep.subr.mxu0 0.0
    %1397 = vmatpush1.xpose.msra.mxu0 %v1323
    %1398 = vmatprep.mubr.f32.mxu0 0.0
    %1399 = vmatmul.mubr.f32.gmra.mrb[0].mxu0 %v1146
    %v1400 = vpop.f32.mrb[0].mxu0
    %v1401 = vadd.f32 0.0, %v1400
    %v1402 = vpop.f32.mrb[0].mxu0
    %v1403 = vadd.f32 0.0, %v1402
    %1404 = vmatprep.mubr.f32.mxu0 0.0
    %1405 = vmatmul.mubr.f32.gmra.mrb[0].mxu0 %v1149
    %v1406 = vpop.f32.mrb[0].mxu0
    %v1407 = vadd.f32 0.0, %v1406
    %v1408 = vpop.f32.mrb[0].mxu0
    %v1409 = vadd.f32 0.0, %v1408
    %1410 = vmatprep.mubr.f32.mxu0 0.0
    %1411 = vmatmul.mubr.f32.gmra.mrb[0].mxu0 %v1152
    %v1412 = vpop.f32.mrb[0].mxu0
    %v1413 = vadd.f32 0.0, %v1412
    %v1414 = vpop.f32.mrb[0].mxu0
    %v1415 = vadd.f32 0.0, %v1414
    %1416 = vmatprep.mubr.f32.mxu0 0.0
    %1417 = vmatmul.mubr.f32.gmra.mrb[0].mxu0 %v1155
    %v1418 = vpop.f32.mrb[0].mxu0
    %v1419 = vadd.f32 0.0, %v1418
    %v1420 = vpop.f32.mrb[0].mxu0
    %v1421 = vadd.f32 0.0, %v1420
    %1422 = vmatprep.mubr.f32.mxu0 0.0
    %1423 = vmatmul.mubr.f32.gmra.mrb[0].mxu0 %v1158
    %v1424 = vpop.f32.mrb[0].mxu0
    %v1425 = vadd.f32 0.0, %v1424
    %v1426 = vpop.f32.mrb[0].mxu0
    %v1427 = vadd.f32 0.0, %v1426
    %1428 = vmatprep.mubr.f32.mxu0 0.0
    %1429 = vmatmul.mubr.f32.gmra.mrb[0].mxu0 %v1161
    %v1430 = vpop.f32.mrb[0].mxu0
    %v1431 = vadd.f32 0.0, %v1430
    %v1432 = vpop.f32.mrb[0].mxu0
    %v1433 = vadd.f32 0.0, %v1432
    %1434 = vmatprep.mubr.f32.mxu0 0.0
    %1435 = vmatmul.mubr.f32.gmra.mrb[0].mxu0 %v1164
    %v1436 = vpop.f32.mrb[0].mxu0
    %v1437 = vadd.f32 0.0, %v1436
    %v1438 = vpop.f32.mrb[0].mxu0
    %v1439 = vadd.f32 0.0, %v1438
    %1440 = vmatprep.mubr.f32.mxu0 0.0
    %1441 = vmatmul.mubr.f32.gmra.mrb[0].mxu0 %v1167
    %v1442 = vpop.f32.mrb[0].mxu0
    %v1443 = vadd.f32 0.0, %v1442
    %v1444 = vpop.f32.mrb[0].mxu0
    %v1445 = vadd.f32 0.0, %v1444
    %1446 = vmatprep.mubr.f32.mxu0 0.0
    %1447 = vmatmul.mubr.f32.gmra.mrb[0].mxu0 %v1170
    %v1448 = vpop.f32.mrb[0].mxu0
    %v1449 = vadd.f32 0.0, %v1448
    %v1450 = vpop.f32.mrb[0].mxu0
    %v1451 = vadd.f32 0.0, %v1450
    %1452 = vmatprep.mubr.f32.mxu0 0.0
    %1453 = vmatmul.mubr.f32.gmra.mrb[0].mxu0 %v1173
    %v1454 = vpop.f32.mrb[0].mxu0
    %v1455 = vadd.f32 0.0, %v1454
    %v1456 = vpop.f32.mrb[0].mxu0
    %v1457 = vadd.f32 0.0, %v1456
    %1458 = vmatprep.mubr.f32.mxu0 0.0
    %1459 = vmatmul.mubr.f32.gmra.mrb[0].mxu0 %v1176
    %v1460 = vpop.f32.mrb[0].mxu0
    %v1461 = vadd.f32 0.0, %v1460
    %v1462 = vpop.f32.mrb[0].mxu0
    %v1463 = vadd.f32 0.0, %v1462
    %1464 = vmatprep.mubr.f32.mxu0 0.0
    %1465 = vmatmul.mubr.f32.gmra.mrb[0].mxu0 %v1179
    %v1466 = vpop.f32.mrb[0].mxu0
    %v1467 = vadd.f32 0.0, %v1466
    %v1468 = vpop.f32.mrb[0].mxu0
    %v1469 = vadd.f32 0.0, %v1468
    %1470 = vmatprep.mubr.f32.mxu0 0.0
    %1471 = vmatmul.mubr.f32.gmra.mrb[0].mxu0 %v1182
    %v1472 = vpop.f32.mrb[0].mxu0
    %v1473 = vadd.f32 0.0, %v1472
    %v1474 = vpop.f32.mrb[0].mxu0
    %v1475 = vadd.f32 0.0, %v1474
    %1476 = vmatprep.mubr.f32.mxu0 0.0
    %1477 = vmatmul.mubr.f32.gmra.mrb[0].mxu0 %v1185
    %v1478 = vpop.f32.mrb[0].mxu0
    %v1479 = vadd.f32 0.0, %v1478
    %v1480 = vpop.f32.mrb[0].mxu0
    %v1481 = vadd.f32 0.0, %v1480
    %1482 = vmatprep.mubr.f32.mxu0 0.0
    %1483 = vmatmul.mubr.f32.gmra.mrb[0].mxu0 %v1188
    %v1484 = vpop.f32.mrb[0].mxu0
    %v1485 = vadd.f32 0.0, %v1484
    %v1486 = vpop.f32.mrb[0].mxu0
    %v1487 = vadd.f32 0.0, %v1486
    %1488 = vmatprep.mubr.f32.mxu0 0.0
    %1489 = vmatmul.mubr.f32.gmra.mrb[0].mxu0 %v1191
    %v1490 = vpop.f32.mrb[0].mxu0
    %v1491 = vadd.f32 0.0, %v1490
    %v1492 = vpop.f32.mrb[0].mxu0
    %v1493 = vadd.f32 0.0, %v1492
    %1494 = vmatprep.mubr.f32.mxu0 0.0
    %1495 = vmatmul.mubr.f32.gmra.mrb[0].mxu0 %v1194
    %v1496 = vpop.f32.mrb[0].mxu0
    %v1497 = vadd.f32 0.0, %v1496
    %v1498 = vpop.f32.mrb[0].mxu0
    %v1499 = vadd.f32 0.0, %v1498
    %1500 = vmatprep.mubr.f32.mxu0 0.0
    %1501 = vmatmul.mubr.f32.gmra.mrb[0].mxu0 %v1197
    %v1502 = vpop.f32.mrb[0].mxu0
    %v1503 = vadd.f32 0.0, %v1502
    %v1504 = vpop.f32.mrb[0].mxu0
    %v1505 = vadd.f32 0.0, %v1504
    %1506 = vmatprep.mubr.f32.mxu0 0.0
    %1507 = vmatmul.mubr.f32.gmra.mrb[0].mxu0 %v1200
    %v1508 = vpop.f32.mrb[0].mxu0
    %v1509 = vadd.f32 0.0, %v1508
    %v1510 = vpop.f32.mrb[0].mxu0
    %v1511 = vadd.f32 0.0, %v1510
    %1512 = vmatprep.mubr.f32.mxu0 0.0
    %1513 = vmatmul.mubr.f32.gmra.mrb[0].mxu0 %v1203
    %v1514 = vpop.f32.mrb[0].mxu0
    %v1515 = vadd.f32 0.0, %v1514
    %v1516 = vpop.f32.mrb[0].mxu0
    %v1517 = vadd.f32 0.0, %v1516
    %1518 = vmatprep.mubr.f32.mxu0 0.0
    %1519 = vmatmul.mubr.f32.gmra.mrb[0].mxu0 %v1206
    %v1520 = vpop.f32.mrb[0].mxu0
    %v1521 = vadd.f32 0.0, %v1520
    %v1522 = vpop.f32.mrb[0].mxu0
    %v1523 = vadd.f32 0.0, %v1522
    %1524 = vmatprep.mubr.f32.mxu0 0.0
    %1525 = vmatmul.mubr.f32.gmra.mrb[0].mxu0 %v1209
    %v1526 = vpop.f32.mrb[0].mxu0
    %v1527 = vadd.f32 0.0, %v1526
    %v1528 = vpop.f32.mrb[0].mxu0
    %v1529 = vadd.f32 0.0, %v1528
    %1530 = vmatprep.mubr.f32.mxu0 0.0
    %1531 = vmatmul.mubr.f32.gmra.mrb[0].mxu0 %v1212
    %v1532 = vpop.f32.mrb[0].mxu0
    %v1533 = vadd.f32 0.0, %v1532
    %v1534 = vpop.f32.mrb[0].mxu0
    %v1535 = vadd.f32 0.0, %v1534
    %1536 = vmatprep.mubr.f32.mxu0 0.0
    %1537 = vmatmul.mubr.f32.gmra.mrb[0].mxu0 %v1215
    %v1538 = vpop.f32.mrb[0].mxu0
    %v1539 = vadd.f32 0.0, %v1538
    %v1540 = vpop.f32.mrb[0].mxu0
    %v1541 = vadd.f32 0.0, %v1540
    %1542 = vmatprep.mubr.f32.mxu0 0.0
    %1543 = vmatmul.mubr.f32.gmra.mrb[0].mxu0 %v1218
    %v1544 = vpop.f32.mrb[0].mxu0
    %v1545 = vadd.f32 0.0, %v1544
    %v1546 = vpop.f32.mrb[0].mxu0
    %v1547 = vadd.f32 0.0, %v1546
    %1548 = vmatprep.mubr.f32.mxu0 0.0
    %1549 = vmatmul.mubr.f32.gmra.mrb[0].mxu0 %v1221
    %v1550 = vpop.f32.mrb[0].mxu0
    %v1551 = vadd.f32 0.0, %v1550
    %v1552 = vpop.f32.mrb[0].mxu0
    %v1553 = vadd.f32 0.0, %v1552
    %1554 = vmatprep.mubr.f32.mxu0 0.0
    %1555 = vmatmul.mubr.f32.gmra.mrb[0].mxu0 %v1224
    %v1556 = vpop.f32.mrb[0].mxu0
    %v1557 = vadd.f32 0.0, %v1556
    %v1558 = vpop.f32.mrb[0].mxu0
    %v1559 = vadd.f32 0.0, %v1558
    %1560 = vmatprep.mubr.f32.mxu0 0.0
    %1561 = vmatmul.mubr.f32.gmra.mrb[0].mxu0 %v1227
    %v1562 = vpop.f32.mrb[0].mxu0
    %v1563 = vadd.f32 0.0, %v1562
    %v1564 = vpop.f32.mrb[0].mxu0
    %v1565 = vadd.f32 0.0, %v1564
    %1566 = vdwg.mxu0
    %1567 = vmatprep.subr.mxu0 0.0
    %1568 = vmatpush1.xpose.msra.mxu0 %v1326
    %1569 = vmatprep.subr.mxu0 0.0
    %1570 = vmatpush1.xpose.msra.mxu0 %v1329
    %1571 = vmatprep.subr.mxu0 0.0
    %1572 = vmatpush1.xpose.msra.mxu0 %v1332
    %1573 = vmatprep.subr.mxu0 0.0
    %1574 = vmatpush1.xpose.msra.mxu0 0.0
    %1575 = vmatprep.subr.mxu0 0.0
    %1576 = vmatpush1.xpose.msra.mxu0 0.0
    %1577 = vmatprep.subr.mxu0 0.0
    %1578 = vmatpush1.xpose.msra.mxu0 0.0
    %1579 = vmatprep.subr.mxu0 0.0
    %1580 = vmatpush1.xpose.msra.mxu0 0.0
    %1581 = vmatprep.subr.mxu0 0.0
    %1582 = vmatpush1.xpose.msra.mxu0 0.0
    %1583 = vmatprep.subr.mxu0 0.0
    %1584 = vmatpush1.xpose.msra.mxu0 0.0
    %1585 = vmatprep.subr.mxu0 0.0
    %1586 = vmatpush1.xpose.msra.mxu0 0.0
    %1587 = vmatprep.subr.mxu0 0.0
    %1588 = vmatpush1.xpose.msra.mxu0 0.0
    %1589 = vmatprep.subr.mxu0 0.0
    %1590 = vmatpush1.xpose.msra.mxu0 0.0
    %1591 = vmatprep.subr.mxu0 0.0
    %1592 = vmatpush1.xpose.msra.mxu0 0.0
    %1593 = vmatprep.subr.mxu0 0.0
    %1594 = vmatpush1.xpose.msra.mxu0 0.0
    %1595 = vmatprep.subr.mxu0 0.0
    %1596 = vmatpush1.xpose.msra.mxu0 0.0
    %1597 = vmatprep.subr.mxu0 0.0
    %1598 = vmatpush1.xpose.msra.mxu0 0.0
    %1599 = vmatprep.subr.mxu0 0.0
    %1600 = vmatpush1.xpose.msra.mxu0 0.0
    %1601 = vmatprep.subr.mxu0 0.0
    %1602 = vmatpush1.xpose.msra.mxu0 0.0
    %1603 = vmatprep.subr.mxu0 0.0
    %1604 = vmatpush1.xpose.msra.mxu0 0.0
    %1605 = vmatprep.subr.mxu0 0.0
    %1606 = vmatpush1.xpose.msra.mxu0 0.0
    %1607 = vmatprep.subr.mxu0 0.0
    %1608 = vmatpush1.xpose.msra.mxu0 0.0
    %1609 = vmatprep.subr.mxu0 0.0
    %1610 = vmatpush1.xpose.msra.mxu0 0.0
    %1611 = vmatprep.subr.mxu0 0.0
    %1612 = vmatpush1.xpose.msra.mxu0 0.0
    %1613 = vmatprep.subr.mxu0 0.0
    %1614 = vmatpush1.xpose.msra.mxu0 0.0
    %1615 = vmatprep.subr.mxu0 0.0
    %1616 = vmatpush1.xpose.msra.mxu0 0.0
    %1617 = vmatprep.subr.mxu0 0.0
    %1618 = vmatpush1.xpose.msra.mxu0 0.0
    %1619 = vmatprep.subr.mxu0 0.0
    %1620 = vmatpush1.xpose.msra.mxu0 0.0
    %1621 = vmatprep.subr.mxu0 0.0
    %1622 = vmatpush1.xpose.msra.mxu0 0.0
    %1623 = vmatprep.subr.mxu0 0.0
    %1624 = vmatpush1.xpose.msra.mxu0 0.0
    %1625 = vmatprep.subr.mxu0 0.0
    %1626 = vmatpush1.xpose.msra.mxu0 0.0
    %1627 = vmatprep.subr.mxu0 0.0
    %1628 = vmatpush1.xpose.msra.mxu0 0.0
    %1629 = vmatprep.subr.mxu0 0.0
    %1630 = vmatpush1.xpose.msra.mxu0 0.0
    %1631 = vmatprep.mubr.f32.mxu0 0.0
    %1632 = vmatmul.mubr.f32.gmra.mrb[0].mxu0 %v1146
    %v1633 = vpop.f32.mrb[0].mxu0
    %v1634 = vadd.f32 0.0, %v1633
    %v1635 = vpop.f32.mrb[0].mxu0
    %1636 = vmatprep.mubr.f32.mxu0 0.0
    %1637 = vmatmul.mubr.f32.gmra.mrb[0].mxu0 %v1149
    %v1638 = vpop.f32.mrb[0].mxu0
    %v1639 = vadd.f32 0.0, %v1638
    %v1640 = vpop.f32.mrb[0].mxu0
    %1641 = vmatprep.mubr.f32.mxu0 0.0
    %1642 = vmatmul.mubr.f32.gmra.mrb[0].mxu0 %v1152
    %v1643 = vpop.f32.mrb[0].mxu0
    %v1644 = vadd.f32 0.0, %v1643
    %v1645 = vpop.f32.mrb[0].mxu0
    %1646 = vmatprep.mubr.f32.mxu0 0.0
    %1647 = vmatmul.mubr.f32.gmra.mrb[0].mxu0 %v1155
    %v1648 = vpop.f32.mrb[0].mxu0
    %v1649 = vadd.f32 0.0, %v1648
    %v1650 = vpop.f32.mrb[0].mxu0
    %1651 = vmatprep.mubr.f32.mxu0 0.0
    %1652 = vmatmul.mubr.f32.gmra.mrb[0].mxu0 %v1158
    %v1653 = vpop.f32.mrb[0].mxu0
    %v1654 = vadd.f32 0.0, %v1653
    %v1655 = vpop.f32.mrb[0].mxu0
    %1656 = vmatprep.mubr.f32.mxu0 0.0
    %1657 = vmatmul.mubr.f32.gmra.mrb[0].mxu0 %v1161
    %v1658 = vpop.f32.mrb[0].mxu0
    %v1659 = vadd.f32 0.0, %v1658
    %v1660 = vpop.f32.mrb[0].mxu0
    %1661 = vmatprep.mubr.f32.mxu0 0.0
    %1662 = vmatmul.mubr.f32.gmra.mrb[0].mxu0 %v1164
    %v1663 = vpop.f32.mrb[0].mxu0
    %v1664 = vadd.f32 0.0, %v1663
    %v1665 = vpop.f32.mrb[0].mxu0
    %1666 = vmatprep.mubr.f32.mxu0 0.0
    %1667 = vmatmul.mubr.f32.gmra.mrb[0].mxu0 %v1167
    %v1668 = vpop.f32.mrb[0].mxu0
    %v1669 = vadd.f32 0.0, %v1668
    %v1670 = vpop.f32.mrb[0].mxu0
    %1671 = vmatprep.mubr.f32.mxu0 0.0
    %1672 = vmatmul.mubr.f32.gmra.mrb[0].mxu0 %v1170
    %v1673 = vpop.f32.mrb[0].mxu0
    %v1674 = vadd.f32 0.0, %v1673
    %v1675 = vpop.f32.mrb[0].mxu0
    %1676 = vmatprep.mubr.f32.mxu0 0.0
    %1677 = vmatmul.mubr.f32.gmra.mrb[0].mxu0 %v1173
    %v1678 = vpop.f32.mrb[0].mxu0
    %v1679 = vadd.f32 0.0, %v1678
    %v1680 = vpop.f32.mrb[0].mxu0
    %1681 = vmatprep.mubr.f32.mxu0 0.0
    %1682 = vmatmul.mubr.f32.gmra.mrb[0].mxu0 %v1176
    %v1683 = vpop.f32.mrb[0].mxu0
    %v1684 = vadd.f32 0.0, %v1683
    %v1685 = vpop.f32.mrb[0].mxu0
    %1686 = vmatprep.mubr.f32.mxu0 0.0
    %1687 = vmatmul.mubr.f32.gmra.mrb[0].mxu0 %v1179
    %v1688 = vpop.f32.mrb[0].mxu0
    %v1689 = vadd.f32 0.0, %v1688
    %v1690 = vpop.f32.mrb[0].mxu0
    %1691 = vmatprep.mubr.f32.mxu0 0.0
    %1692 = vmatmul.mubr.f32.gmra.mrb[0].mxu0 %v1182
    %v1693 = vpop.f32.mrb[0].mxu0
    %v1694 = vadd.f32 0.0, %v1693
    %v1695 = vpop.f32.mrb[0].mxu0
    %1696 = vmatprep.mubr.f32.mxu0 0.0
    %1697 = vmatmul.mubr.f32.gmra.mrb[0].mxu0 %v1185
    %v1698 = vpop.f32.mrb[0].mxu0
    %v1699 = vadd.f32 0.0, %v1698
    %v1700 = vpop.f32.mrb[0].mxu0
    %1701 = vmatprep.mubr.f32.mxu0 0.0
    %1702 = vmatmul.mubr.f32.gmra.mrb[0].mxu0 %v1188
    %v1703 = vpop.f32.mrb[0].mxu0
    %v1704 = vadd.f32 0.0, %v1703
    %v1705 = vpop.f32.mrb[0].mxu0
    %1706 = vmatprep.mubr.f32.mxu0 0.0
    %1707 = vmatmul.mubr.f32.gmra.mrb[0].mxu0 %v1191
    %v1708 = vpop.f32.mrb[0].mxu0
    %v1709 = vadd.f32 0.0, %v1708
    %v1710 = vpop.f32.mrb[0].mxu0
    %1711 = vmatprep.mubr.f32.mxu0 0.0
    %1712 = vmatmul.mubr.f32.gmra.mrb[0].mxu0 %v1194
    %v1713 = vpop.f32.mrb[0].mxu0
    %v1714 = vadd.f32 0.0, %v1713
    %v1715 = vpop.f32.mrb[0].mxu0
    %1716 = vmatprep.mubr.f32.mxu0 0.0
    %1717 = vmatmul.mubr.f32.gmra.mrb[0].mxu0 %v1197
    %v1718 = vpop.f32.mrb[0].mxu0
    %v1719 = vadd.f32 0.0, %v1718
    %v1720 = vpop.f32.mrb[0].mxu0
    %1721 = vmatprep.mubr.f32.mxu0 0.0
    %1722 = vmatmul.mubr.f32.gmra.mrb[0].mxu0 %v1200
    %v1723 = vpop.f32.mrb[0].mxu0
    %v1724 = vadd.f32 0.0, %v1723
    %v1725 = vpop.f32.mrb[0].mxu0
    %1726 = vmatprep.mubr.f32.mxu0 0.0
    %1727 = vmatmul.mubr.f32.gmra.mrb[0].mxu0 %v1203
    %v1728 = vpop.f32.mrb[0].mxu0
    %v1729 = vadd.f32 0.0, %v1728
    %v1730 = vpop.f32.mrb[0].mxu0
    %1731 = vmatprep.mubr.f32.mxu0 0.0
    %1732 = vmatmul.mubr.f32.gmra.mrb[0].mxu0 %v1206
    %v1733 = vpop.f32.mrb[0].mxu0
    %v1734 = vadd.f32 0.0, %v1733
    %v1735 = vpop.f32.mrb[0].mxu0
    %1736 = vmatprep.mubr.f32.mxu0 0.0
    %1737 = vmatmul.mubr.f32.gmra.mrb[0].mxu0 %v1209
    %v1738 = vpop.f32.mrb[0].mxu0
    %v1739 = vadd.f32 0.0, %v1738
    %v1740 = vpop.f32.mrb[0].mxu0
    %1741 = vmatprep.mubr.f32.mxu0 0.0
    %1742 = vmatmul.mubr.f32.gmra.mrb[0].mxu0 %v1212
    %v1743 = vpop.f32.mrb[0].mxu0
    %v1744 = vadd.f32 0.0, %v1743
    %v1745 = vpop.f32.mrb[0].mxu0
    %1746 = vmatprep.mubr.f32.mxu0 0.0
    %1747 = vmatmul.mubr.f32.gmra.mrb[0].mxu0 %v1215
    %v1748 = vpop.f32.mrb[0].mxu0
    %v1749 = vadd.f32 0.0, %v1748
    %v1750 = vpop.f32.mrb[0].mxu0
    %1751 = vmatprep.mubr.f32.mxu0 0.0
    %1752 = vmatmul.mubr.f32.gmra.mrb[0].mxu0 %v1218
    %v1753 = vpop.f32.mrb[0].mxu0
    %v1754 = vadd.f32 0.0, %v1753
    %v1755 = vpop.f32.mrb[0].mxu0
    %1756 = vmatprep.mubr.f32.mxu0 0.0
    %1757 = vmatmul.mubr.f32.gmra.mrb[0].mxu0 %v1221
    %v1758 = vpop.f32.mrb[0].mxu0
    %v1759 = vadd.f32 0.0, %v1758
    %v1760 = vpop.f32.mrb[0].mxu0
    %1761 = vmatprep.mubr.f32.mxu0 0.0
    %1762 = vmatmul.mubr.f32.gmra.mrb[0].mxu0 %v1224
    %v1763 = vpop.f32.mrb[0].mxu0
    %v1764 = vadd.f32 0.0, %v1763
    %v1765 = vpop.f32.mrb[0].mxu0
    %1766 = vmatprep.mubr.f32.mxu0 0.0
    %1767 = vmatmul.mubr.f32.gmra.mrb[0].mxu0 %v1227
    %v1768 = vpop.f32.mrb[0].mxu0
    %v1769 = vadd.f32 0.0, %v1768
    %v1770 = vpop.f32.mrb[0].mxu0
    %1771 = vdwg.mxu0
    %v1772 = vld [vmem:[%s3] ss:$8 sm:$0x7]
    %v1774 = vlaneseq
    %v1775 = vshrl.u32 %v1774, 7
    %v1776 = vsub.s32 0, %v1775
    %v1777 = vrot.slane %v1772, %v1776
    %v1778 = vlaneseq
    %v1779 = vshrl.u32 %v1778, 7
    %v1780 = vsub.s32 1, %v1779
    %v1781 = vrot.slane %v1772, %v1780
    %v1782 = vlaneseq
    %v1783 = vshrl.u32 %v1782, 7
    %v1784 = vsub.s32 2, %v1783
    %v1785 = vrot.slane %v1772, %v1784
    %v1789 = vadd.f32 %v1401, %v1777
    %v1790 = vadd.f32 %v1403, %v1781
    %v1791 = vadd.f32 %v1634, %v1785
    %v1792 = vadd.f32 %v1407, %v1777
    %v1793 = vadd.f32 %v1409, %v1781
    %v1794 = vadd.f32 %v1639, %v1785
    %v1795 = vadd.f32 %v1413, %v1777
    %v1796 = vadd.f32 %v1415, %v1781
    %v1797 = vadd.f32 %v1644, %v1785
    %v1798 = vadd.f32 %v1419, %v1777
    %v1799 = vadd.f32 %v1421, %v1781
    %v1800 = vadd.f32 %v1649, %v1785
    %v1801 = vadd.f32 %v1425, %v1777
    %v1802 = vadd.f32 %v1427, %v1781
    %v1803 = vadd.f32 %v1654, %v1785
    %v1804 = vadd.f32 %v1431, %v1777
    %v1805 = vadd.f32 %v1433, %v1781
    %v1806 = vadd.f32 %v1659, %v1785
    %v1807 = vadd.f32 %v1437, %v1777
    %v1808 = vadd.f32 %v1439, %v1781
    %v1809 = vadd.f32 %v1664, %v1785
    %v1810 = vadd.f32 %v1443, %v1777
    %v1811 = vadd.f32 %v1445, %v1781
    %v1812 = vadd.f32 %v1669, %v1785
    %v1813 = vadd.f32 %v1449, %v1777
    %v1814 = vadd.f32 %v1451, %v1781
    %v1815 = vadd.f32 %v1674, %v1785
    %v1816 = vadd.f32 %v1455, %v1777
    %v1817 = vadd.f32 %v1457, %v1781
    %v1818 = vadd.f32 %v1679, %v1785
    %v1819 = vadd.f32 %v1461, %v1777
    %v1820 = vadd.f32 %v1463, %v1781
    %v1821 = vadd.f32 %v1684, %v1785
    %v1822 = vadd.f32 %v1467, %v1777
    %v1823 = vadd.f32 %v1469, %v1781
    %v1824 = vadd.f32 %v1689, %v1785
    %v1825 = vadd.f32 %v1473, %v1777
    %v1826 = vadd.f32 %v1475, %v1781
    %v1827 = vadd.f32 %v1694, %v1785
    %v1828 = vadd.f32 %v1479, %v1777
    %v1829 = vadd.f32 %v1481, %v1781
    %v1830 = vadd.f32 %v1699, %v1785
    %v1831 = vadd.f32 %v1485, %v1777
    %v1832 = vadd.f32 %v1487, %v1781
    %v1833 = vadd.f32 %v1704, %v1785
    %v1834 = vadd.f32 %v1491, %v1777
    %v1835 = vadd.f32 %v1493, %v1781
    %v1836 = vadd.f32 %v1709, %v1785
    %v1837 = vadd.f32 %v1497, %v1777
    %v1838 = vadd.f32 %v1499, %v1781
    %v1839 = vadd.f32 %v1714, %v1785
    %v1840 = vadd.f32 %v1503, %v1777
    %v1841 = vadd.f32 %v1505, %v1781
    %v1842 = vadd.f32 %v1719, %v1785
    %v1843 = vadd.f32 %v1509, %v1777
    %v1844 = vadd.f32 %v1511, %v1781
    %v1845 = vadd.f32 %v1724, %v1785
    %v1846 = vadd.f32 %v1515, %v1777
    %v1847 = vadd.f32 %v1517, %v1781
    %v1848 = vadd.f32 %v1729, %v1785
    %v1849 = vadd.f32 %v1521, %v1777
    %v1850 = vadd.f32 %v1523, %v1781
    %v1851 = vadd.f32 %v1734, %v1785
    %v1852 = vadd.f32 %v1527, %v1777
    %v1853 = vadd.f32 %v1529, %v1781
    %v1854 = vadd.f32 %v1739, %v1785
    %v1855 = vadd.f32 %v1533, %v1777
    %v1856 = vadd.f32 %v1535, %v1781
    %v1857 = vadd.f32 %v1744, %v1785
    %v1858 = vadd.f32 %v1539, %v1777
    %v1859 = vadd.f32 %v1541, %v1781
    %v1860 = vadd.f32 %v1749, %v1785
    %v1861 = vadd.f32 %v1545, %v1777
    %v1862 = vadd.f32 %v1547, %v1781
    %v1863 = vadd.f32 %v1754, %v1785
    %v1864 = vadd.f32 %v1551, %v1777
    %v1865 = vadd.f32 %v1553, %v1781
    %v1866 = vadd.f32 %v1759, %v1785
    %v1867 = vadd.f32 %v1557, %v1777
    %v1868 = vadd.f32 %v1559, %v1781
    %v1869 = vadd.f32 %v1764, %v1785
    %v1870 = vadd.f32 %v1563, %v1777
    %v1871 = vadd.f32 %v1565, %v1781
    %v1872 = vadd.f32 %v1769, %v1785
    %v1873 = vmin.f32 %v1789, %v1790
    %vm1874 = vcmask 195584
    %v1875 = vsel %vm1874, %v1791, inf
    %v1876 = vmin.f32 %v1873, %v1875
    %1877 = vmin.xlane.f32.xlu0 %v1876
    %v1878 = vpop.xlane.xlu0 %1877
    %v1879 = vmin.f32 %v1792, %v1793
    %v1880 = vsel %vm1874, %v1794, inf
    %v1881 = vmin.f32 %v1879, %v1880
    %1882 = vmin.xlane.f32.xlu0 %v1881
    %v1883 = vpop.xlane.xlu0 %1882
    %v1884 = vmin.f32 %v1795, %v1796
    %v1885 = vsel %vm1874, %v1797, inf
    %v1886 = vmin.f32 %v1884, %v1885
    %1887 = vmin.xlane.f32.xlu0 %v1886
    %v1888 = vpop.xlane.xlu0 %1887
    %v1889 = vmin.f32 %v1798, %v1799
    %v1890 = vsel %vm1874, %v1800, inf
    %v1891 = vmin.f32 %v1889, %v1890
    %1892 = vmin.xlane.f32.xlu0 %v1891
    %v1893 = vpop.xlane.xlu0 %1892
    %v1894 = vmin.f32 %v1801, %v1802
    %v1895 = vsel %vm1874, %v1803, inf
    %v1896 = vmin.f32 %v1894, %v1895
    %1897 = vmin.xlane.f32.xlu0 %v1896
    %v1898 = vpop.xlane.xlu0 %1897
    %v1899 = vmin.f32 %v1804, %v1805
    %v1900 = vsel %vm1874, %v1806, inf
    %v1901 = vmin.f32 %v1899, %v1900
    %1902 = vmin.xlane.f32.xlu0 %v1901
    %v1903 = vpop.xlane.xlu0 %1902
    %v1904 = vmin.f32 %v1807, %v1808
    %v1905 = vsel %vm1874, %v1809, inf
    %v1906 = vmin.f32 %v1904, %v1905
    %1907 = vmin.xlane.f32.xlu0 %v1906
    %v1908 = vpop.xlane.xlu0 %1907
    %v1909 = vmin.f32 %v1810, %v1811
    %v1910 = vsel %vm1874, %v1812, inf
    %v1911 = vmin.f32 %v1909, %v1910
    %1912 = vmin.xlane.f32.xlu0 %v1911
    %v1913 = vpop.xlane.xlu0 %1912
    %v1914 = vmin.f32 %v1813, %v1814
    %v1915 = vsel %vm1874, %v1815, inf
    %v1916 = vmin.f32 %v1914, %v1915
    %1917 = vmin.xlane.f32.xlu0 %v1916
    %v1918 = vpop.xlane.xlu0 %1917
    %v1919 = vmin.f32 %v1816, %v1817
    %v1920 = vsel %vm1874, %v1818, inf
    %v1921 = vmin.f32 %v1919, %v1920
    %1922 = vmin.xlane.f32.xlu0 %v1921
    %v1923 = vpop.xlane.xlu0 %1922
    %v1924 = vmin.f32 %v1819, %v1820
    %v1925 = vsel %vm1874, %v1821, inf
    %v1926 = vmin.f32 %v1924, %v1925
    %1927 = vmin.xlane.f32.xlu0 %v1926
    %v1928 = vpop.xlane.xlu0 %1927
    %v1929 = vmin.f32 %v1822, %v1823
    %v1930 = vsel %vm1874, %v1824, inf
    %v1931 = vmin.f32 %v1929, %v1930
    %1932 = vmin.xlane.f32.xlu0 %v1931
    %v1933 = vpop.xlane.xlu0 %1932
    %v1934 = vmin.f32 %v1825, %v1826
    %v1935 = vsel %vm1874, %v1827, inf
    %v1936 = vmin.f32 %v1934, %v1935
    %1937 = vmin.xlane.f32.xlu0 %v1936
    %v1938 = vpop.xlane.xlu0 %1937
    %v1939 = vmin.f32 %v1828, %v1829
    %v1940 = vsel %vm1874, %v1830, inf
    %v1941 = vmin.f32 %v1939, %v1940
    %1942 = vmin.xlane.f32.xlu0 %v1941
    %v1943 = vpop.xlane.xlu0 %1942
    %v1944 = vmin.f32 %v1831, %v1832
    %v1945 = vsel %vm1874, %v1833, inf
    %v1946 = vmin.f32 %v1944, %v1945
    %1947 = vmin.xlane.f32.xlu0 %v1946
    %v1948 = vpop.xlane.xlu0 %1947
    %v1949 = vmin.f32 %v1834, %v1835
    %v1950 = vsel %vm1874, %v1836, inf
    %v1951 = vmin.f32 %v1949, %v1950
    %1952 = vmin.xlane.f32.xlu0 %v1951
    %v1953 = vpop.xlane.xlu0 %1952
    %v1954 = vmin.f32 %v1837, %v1838
    %v1955 = vsel %vm1874, %v1839, inf
    %v1956 = vmin.f32 %v1954, %v1955
    %1957 = vmin.xlane.f32.xlu0 %v1956
    %v1958 = vpop.xlane.xlu0 %1957
    %v1959 = vmin.f32 %v1840, %v1841
    %v1960 = vsel %vm1874, %v1842, inf
    %v1961 = vmin.f32 %v1959, %v1960
    %1962 = vmin.xlane.f32.xlu0 %v1961
    %v1963 = vpop.xlane.xlu0 %1962
    %v1964 = vmin.f32 %v1843, %v1844
    %v1965 = vsel %vm1874, %v1845, inf
    %v1966 = vmin.f32 %v1964, %v1965
    %1967 = vmin.xlane.f32.xlu0 %v1966
    %v1968 = vpop.xlane.xlu0 %1967
    %v1969 = vmin.f32 %v1846, %v1847
    %v1970 = vsel %vm1874, %v1848, inf
    %v1971 = vmin.f32 %v1969, %v1970
    %1972 = vmin.xlane.f32.xlu0 %v1971
    %v1973 = vpop.xlane.xlu0 %1972
    %v1974 = vmin.f32 %v1849, %v1850
    %v1975 = vsel %vm1874, %v1851, inf
    %v1976 = vmin.f32 %v1974, %v1975
    %1977 = vmin.xlane.f32.xlu0 %v1976
    %v1978 = vpop.xlane.xlu0 %1977
    %v1979 = vmin.f32 %v1852, %v1853
    %v1980 = vsel %vm1874, %v1854, inf
    %v1981 = vmin.f32 %v1979, %v1980
    %1982 = vmin.xlane.f32.xlu0 %v1981
    %v1983 = vpop.xlane.xlu0 %1982
    %v1984 = vmin.f32 %v1855, %v1856
    %v1985 = vsel %vm1874, %v1857, inf
    %v1986 = vmin.f32 %v1984, %v1985
    %1987 = vmin.xlane.f32.xlu0 %v1986
    %v1988 = vpop.xlane.xlu0 %1987
    %v1989 = vmin.f32 %v1858, %v1859
    %v1990 = vsel %vm1874, %v1860, inf
    %v1991 = vmin.f32 %v1989, %v1990
    %1992 = vmin.xlane.f32.xlu0 %v1991
    %v1993 = vpop.xlane.xlu0 %1992
    %v1994 = vmin.f32 %v1861, %v1862
    %v1995 = vsel %vm1874, %v1863, inf
    %v1996 = vmin.f32 %v1994, %v1995
    %1997 = vmin.xlane.f32.xlu0 %v1996
    %v1998 = vpop.xlane.xlu0 %1997
    %v1999 = vmin.f32 %v1864, %v1865
    %v2000 = vsel %vm1874, %v1866, inf
    %v2001 = vmin.f32 %v1999, %v2000
    %2002 = vmin.xlane.f32.xlu0 %v2001
    %v2003 = vpop.xlane.xlu0 %2002
    %v2004 = vmin.f32 %v1867, %v1868
    %v2005 = vsel %vm1874, %v1869, inf
    %v2006 = vmin.f32 %v2004, %v2005
    %2007 = vmin.xlane.f32.xlu0 %v2006
    %v2008 = vpop.xlane.xlu0 %2007
    %v2009 = vmin.f32 %v1870, %v1871
    %v2010 = vsel %vm1874, %v1872, inf
    %v2011 = vmin.f32 %v2009, %v2010
    %2012 = vmin.xlane.f32.xlu0 %v2011
    %v2013 = vpop.xlane.xlu0 %2012
    %s2014 = scalar_lea.vmem %s3, 1
    %v2015 = vld [vmem:[%s2014] ss:$8 sm:$0x7]
    %v2017 = vlaneseq
    %v2018 = vshrl.u32 %v2017, 7
    %v2019 = vsub.s32 0, %v2018
    %v2020 = vrot.slane %v2015, %v2019
    %v2021 = vlaneseq
    %v2022 = vshrl.u32 %v2021, 7
    %v2023 = vsub.s32 1, %v2022
    %v2024 = vrot.slane %v2015, %v2023
    %v2025 = vlaneseq
    %v2026 = vshrl.u32 %v2025, 7
    %v2027 = vsub.s32 2, %v2026
    %v2028 = vrot.slane %v2015, %v2027
    %v2032 = vadd.f32 %v1401, %v2020
    %v2033 = vadd.f32 %v1403, %v2024
    %v2034 = vadd.f32 %v1634, %v2028
    %v2035 = vadd.f32 %v1407, %v2020
    %v2036 = vadd.f32 %v1409, %v2024
    %v2037 = vadd.f32 %v1639, %v2028
    %v2038 = vadd.f32 %v1413, %v2020
    %v2039 = vadd.f32 %v1415, %v2024
    %v2040 = vadd.f32 %v1644, %v2028
    %v2041 = vadd.f32 %v1419, %v2020
    %v2042 = vadd.f32 %v1421, %v2024
    %v2043 = vadd.f32 %v1649, %v2028
    %v2044 = vadd.f32 %v1425, %v2020
    %v2045 = vadd.f32 %v1427, %v2024
    %v2046 = vadd.f32 %v1654, %v2028
    %v2047 = vadd.f32 %v1431, %v2020
    %v2048 = vadd.f32 %v1433, %v2024
    %v2049 = vadd.f32 %v1659, %v2028
    %v2050 = vadd.f32 %v1437, %v2020
    %v2051 = vadd.f32 %v1439, %v2024
    %v2052 = vadd.f32 %v1664, %v2028
    %v2053 = vadd.f32 %v1443, %v2020
    %v2054 = vadd.f32 %v1445, %v2024
    %v2055 = vadd.f32 %v1669, %v2028
    %v2056 = vadd.f32 %v1449, %v2020
    %v2057 = vadd.f32 %v1451, %v2024
    %v2058 = vadd.f32 %v1674, %v2028
    %v2059 = vadd.f32 %v1455, %v2020
    %v2060 = vadd.f32 %v1457, %v2024
    %v2061 = vadd.f32 %v1679, %v2028
    %v2062 = vadd.f32 %v1461, %v2020
    %v2063 = vadd.f32 %v1463, %v2024
    %v2064 = vadd.f32 %v1684, %v2028
    %v2065 = vadd.f32 %v1467, %v2020
    %v2066 = vadd.f32 %v1469, %v2024
    %v2067 = vadd.f32 %v1689, %v2028
    %v2068 = vadd.f32 %v1473, %v2020
    %v2069 = vadd.f32 %v1475, %v2024
    %v2070 = vadd.f32 %v1694, %v2028
    %v2071 = vadd.f32 %v1479, %v2020
    %v2072 = vadd.f32 %v1481, %v2024
    %v2073 = vadd.f32 %v1699, %v2028
    %v2074 = vadd.f32 %v1485, %v2020
    %v2075 = vadd.f32 %v1487, %v2024
    %v2076 = vadd.f32 %v1704, %v2028
    %v2077 = vadd.f32 %v1491, %v2020
    %v2078 = vadd.f32 %v1493, %v2024
    %v2079 = vadd.f32 %v1709, %v2028
    %v2080 = vadd.f32 %v1497, %v2020
    %v2081 = vadd.f32 %v1499, %v2024
    %v2082 = vadd.f32 %v1714, %v2028
    %v2083 = vadd.f32 %v1503, %v2020
    %v2084 = vadd.f32 %v1505, %v2024
    %v2085 = vadd.f32 %v1719, %v2028
    %v2086 = vadd.f32 %v1509, %v2020
    %v2087 = vadd.f32 %v1511, %v2024
    %v2088 = vadd.f32 %v1724, %v2028
    %v2089 = vadd.f32 %v1515, %v2020
    %v2090 = vadd.f32 %v1517, %v2024
    %v2091 = vadd.f32 %v1729, %v2028
    %v2092 = vadd.f32 %v1521, %v2020
    %v2093 = vadd.f32 %v1523, %v2024
    %v2094 = vadd.f32 %v1734, %v2028
    %v2095 = vadd.f32 %v1527, %v2020
    %v2096 = vadd.f32 %v1529, %v2024
    %v2097 = vadd.f32 %v1739, %v2028
    %v2098 = vadd.f32 %v1533, %v2020
    %v2099 = vadd.f32 %v1535, %v2024
    %v2100 = vadd.f32 %v1744, %v2028
    %v2101 = vadd.f32 %v1539, %v2020
    %v2102 = vadd.f32 %v1541, %v2024
    %v2103 = vadd.f32 %v1749, %v2028
    %v2104 = vadd.f32 %v1545, %v2020
    %v2105 = vadd.f32 %v1547, %v2024
    %v2106 = vadd.f32 %v1754, %v2028
    %v2107 = vadd.f32 %v1551, %v2020
    %v2108 = vadd.f32 %v1553, %v2024
    %v2109 = vadd.f32 %v1759, %v2028
    %v2110 = vadd.f32 %v1557, %v2020
    %v2111 = vadd.f32 %v1559, %v2024
    %v2112 = vadd.f32 %v1764, %v2028
    %v2113 = vadd.f32 %v1563, %v2020
    %v2114 = vadd.f32 %v1565, %v2024
    %v2115 = vadd.f32 %v1769, %v2028
    %v2116 = vmin.f32 %v2032, %v2033
    %v2117 = vsel %vm1874, %v2034, inf
    %v2118 = vmin.f32 %v2116, %v2117
    %2119 = vmin.xlane.f32.xlu0 %v2118
    %v2120 = vpop.xlane.xlu0 %2119
    %v2121 = vmin.f32 %v2035, %v2036
    %v2122 = vsel %vm1874, %v2037, inf
    %v2123 = vmin.f32 %v2121, %v2122
    %2124 = vmin.xlane.f32.xlu0 %v2123
    %v2125 = vpop.xlane.xlu0 %2124
    %v2126 = vmin.f32 %v2038, %v2039
    %v2127 = vsel %vm1874, %v2040, inf
    %v2128 = vmin.f32 %v2126, %v2127
    %2129 = vmin.xlane.f32.xlu0 %v2128
    %v2130 = vpop.xlane.xlu0 %2129
    %v2131 = vmin.f32 %v2041, %v2042
    %v2132 = vsel %vm1874, %v2043, inf
    %v2133 = vmin.f32 %v2131, %v2132
    %2134 = vmin.xlane.f32.xlu0 %v2133
    %v2135 = vpop.xlane.xlu0 %2134
    %v2136 = vmin.f32 %v2044, %v2045
    %v2137 = vsel %vm1874, %v2046, inf
    %v2138 = vmin.f32 %v2136, %v2137
    %2139 = vmin.xlane.f32.xlu0 %v2138
    %v2140 = vpop.xlane.xlu0 %2139
    %v2141 = vmin.f32 %v2047, %v2048
    %v2142 = vsel %vm1874, %v2049, inf
    %v2143 = vmin.f32 %v2141, %v2142
    %2144 = vmin.xlane.f32.xlu0 %v2143
    %v2145 = vpop.xlane.xlu0 %2144
    %v2146 = vmin.f32 %v2050, %v2051
    %v2147 = vsel %vm1874, %v2052, inf
    %v2148 = vmin.f32 %v2146, %v2147
    %2149 = vmin.xlane.f32.xlu0 %v2148
    %v2150 = vpop.xlane.xlu0 %2149
    %v2151 = vmin.f32 %v2053, %v2054
    %v2152 = vsel %vm1874, %v2055, inf
    %v2153 = vmin.f32 %v2151, %v2152
    %2154 = vmin.xlane.f32.xlu0 %v2153
    %v2155 = vpop.xlane.xlu0 %2154
    %v2156 = vmin.f32 %v2056, %v2057
    %v2157 = vsel %vm1874, %v2058, inf
    %v2158 = vmin.f32 %v2156, %v2157
    %2159 = vmin.xlane.f32.xlu0 %v2158
    %v2160 = vpop.xlane.xlu0 %2159
    %v2161 = vmin.f32 %v2059, %v2060
    %v2162 = vsel %vm1874, %v2061, inf
    %v2163 = vmin.f32 %v2161, %v2162
    %2164 = vmin.xlane.f32.xlu0 %v2163
    %v2165 = vpop.xlane.xlu0 %2164
    %v2166 = vmin.f32 %v2062, %v2063
    %v2167 = vsel %vm1874, %v2064, inf
    %v2168 = vmin.f32 %v2166, %v2167
    %2169 = vmin.xlane.f32.xlu0 %v2168
    %v2170 = vpop.xlane.xlu0 %2169
    %v2171 = vmin.f32 %v2065, %v2066
    %v2172 = vsel %vm1874, %v2067, inf
    %v2173 = vmin.f32 %v2171, %v2172
    %2174 = vmin.xlane.f32.xlu0 %v2173
    %v2175 = vpop.xlane.xlu0 %2174
    %v2176 = vmin.f32 %v2068, %v2069
    %v2177 = vsel %vm1874, %v2070, inf
    %v2178 = vmin.f32 %v2176, %v2177
    %2179 = vmin.xlane.f32.xlu0 %v2178
    %v2180 = vpop.xlane.xlu0 %2179
    %v2181 = vmin.f32 %v2071, %v2072
    %v2182 = vsel %vm1874, %v2073, inf
    %v2183 = vmin.f32 %v2181, %v2182
    %2184 = vmin.xlane.f32.xlu0 %v2183
    %v2185 = vpop.xlane.xlu0 %2184
    %v2186 = vmin.f32 %v2074, %v2075
    %v2187 = vsel %vm1874, %v2076, inf
    %v2188 = vmin.f32 %v2186, %v2187
    %2189 = vmin.xlane.f32.xlu0 %v2188
    %v2190 = vpop.xlane.xlu0 %2189
    %v2191 = vmin.f32 %v2077, %v2078
    %v2192 = vsel %vm1874, %v2079, inf
    %v2193 = vmin.f32 %v2191, %v2192
    %2194 = vmin.xlane.f32.xlu0 %v2193
    %v2195 = vpop.xlane.xlu0 %2194
    %v2196 = vmin.f32 %v2080, %v2081
    %v2197 = vsel %vm1874, %v2082, inf
    %v2198 = vmin.f32 %v2196, %v2197
    %2199 = vmin.xlane.f32.xlu0 %v2198
    %v2200 = vpop.xlane.xlu0 %2199
    %v2201 = vmin.f32 %v2083, %v2084
    %v2202 = vsel %vm1874, %v2085, inf
    %v2203 = vmin.f32 %v2201, %v2202
    %2204 = vmin.xlane.f32.xlu0 %v2203
    %v2205 = vpop.xlane.xlu0 %2204
    %v2206 = vmin.f32 %v2086, %v2087
    %v2207 = vsel %vm1874, %v2088, inf
    %v2208 = vmin.f32 %v2206, %v2207
    %2209 = vmin.xlane.f32.xlu0 %v2208
    %v2210 = vpop.xlane.xlu0 %2209
    %v2211 = vmin.f32 %v2089, %v2090
    %v2212 = vsel %vm1874, %v2091, inf
    %v2213 = vmin.f32 %v2211, %v2212
    %2214 = vmin.xlane.f32.xlu0 %v2213
    %v2215 = vpop.xlane.xlu0 %2214
    %v2216 = vmin.f32 %v2092, %v2093
    %v2217 = vsel %vm1874, %v2094, inf
    %v2218 = vmin.f32 %v2216, %v2217
    %2219 = vmin.xlane.f32.xlu0 %v2218
    %v2220 = vpop.xlane.xlu0 %2219
    %v2221 = vmin.f32 %v2095, %v2096
    %v2222 = vsel %vm1874, %v2097, inf
    %v2223 = vmin.f32 %v2221, %v2222
    %2224 = vmin.xlane.f32.xlu0 %v2223
    %v2225 = vpop.xlane.xlu0 %2224
    %v2226 = vmin.f32 %v2098, %v2099
    %v2227 = vsel %vm1874, %v2100, inf
    %v2228 = vmin.f32 %v2226, %v2227
    %2229 = vmin.xlane.f32.xlu0 %v2228
    %v2230 = vpop.xlane.xlu0 %2229
    %v2231 = vmin.f32 %v2101, %v2102
    %v2232 = vsel %vm1874, %v2103, inf
    %v2233 = vmin.f32 %v2231, %v2232
    %2234 = vmin.xlane.f32.xlu0 %v2233
    %v2235 = vpop.xlane.xlu0 %2234
    %v2236 = vmin.f32 %v2104, %v2105
    %v2237 = vsel %vm1874, %v2106, inf
    %v2238 = vmin.f32 %v2236, %v2237
    %2239 = vmin.xlane.f32.xlu0 %v2238
    %v2240 = vpop.xlane.xlu0 %2239
    %v2241 = vmin.f32 %v2107, %v2108
    %v2242 = vsel %vm1874, %v2109, inf
    %v2243 = vmin.f32 %v2241, %v2242
    %2244 = vmin.xlane.f32.xlu0 %v2243
    %v2245 = vpop.xlane.xlu0 %2244
    %v2246 = vmin.f32 %v2110, %v2111
    %v2247 = vsel %vm1874, %v2112, inf
    %v2248 = vmin.f32 %v2246, %v2247
    %2249 = vmin.xlane.f32.xlu0 %v2248
    %v2250 = vpop.xlane.xlu0 %2249
    %v2251 = vmin.f32 %v2113, %v2114
    %v2252 = vsel %vm1874, %v2115, inf
    %v2253 = vmin.f32 %v2251, %v2252
    %2254 = vmin.xlane.f32.xlu0 %v2253
    %v2255 = vpop.xlane.xlu0 %2254
    %s2256 = scalar_lea.vmem %s3, 2
    %v2257 = vld [vmem:[%s2256] ss:$8 sm:$0x7]
    %v2259 = vlaneseq
    %v2260 = vshrl.u32 %v2259, 7
    %v2261 = vsub.s32 0, %v2260
    %v2262 = vrot.slane %v2257, %v2261
    %v2263 = vlaneseq
    %v2264 = vshrl.u32 %v2263, 7
    %v2265 = vsub.s32 1, %v2264
    %v2266 = vrot.slane %v2257, %v2265
    %v2267 = vlaneseq
    %v2268 = vshrl.u32 %v2267, 7
    %v2269 = vsub.s32 2, %v2268
    %v2270 = vrot.slane %v2257, %v2269
    %v2274 = vadd.f32 %v1401, %v2262
    %v2275 = vadd.f32 %v1403, %v2266
    %v2276 = vadd.f32 %v1634, %v2270
    %v2277 = vadd.f32 %v1407, %v2262
    %v2278 = vadd.f32 %v1409, %v2266
    %v2279 = vadd.f32 %v1639, %v2270
    %v2280 = vadd.f32 %v1413, %v2262
    %v2281 = vadd.f32 %v1415, %v2266
    %v2282 = vadd.f32 %v1644, %v2270
    %v2283 = vadd.f32 %v1419, %v2262
    %v2284 = vadd.f32 %v1421, %v2266
    %v2285 = vadd.f32 %v1649, %v2270
    %v2286 = vadd.f32 %v1425, %v2262
    %v2287 = vadd.f32 %v1427, %v2266
    %v2288 = vadd.f32 %v1654, %v2270
    %v2289 = vadd.f32 %v1431, %v2262
    %v2290 = vadd.f32 %v1433, %v2266
    %v2291 = vadd.f32 %v1659, %v2270
    %v2292 = vadd.f32 %v1437, %v2262
    %v2293 = vadd.f32 %v1439, %v2266
    %v2294 = vadd.f32 %v1664, %v2270
    %v2295 = vadd.f32 %v1443, %v2262
    %v2296 = vadd.f32 %v1445, %v2266
    %v2297 = vadd.f32 %v1669, %v2270
    %v2298 = vadd.f32 %v1449, %v2262
    %v2299 = vadd.f32 %v1451, %v2266
    %v2300 = vadd.f32 %v1674, %v2270
    %v2301 = vadd.f32 %v1455, %v2262
    %v2302 = vadd.f32 %v1457, %v2266
    %v2303 = vadd.f32 %v1679, %v2270
    %v2304 = vadd.f32 %v1461, %v2262
    %v2305 = vadd.f32 %v1463, %v2266
    %v2306 = vadd.f32 %v1684, %v2270
    %v2307 = vadd.f32 %v1467, %v2262
    %v2308 = vadd.f32 %v1469, %v2266
    %v2309 = vadd.f32 %v1689, %v2270
    %v2310 = vadd.f32 %v1473, %v2262
    %v2311 = vadd.f32 %v1475, %v2266
    %v2312 = vadd.f32 %v1694, %v2270
    %v2313 = vadd.f32 %v1479, %v2262
    %v2314 = vadd.f32 %v1481, %v2266
    %v2315 = vadd.f32 %v1699, %v2270
    %v2316 = vadd.f32 %v1485, %v2262
    %v2317 = vadd.f32 %v1487, %v2266
    %v2318 = vadd.f32 %v1704, %v2270
    %v2319 = vadd.f32 %v1491, %v2262
    %v2320 = vadd.f32 %v1493, %v2266
    %v2321 = vadd.f32 %v1709, %v2270
    %v2322 = vadd.f32 %v1497, %v2262
    %v2323 = vadd.f32 %v1499, %v2266
    %v2324 = vadd.f32 %v1714, %v2270
    %v2325 = vadd.f32 %v1503, %v2262
    %v2326 = vadd.f32 %v1505, %v2266
    %v2327 = vadd.f32 %v1719, %v2270
    %v2328 = vadd.f32 %v1509, %v2262
    %v2329 = vadd.f32 %v1511, %v2266
    %v2330 = vadd.f32 %v1724, %v2270
    %v2331 = vadd.f32 %v1515, %v2262
    %v2332 = vadd.f32 %v1517, %v2266
    %v2333 = vadd.f32 %v1729, %v2270
    %v2334 = vadd.f32 %v1521, %v2262
    %v2335 = vadd.f32 %v1523, %v2266
    %v2336 = vadd.f32 %v1734, %v2270
    %v2337 = vadd.f32 %v1527, %v2262
    %v2338 = vadd.f32 %v1529, %v2266
    %v2339 = vadd.f32 %v1739, %v2270
    %v2340 = vadd.f32 %v1533, %v2262
    %v2341 = vadd.f32 %v1535, %v2266
    %v2342 = vadd.f32 %v1744, %v2270
    %v2343 = vadd.f32 %v1539, %v2262
    %v2344 = vadd.f32 %v1541, %v2266
    %v2345 = vadd.f32 %v1749, %v2270
    %v2346 = vadd.f32 %v1545, %v2262
    %v2347 = vadd.f32 %v1547, %v2266
    %v2348 = vadd.f32 %v1754, %v2270
    %v2349 = vadd.f32 %v1551, %v2262
    %v2350 = vadd.f32 %v1553, %v2266
    %v2351 = vadd.f32 %v1759, %v2270
    %v2352 = vadd.f32 %v1557, %v2262
    %v2353 = vadd.f32 %v1559, %v2266
    %v2354 = vadd.f32 %v1764, %v2270
    %v2355 = vadd.f32 %v1563, %v2262
    %v2356 = vadd.f32 %v1565, %v2266
    %v2357 = vadd.f32 %v1769, %v2270
    %v2358 = vmin.f32 %v2274, %v2275
    %v2359 = vsel %vm1874, %v2276, inf
    %v2360 = vmin.f32 %v2358, %v2359
    %2361 = vmin.xlane.f32.xlu0 %v2360
    %v2362 = vpop.xlane.xlu0 %2361
    %v2363 = vmin.f32 %v2277, %v2278
    %v2364 = vsel %vm1874, %v2279, inf
    %v2365 = vmin.f32 %v2363, %v2364
    %2366 = vmin.xlane.f32.xlu0 %v2365
    %v2367 = vpop.xlane.xlu0 %2366
    %v2368 = vmin.f32 %v2280, %v2281
    %v2369 = vsel %vm1874, %v2282, inf
    %v2370 = vmin.f32 %v2368, %v2369
    %2371 = vmin.xlane.f32.xlu0 %v2370
    %v2372 = vpop.xlane.xlu0 %2371
    %v2373 = vmin.f32 %v2283, %v2284
    %v2374 = vsel %vm1874, %v2285, inf
    %v2375 = vmin.f32 %v2373, %v2374
    %2376 = vmin.xlane.f32.xlu0 %v2375
    %v2377 = vpop.xlane.xlu0 %2376
    %v2378 = vmin.f32 %v2286, %v2287
    %v2379 = vsel %vm1874, %v2288, inf
    %v2380 = vmin.f32 %v2378, %v2379
    %2381 = vmin.xlane.f32.xlu0 %v2380
    %v2382 = vpop.xlane.xlu0 %2381
    %v2383 = vmin.f32 %v2289, %v2290
    %v2384 = vsel %vm1874, %v2291, inf
    %v2385 = vmin.f32 %v2383, %v2384
    %2386 = vmin.xlane.f32.xlu0 %v2385
    %v2387 = vpop.xlane.xlu0 %2386
    %v2388 = vmin.f32 %v2292, %v2293
    %v2389 = vsel %vm1874, %v2294, inf
    %v2390 = vmin.f32 %v2388, %v2389
    %2391 = vmin.xlane.f32.xlu0 %v2390
    %v2392 = vpop.xlane.xlu0 %2391
    %v2393 = vmin.f32 %v2295, %v2296
    %v2394 = vsel %vm1874, %v2297, inf
    %v2395 = vmin.f32 %v2393, %v2394
    %2396 = vmin.xlane.f32.xlu0 %v2395
    %v2397 = vpop.xlane.xlu0 %2396
    %v2398 = vmin.f32 %v2298, %v2299
    %v2399 = vsel %vm1874, %v2300, inf
    %v2400 = vmin.f32 %v2398, %v2399
    %2401 = vmin.xlane.f32.xlu0 %v2400
    %v2402 = vpop.xlane.xlu0 %2401
    %v2403 = vmin.f32 %v2301, %v2302
    %v2404 = vsel %vm1874, %v2303, inf
    %v2405 = vmin.f32 %v2403, %v2404
    %2406 = vmin.xlane.f32.xlu0 %v2405
    %v2407 = vpop.xlane.xlu0 %2406
    %v2408 = vmin.f32 %v2304, %v2305
    %v2409 = vsel %vm1874, %v2306, inf
    %v2410 = vmin.f32 %v2408, %v2409
    %2411 = vmin.xlane.f32.xlu0 %v2410
    %v2412 = vpop.xlane.xlu0 %2411
    %v2413 = vmin.f32 %v2307, %v2308
    %v2414 = vsel %vm1874, %v2309, inf
    %v2415 = vmin.f32 %v2413, %v2414
    %2416 = vmin.xlane.f32.xlu0 %v2415
    %v2417 = vpop.xlane.xlu0 %2416
    %v2418 = vmin.f32 %v2310, %v2311
    %v2419 = vsel %vm1874, %v2312, inf
    %v2420 = vmin.f32 %v2418, %v2419
    %2421 = vmin.xlane.f32.xlu0 %v2420
    %v2422 = vpop.xlane.xlu0 %2421
    %v2423 = vmin.f32 %v2313, %v2314
    %v2424 = vsel %vm1874, %v2315, inf
    %v2425 = vmin.f32 %v2423, %v2424
    %2426 = vmin.xlane.f32.xlu0 %v2425
    %v2427 = vpop.xlane.xlu0 %2426
    %v2428 = vmin.f32 %v2316, %v2317
    %v2429 = vsel %vm1874, %v2318, inf
    %v2430 = vmin.f32 %v2428, %v2429
    %2431 = vmin.xlane.f32.xlu0 %v2430
    %v2432 = vpop.xlane.xlu0 %2431
    %v2433 = vmin.f32 %v2319, %v2320
    %v2434 = vsel %vm1874, %v2321, inf
    %v2435 = vmin.f32 %v2433, %v2434
    %2436 = vmin.xlane.f32.xlu0 %v2435
    %v2437 = vpop.xlane.xlu0 %2436
    %v2438 = vmin.f32 %v2322, %v2323
    %v2439 = vsel %vm1874, %v2324, inf
    %v2440 = vmin.f32 %v2438, %v2439
    %2441 = vmin.xlane.f32.xlu0 %v2440
    %v2442 = vpop.xlane.xlu0 %2441
    %v2443 = vmin.f32 %v2325, %v2326
    %v2444 = vsel %vm1874, %v2327, inf
    %v2445 = vmin.f32 %v2443, %v2444
    %2446 = vmin.xlane.f32.xlu0 %v2445
    %v2447 = vpop.xlane.xlu0 %2446
    %v2448 = vmin.f32 %v2328, %v2329
    %v2449 = vsel %vm1874, %v2330, inf
    %v2450 = vmin.f32 %v2448, %v2449
    %2451 = vmin.xlane.f32.xlu0 %v2450
    %v2452 = vpop.xlane.xlu0 %2451
    %v2453 = vmin.f32 %v2331, %v2332
    %v2454 = vsel %vm1874, %v2333, inf
    %v2455 = vmin.f32 %v2453, %v2454
    %2456 = vmin.xlane.f32.xlu0 %v2455
    %v2457 = vpop.xlane.xlu0 %2456
    %v2458 = vmin.f32 %v2334, %v2335
    %v2459 = vsel %vm1874, %v2336, inf
    %v2460 = vmin.f32 %v2458, %v2459
    %2461 = vmin.xlane.f32.xlu0 %v2460
    %v2462 = vpop.xlane.xlu0 %2461
    %v2463 = vmin.f32 %v2337, %v2338
    %v2464 = vsel %vm1874, %v2339, inf
    %v2465 = vmin.f32 %v2463, %v2464
    %2466 = vmin.xlane.f32.xlu0 %v2465
    %v2467 = vpop.xlane.xlu0 %2466
    %v2468 = vmin.f32 %v2340, %v2341
    %v2469 = vsel %vm1874, %v2342, inf
    %v2470 = vmin.f32 %v2468, %v2469
    %2471 = vmin.xlane.f32.xlu0 %v2470
    %v2472 = vpop.xlane.xlu0 %2471
    %v2473 = vmin.f32 %v2343, %v2344
    %v2474 = vsel %vm1874, %v2345, inf
    %v2475 = vmin.f32 %v2473, %v2474
    %2476 = vmin.xlane.f32.xlu0 %v2475
    %v2477 = vpop.xlane.xlu0 %2476
    %v2478 = vmin.f32 %v2346, %v2347
    %v2479 = vsel %vm1874, %v2348, inf
    %v2480 = vmin.f32 %v2478, %v2479
    %2481 = vmin.xlane.f32.xlu0 %v2480
    %v2482 = vpop.xlane.xlu0 %2481
    %v2483 = vmin.f32 %v2349, %v2350
    %v2484 = vsel %vm1874, %v2351, inf
    %v2485 = vmin.f32 %v2483, %v2484
    %2486 = vmin.xlane.f32.xlu0 %v2485
    %v2487 = vpop.xlane.xlu0 %2486
    %v2488 = vmin.f32 %v2352, %v2353
    %v2489 = vsel %vm1874, %v2354, inf
    %v2490 = vmin.f32 %v2488, %v2489
    %2491 = vmin.xlane.f32.xlu0 %v2490
    %v2492 = vpop.xlane.xlu0 %2491
    %v2493 = vmin.f32 %v2355, %v2356
    %v2494 = vsel %vm1874, %v2357, inf
    %v2495 = vmin.f32 %v2493, %v2494
    %2496 = vmin.xlane.f32.xlu0 %v2495
    %v2497 = vpop.xlane.xlu0 %2496
    %s2498 = scalar_lea.vmem %s3, 3
    %v2499 = vld [vmem:[%s2498] ss:$8 sm:$0x7]
    %v2501 = vlaneseq
    %v2502 = vshrl.u32 %v2501, 7
    %v2503 = vsub.s32 0, %v2502
    %v2504 = vrot.slane %v2499, %v2503
    %v2505 = vlaneseq
    %v2506 = vshrl.u32 %v2505, 7
    %v2507 = vsub.s32 1, %v2506
    %v2508 = vrot.slane %v2499, %v2507
    %v2509 = vlaneseq
    %v2510 = vshrl.u32 %v2509, 7
    %v2511 = vsub.s32 2, %v2510
    %v2512 = vrot.slane %v2499, %v2511
    %v2516 = vadd.f32 %v1401, %v2504
    %v2517 = vadd.f32 %v1403, %v2508
    %v2518 = vadd.f32 %v1634, %v2512
    %v2519 = vadd.f32 %v1407, %v2504
    %v2520 = vadd.f32 %v1409, %v2508
    %v2521 = vadd.f32 %v1639, %v2512
    %v2522 = vadd.f32 %v1413, %v2504
    %v2523 = vadd.f32 %v1415, %v2508
    %v2524 = vadd.f32 %v1644, %v2512
    %v2525 = vadd.f32 %v1419, %v2504
    %v2526 = vadd.f32 %v1421, %v2508
    %v2527 = vadd.f32 %v1649, %v2512
    %v2528 = vadd.f32 %v1425, %v2504
    %v2529 = vadd.f32 %v1427, %v2508
    %v2530 = vadd.f32 %v1654, %v2512
    %v2531 = vadd.f32 %v1431, %v2504
    %v2532 = vadd.f32 %v1433, %v2508
    %v2533 = vadd.f32 %v1659, %v2512
    %v2534 = vadd.f32 %v1437, %v2504
    %v2535 = vadd.f32 %v1439, %v2508
    %v2536 = vadd.f32 %v1664, %v2512
    %v2537 = vadd.f32 %v1443, %v2504
    %v2538 = vadd.f32 %v1445, %v2508
    %v2539 = vadd.f32 %v1669, %v2512
    %v2540 = vadd.f32 %v1449, %v2504
    %v2541 = vadd.f32 %v1451, %v2508
    %v2542 = vadd.f32 %v1674, %v2512
    %v2543 = vadd.f32 %v1455, %v2504
    %v2544 = vadd.f32 %v1457, %v2508
    %v2545 = vadd.f32 %v1679, %v2512
    %v2546 = vadd.f32 %v1461, %v2504
    %v2547 = vadd.f32 %v1463, %v2508
    %v2548 = vadd.f32 %v1684, %v2512
    %v2549 = vadd.f32 %v1467, %v2504
    %v2550 = vadd.f32 %v1469, %v2508
    %v2551 = vadd.f32 %v1689, %v2512
    %v2552 = vadd.f32 %v1473, %v2504
    %v2553 = vadd.f32 %v1475, %v2508
    %v2554 = vadd.f32 %v1694, %v2512
    %v2555 = vadd.f32 %v1479, %v2504
    %v2556 = vadd.f32 %v1481, %v2508
    %v2557 = vadd.f32 %v1699, %v2512
    %v2558 = vadd.f32 %v1485, %v2504
    %v2559 = vadd.f32 %v1487, %v2508
    %v2560 = vadd.f32 %v1704, %v2512
    %v2561 = vadd.f32 %v1491, %v2504
    %v2562 = vadd.f32 %v1493, %v2508
    %v2563 = vadd.f32 %v1709, %v2512
    %v2564 = vadd.f32 %v1497, %v2504
    %v2565 = vadd.f32 %v1499, %v2508
    %v2566 = vadd.f32 %v1714, %v2512
    %v2567 = vadd.f32 %v1503, %v2504
    %v2568 = vadd.f32 %v1505, %v2508
    %v2569 = vadd.f32 %v1719, %v2512
    %v2570 = vadd.f32 %v1509, %v2504
    %v2571 = vadd.f32 %v1511, %v2508
    %v2572 = vadd.f32 %v1724, %v2512
    %v2573 = vadd.f32 %v1515, %v2504
    %v2574 = vadd.f32 %v1517, %v2508
    %v2575 = vadd.f32 %v1729, %v2512
    %v2576 = vadd.f32 %v1521, %v2504
    %v2577 = vadd.f32 %v1523, %v2508
    %v2578 = vadd.f32 %v1734, %v2512
    %v2579 = vadd.f32 %v1527, %v2504
    %v2580 = vadd.f32 %v1529, %v2508
    %v2581 = vadd.f32 %v1739, %v2512
    %v2582 = vadd.f32 %v1533, %v2504
    %v2583 = vadd.f32 %v1535, %v2508
    %v2584 = vadd.f32 %v1744, %v2512
    %v2585 = vadd.f32 %v1539, %v2504
    %v2586 = vadd.f32 %v1541, %v2508
    %v2587 = vadd.f32 %v1749, %v2512
    %v2588 = vadd.f32 %v1545, %v2504
    %v2589 = vadd.f32 %v1547, %v2508
    %v2590 = vadd.f32 %v1754, %v2512
    %v2591 = vadd.f32 %v1551, %v2504
    %v2592 = vadd.f32 %v1553, %v2508
    %v2593 = vadd.f32 %v1759, %v2512
    %v2594 = vadd.f32 %v1557, %v2504
    %v2595 = vadd.f32 %v1559, %v2508
    %v2596 = vadd.f32 %v1764, %v2512
    %v2597 = vadd.f32 %v1563, %v2504
    %v2598 = vadd.f32 %v1565, %v2508
    %v2599 = vadd.f32 %v1769, %v2512
    %v2600 = vmin.f32 %v2516, %v2517
    %v2601 = vsel %vm1874, %v2518, inf
    %v2602 = vmin.f32 %v2600, %v2601
    %2603 = vmin.xlane.f32.xlu0 %v2602
    %v2604 = vpop.xlane.xlu0 %2603
    %v2605 = vmin.f32 %v2519, %v2520
    %v2606 = vsel %vm1874, %v2521, inf
    %v2607 = vmin.f32 %v2605, %v2606
    %2608 = vmin.xlane.f32.xlu0 %v2607
    %v2609 = vpop.xlane.xlu0 %2608
    %v2610 = vmin.f32 %v2522, %v2523
    %v2611 = vsel %vm1874, %v2524, inf
    %v2612 = vmin.f32 %v2610, %v2611
    %2613 = vmin.xlane.f32.xlu0 %v2612
    %v2614 = vpop.xlane.xlu0 %2613
    %v2615 = vmin.f32 %v2525, %v2526
    %v2616 = vsel %vm1874, %v2527, inf
    %v2617 = vmin.f32 %v2615, %v2616
    %2618 = vmin.xlane.f32.xlu0 %v2617
    %v2619 = vpop.xlane.xlu0 %2618
    %v2620 = vmin.f32 %v2528, %v2529
    %v2621 = vsel %vm1874, %v2530, inf
    %v2622 = vmin.f32 %v2620, %v2621
    %2623 = vmin.xlane.f32.xlu0 %v2622
    %v2624 = vpop.xlane.xlu0 %2623
    %v2625 = vmin.f32 %v2531, %v2532
    %v2626 = vsel %vm1874, %v2533, inf
    %v2627 = vmin.f32 %v2625, %v2626
    %2628 = vmin.xlane.f32.xlu0 %v2627
    %v2629 = vpop.xlane.xlu0 %2628
    %v2630 = vmin.f32 %v2534, %v2535
    %v2631 = vsel %vm1874, %v2536, inf
    %v2632 = vmin.f32 %v2630, %v2631
    %2633 = vmin.xlane.f32.xlu0 %v2632
    %v2634 = vpop.xlane.xlu0 %2633
    %v2635 = vmin.f32 %v2537, %v2538
    %v2636 = vsel %vm1874, %v2539, inf
    %v2637 = vmin.f32 %v2635, %v2636
    %2638 = vmin.xlane.f32.xlu0 %v2637
    %v2639 = vpop.xlane.xlu0 %2638
    %v2640 = vmin.f32 %v2540, %v2541
    %v2641 = vsel %vm1874, %v2542, inf
    %v2642 = vmin.f32 %v2640, %v2641
    %2643 = vmin.xlane.f32.xlu0 %v2642
    %v2644 = vpop.xlane.xlu0 %2643
    %v2645 = vmin.f32 %v2543, %v2544
    %v2646 = vsel %vm1874, %v2545, inf
    %v2647 = vmin.f32 %v2645, %v2646
    %2648 = vmin.xlane.f32.xlu0 %v2647
    %v2649 = vpop.xlane.xlu0 %2648
    %v2650 = vmin.f32 %v2546, %v2547
    %v2651 = vsel %vm1874, %v2548, inf
    %v2652 = vmin.f32 %v2650, %v2651
    %2653 = vmin.xlane.f32.xlu0 %v2652
    %v2654 = vpop.xlane.xlu0 %2653
    %v2655 = vmin.f32 %v2549, %v2550
    %v2656 = vsel %vm1874, %v2551, inf
    %v2657 = vmin.f32 %v2655, %v2656
    %2658 = vmin.xlane.f32.xlu0 %v2657
    %v2659 = vpop.xlane.xlu0 %2658
    %v2660 = vmin.f32 %v2552, %v2553
    %v2661 = vsel %vm1874, %v2554, inf
    %v2662 = vmin.f32 %v2660, %v2661
    %2663 = vmin.xlane.f32.xlu0 %v2662
    %v2664 = vpop.xlane.xlu0 %2663
    %v2665 = vmin.f32 %v2555, %v2556
    %v2666 = vsel %vm1874, %v2557, inf
    %v2667 = vmin.f32 %v2665, %v2666
    %2668 = vmin.xlane.f32.xlu0 %v2667
    %v2669 = vpop.xlane.xlu0 %2668
    %v2670 = vmin.f32 %v2558, %v2559
    %v2671 = vsel %vm1874, %v2560, inf
    %v2672 = vmin.f32 %v2670, %v2671
    %2673 = vmin.xlane.f32.xlu0 %v2672
    %v2674 = vpop.xlane.xlu0 %2673
    %v2675 = vmin.f32 %v2561, %v2562
    %v2676 = vsel %vm1874, %v2563, inf
    %v2677 = vmin.f32 %v2675, %v2676
    %2678 = vmin.xlane.f32.xlu0 %v2677
    %v2679 = vpop.xlane.xlu0 %2678
    %v2680 = vmin.f32 %v2564, %v2565
    %v2681 = vsel %vm1874, %v2566, inf
    %v2682 = vmin.f32 %v2680, %v2681
    %2683 = vmin.xlane.f32.xlu0 %v2682
    %v2684 = vpop.xlane.xlu0 %2683
    %v2685 = vmin.f32 %v2567, %v2568
    %v2686 = vsel %vm1874, %v2569, inf
    %v2687 = vmin.f32 %v2685, %v2686
    %2688 = vmin.xlane.f32.xlu0 %v2687
    %v2689 = vpop.xlane.xlu0 %2688
    %v2690 = vmin.f32 %v2570, %v2571
    %v2691 = vsel %vm1874, %v2572, inf
    %v2692 = vmin.f32 %v2690, %v2691
    %2693 = vmin.xlane.f32.xlu0 %v2692
    %v2694 = vpop.xlane.xlu0 %2693
    %v2695 = vmin.f32 %v2573, %v2574
    %v2696 = vsel %vm1874, %v2575, inf
    %v2697 = vmin.f32 %v2695, %v2696
    %2698 = vmin.xlane.f32.xlu0 %v2697
    %v2699 = vpop.xlane.xlu0 %2698
    %v2700 = vmin.f32 %v2576, %v2577
    %v2701 = vsel %vm1874, %v2578, inf
    %v2702 = vmin.f32 %v2700, %v2701
    %2703 = vmin.xlane.f32.xlu0 %v2702
    %v2704 = vpop.xlane.xlu0 %2703
    %v2705 = vmin.f32 %v2579, %v2580
    %v2706 = vsel %vm1874, %v2581, inf
    %v2707 = vmin.f32 %v2705, %v2706
    %2708 = vmin.xlane.f32.xlu0 %v2707
    %v2709 = vpop.xlane.xlu0 %2708
    %v2710 = vmin.f32 %v2582, %v2583
    %v2711 = vsel %vm1874, %v2584, inf
    %v2712 = vmin.f32 %v2710, %v2711
    %2713 = vmin.xlane.f32.xlu0 %v2712
    %v2714 = vpop.xlane.xlu0 %2713
    %v2715 = vmin.f32 %v2585, %v2586
    %v2716 = vsel %vm1874, %v2587, inf
    %v2717 = vmin.f32 %v2715, %v2716
    %2718 = vmin.xlane.f32.xlu0 %v2717
    %v2719 = vpop.xlane.xlu0 %2718
    %v2720 = vmin.f32 %v2588, %v2589
    %v2721 = vsel %vm1874, %v2590, inf
    %v2722 = vmin.f32 %v2720, %v2721
    %2723 = vmin.xlane.f32.xlu0 %v2722
    %v2724 = vpop.xlane.xlu0 %2723
    %v2725 = vmin.f32 %v2591, %v2592
    %v2726 = vsel %vm1874, %v2593, inf
    %v2727 = vmin.f32 %v2725, %v2726
    %2728 = vmin.xlane.f32.xlu0 %v2727
    %v2729 = vpop.xlane.xlu0 %2728
    %v2730 = vmin.f32 %v2594, %v2595
    %v2731 = vsel %vm1874, %v2596, inf
    %v2732 = vmin.f32 %v2730, %v2731
    %2733 = vmin.xlane.f32.xlu0 %v2732
    %v2734 = vpop.xlane.xlu0 %2733
    %v2735 = vmin.f32 %v2597, %v2598
    %v2736 = vsel %vm1874, %v2599, inf
    %v2737 = vmin.f32 %v2735, %v2736
    %2738 = vmin.xlane.f32.xlu0 %v2737
    %v2739 = vpop.xlane.xlu0 %2738
    %s2740 = scalar_lea.vmem %s3, 4
    %v2741 = vld [vmem:[%s2740] ss:$8 sm:$0x7]
    %v2743 = vlaneseq
    %v2744 = vshrl.u32 %v2743, 7
    %v2745 = vsub.s32 0, %v2744
    %v2746 = vrot.slane %v2741, %v2745
    %v2747 = vlaneseq
    %v2748 = vshrl.u32 %v2747, 7
    %v2749 = vsub.s32 1, %v2748
    %v2750 = vrot.slane %v2741, %v2749
    %v2751 = vlaneseq
    %v2752 = vshrl.u32 %v2751, 7
    %v2753 = vsub.s32 2, %v2752
    %v2754 = vrot.slane %v2741, %v2753
    %v2758 = vadd.f32 %v1401, %v2746
    %v2759 = vadd.f32 %v1403, %v2750
    %v2760 = vadd.f32 %v1634, %v2754
    %v2761 = vadd.f32 %v1407, %v2746
    %v2762 = vadd.f32 %v1409, %v2750
    %v2763 = vadd.f32 %v1639, %v2754
    %v2764 = vadd.f32 %v1413, %v2746
    %v2765 = vadd.f32 %v1415, %v2750
    %v2766 = vadd.f32 %v1644, %v2754
    %v2767 = vadd.f32 %v1419, %v2746
    %v2768 = vadd.f32 %v1421, %v2750
    %v2769 = vadd.f32 %v1649, %v2754
    %v2770 = vadd.f32 %v1425, %v2746
    %v2771 = vadd.f32 %v1427, %v2750
    %v2772 = vadd.f32 %v1654, %v2754
    %v2773 = vadd.f32 %v1431, %v2746
    %v2774 = vadd.f32 %v1433, %v2750
    %v2775 = vadd.f32 %v1659, %v2754
    %v2776 = vadd.f32 %v1437, %v2746
    %v2777 = vadd.f32 %v1439, %v2750
    %v2778 = vadd.f32 %v1664, %v2754
    %v2779 = vadd.f32 %v1443, %v2746
    %v2780 = vadd.f32 %v1445, %v2750
    %v2781 = vadd.f32 %v1669, %v2754
    %v2782 = vadd.f32 %v1449, %v2746
    %v2783 = vadd.f32 %v1451, %v2750
    %v2784 = vadd.f32 %v1674, %v2754
    %v2785 = vadd.f32 %v1455, %v2746
    %v2786 = vadd.f32 %v1457, %v2750
    %v2787 = vadd.f32 %v1679, %v2754
    %v2788 = vadd.f32 %v1461, %v2746
    %v2789 = vadd.f32 %v1463, %v2750
    %v2790 = vadd.f32 %v1684, %v2754
    %v2791 = vadd.f32 %v1467, %v2746
    %v2792 = vadd.f32 %v1469, %v2750
    %v2793 = vadd.f32 %v1689, %v2754
    %v2794 = vadd.f32 %v1473, %v2746
    %v2795 = vadd.f32 %v1475, %v2750
    %v2796 = vadd.f32 %v1694, %v2754
    %v2797 = vadd.f32 %v1479, %v2746
    %v2798 = vadd.f32 %v1481, %v2750
    %v2799 = vadd.f32 %v1699, %v2754
    %v2800 = vadd.f32 %v1485, %v2746
    %v2801 = vadd.f32 %v1487, %v2750
    %v2802 = vadd.f32 %v1704, %v2754
    %v2803 = vadd.f32 %v1491, %v2746
    %v2804 = vadd.f32 %v1493, %v2750
    %v2805 = vadd.f32 %v1709, %v2754
    %v2806 = vadd.f32 %v1497, %v2746
    %v2807 = vadd.f32 %v1499, %v2750
    %v2808 = vadd.f32 %v1714, %v2754
    %v2809 = vadd.f32 %v1503, %v2746
    %v2810 = vadd.f32 %v1505, %v2750
    %v2811 = vadd.f32 %v1719, %v2754
    %v2812 = vadd.f32 %v1509, %v2746
    %v2813 = vadd.f32 %v1511, %v2750
    %v2814 = vadd.f32 %v1724, %v2754
    %v2815 = vadd.f32 %v1515, %v2746
    %v2816 = vadd.f32 %v1517, %v2750
    %v2817 = vadd.f32 %v1729, %v2754
    %v2818 = vadd.f32 %v1521, %v2746
    %v2819 = vadd.f32 %v1523, %v2750
    %v2820 = vadd.f32 %v1734, %v2754
    %v2821 = vadd.f32 %v1527, %v2746
    %v2822 = vadd.f32 %v1529, %v2750
    %v2823 = vadd.f32 %v1739, %v2754
    %v2824 = vadd.f32 %v1533, %v2746
    %v2825 = vadd.f32 %v1535, %v2750
    %v2826 = vadd.f32 %v1744, %v2754
    %v2827 = vadd.f32 %v1539, %v2746
    %v2828 = vadd.f32 %v1541, %v2750
    %v2829 = vadd.f32 %v1749, %v2754
    %v2830 = vadd.f32 %v1545, %v2746
    %v2831 = vadd.f32 %v1547, %v2750
    %v2832 = vadd.f32 %v1754, %v2754
    %v2833 = vadd.f32 %v1551, %v2746
    %v2834 = vadd.f32 %v1553, %v2750
    %v2835 = vadd.f32 %v1759, %v2754
    %v2836 = vadd.f32 %v1557, %v2746
    %v2837 = vadd.f32 %v1559, %v2750
    %v2838 = vadd.f32 %v1764, %v2754
    %v2839 = vadd.f32 %v1563, %v2746
    %v2840 = vadd.f32 %v1565, %v2750
    %v2841 = vadd.f32 %v1769, %v2754
    %v2842 = vmin.f32 %v2758, %v2759
    %v2843 = vsel %vm1874, %v2760, inf
    %v2844 = vmin.f32 %v2842, %v2843
    %2845 = vmin.xlane.f32.xlu0 %v2844
    %v2846 = vpop.xlane.xlu0 %2845
    %v2847 = vmin.f32 %v2761, %v2762
    %v2848 = vsel %vm1874, %v2763, inf
    %v2849 = vmin.f32 %v2847, %v2848
    %2850 = vmin.xlane.f32.xlu0 %v2849
    %v2851 = vpop.xlane.xlu0 %2850
    %v2852 = vmin.f32 %v2764, %v2765
    %v2853 = vsel %vm1874, %v2766, inf
    %v2854 = vmin.f32 %v2852, %v2853
    %2855 = vmin.xlane.f32.xlu0 %v2854
    %v2856 = vpop.xlane.xlu0 %2855
    %v2857 = vmin.f32 %v2767, %v2768
    %v2858 = vsel %vm1874, %v2769, inf
    %v2859 = vmin.f32 %v2857, %v2858
    %2860 = vmin.xlane.f32.xlu0 %v2859
    %v2861 = vpop.xlane.xlu0 %2860
    %v2862 = vmin.f32 %v2770, %v2771
    %v2863 = vsel %vm1874, %v2772, inf
    %v2864 = vmin.f32 %v2862, %v2863
    %2865 = vmin.xlane.f32.xlu0 %v2864
    %v2866 = vpop.xlane.xlu0 %2865
    %v2867 = vmin.f32 %v2773, %v2774
    %v2868 = vsel %vm1874, %v2775, inf
    %v2869 = vmin.f32 %v2867, %v2868
    %2870 = vmin.xlane.f32.xlu0 %v2869
    %v2871 = vpop.xlane.xlu0 %2870
    %v2872 = vmin.f32 %v2776, %v2777
    %v2873 = vsel %vm1874, %v2778, inf
    %v2874 = vmin.f32 %v2872, %v2873
    %2875 = vmin.xlane.f32.xlu0 %v2874
    %v2876 = vpop.xlane.xlu0 %2875
    %v2877 = vmin.f32 %v2779, %v2780
    %v2878 = vsel %vm1874, %v2781, inf
    %v2879 = vmin.f32 %v2877, %v2878
    %2880 = vmin.xlane.f32.xlu0 %v2879
    %v2881 = vpop.xlane.xlu0 %2880
    %v2882 = vmin.f32 %v2782, %v2783
    %v2883 = vsel %vm1874, %v2784, inf
    %v2884 = vmin.f32 %v2882, %v2883
    %2885 = vmin.xlane.f32.xlu0 %v2884
    %v2886 = vpop.xlane.xlu0 %2885
    %v2887 = vmin.f32 %v2785, %v2786
    %v2888 = vsel %vm1874, %v2787, inf
    %v2889 = vmin.f32 %v2887, %v2888
    %2890 = vmin.xlane.f32.xlu0 %v2889
    %v2891 = vpop.xlane.xlu0 %2890
    %v2892 = vmin.f32 %v2788, %v2789
    %v2893 = vsel %vm1874, %v2790, inf
    %v2894 = vmin.f32 %v2892, %v2893
    %2895 = vmin.xlane.f32.xlu0 %v2894
    %v2896 = vpop.xlane.xlu0 %2895
    %v2897 = vmin.f32 %v2791, %v2792
    %v2898 = vsel %vm1874, %v2793, inf
    %v2899 = vmin.f32 %v2897, %v2898
    %2900 = vmin.xlane.f32.xlu0 %v2899
    %v2901 = vpop.xlane.xlu0 %2900
    %v2902 = vmin.f32 %v2794, %v2795
    %v2903 = vsel %vm1874, %v2796, inf
    %v2904 = vmin.f32 %v2902, %v2903
    %2905 = vmin.xlane.f32.xlu0 %v2904
    %v2906 = vpop.xlane.xlu0 %2905
    %v2907 = vmin.f32 %v2797, %v2798
    %v2908 = vsel %vm1874, %v2799, inf
    %v2909 = vmin.f32 %v2907, %v2908
    %2910 = vmin.xlane.f32.xlu0 %v2909
    %v2911 = vpop.xlane.xlu0 %2910
    %v2912 = vmin.f32 %v2800, %v2801
    %v2913 = vsel %vm1874, %v2802, inf
    %v2914 = vmin.f32 %v2912, %v2913
    %2915 = vmin.xlane.f32.xlu0 %v2914
    %v2916 = vpop.xlane.xlu0 %2915
    %v2917 = vmin.f32 %v2803, %v2804
    %v2918 = vsel %vm1874, %v2805, inf
    %v2919 = vmin.f32 %v2917, %v2918
    %2920 = vmin.xlane.f32.xlu0 %v2919
    %v2921 = vpop.xlane.xlu0 %2920
    %v2922 = vmin.f32 %v2806, %v2807
    %v2923 = vsel %vm1874, %v2808, inf
    %v2924 = vmin.f32 %v2922, %v2923
    %2925 = vmin.xlane.f32.xlu0 %v2924
    %v2926 = vpop.xlane.xlu0 %2925
    %v2927 = vmin.f32 %v2809, %v2810
    %v2928 = vsel %vm1874, %v2811, inf
    %v2929 = vmin.f32 %v2927, %v2928
    %2930 = vmin.xlane.f32.xlu0 %v2929
    %v2931 = vpop.xlane.xlu0 %2930
    %v2932 = vmin.f32 %v2812, %v2813
    %v2933 = vsel %vm1874, %v2814, inf
    %v2934 = vmin.f32 %v2932, %v2933
    %2935 = vmin.xlane.f32.xlu0 %v2934
    %v2936 = vpop.xlane.xlu0 %2935
    %v2937 = vmin.f32 %v2815, %v2816
    %v2938 = vsel %vm1874, %v2817, inf
    %v2939 = vmin.f32 %v2937, %v2938
    %2940 = vmin.xlane.f32.xlu0 %v2939
    %v2941 = vpop.xlane.xlu0 %2940
    %v2942 = vmin.f32 %v2818, %v2819
    %v2943 = vsel %vm1874, %v2820, inf
    %v2944 = vmin.f32 %v2942, %v2943
    %2945 = vmin.xlane.f32.xlu0 %v2944
    %v2946 = vpop.xlane.xlu0 %2945
    %v2947 = vmin.f32 %v2821, %v2822
    %v2948 = vsel %vm1874, %v2823, inf
    %v2949 = vmin.f32 %v2947, %v2948
    %2950 = vmin.xlane.f32.xlu0 %v2949
    %v2951 = vpop.xlane.xlu0 %2950
    %v2952 = vmin.f32 %v2824, %v2825
    %v2953 = vsel %vm1874, %v2826, inf
    %v2954 = vmin.f32 %v2952, %v2953
    %2955 = vmin.xlane.f32.xlu0 %v2954
    %v2956 = vpop.xlane.xlu0 %2955
    %v2957 = vmin.f32 %v2827, %v2828
    %v2958 = vsel %vm1874, %v2829, inf
    %v2959 = vmin.f32 %v2957, %v2958
    %2960 = vmin.xlane.f32.xlu0 %v2959
    %v2961 = vpop.xlane.xlu0 %2960
    %v2962 = vmin.f32 %v2830, %v2831
    %v2963 = vsel %vm1874, %v2832, inf
    %v2964 = vmin.f32 %v2962, %v2963
    %2965 = vmin.xlane.f32.xlu0 %v2964
    %v2966 = vpop.xlane.xlu0 %2965
    %v2967 = vmin.f32 %v2833, %v2834
    %v2968 = vsel %vm1874, %v2835, inf
    %v2969 = vmin.f32 %v2967, %v2968
    %2970 = vmin.xlane.f32.xlu0 %v2969
    %v2971 = vpop.xlane.xlu0 %2970
    %v2972 = vmin.f32 %v2836, %v2837
    %v2973 = vsel %vm1874, %v2838, inf
    %v2974 = vmin.f32 %v2972, %v2973
    %2975 = vmin.xlane.f32.xlu0 %v2974
    %v2976 = vpop.xlane.xlu0 %2975
    %v2977 = vmin.f32 %v2839, %v2840
    %v2978 = vsel %vm1874, %v2841, inf
    %v2979 = vmin.f32 %v2977, %v2978
    %2980 = vmin.xlane.f32.xlu0 %v2979
    %v2981 = vpop.xlane.xlu0 %2980
    %vm2982 = vcmask 7168
    %v2983 = vsel %vm2982, %v1878, %v2120
    %v2984 = vsel %vm2982, %v1883, %v2125
    %v2985 = vsel %vm2982, %v1888, %v2130
    %v2986 = vsel %vm2982, %v1893, %v2135
    %v2987 = vsel %vm2982, %v1898, %v2140
    %v2988 = vsel %vm2982, %v1903, %v2145
    %v2989 = vsel %vm2982, %v1908, %v2150
    %v2990 = vsel %vm2982, %v1913, %v2155
    %v2991 = vsel %vm2982, %v1918, %v2160
    %v2992 = vsel %vm2982, %v1923, %v2165
    %v2993 = vsel %vm2982, %v1928, %v2170
    %v2994 = vsel %vm2982, %v1933, %v2175
    %v2995 = vsel %vm2982, %v1938, %v2180
    %v2996 = vsel %vm2982, %v1943, %v2185
    %v2997 = vsel %vm2982, %v1948, %v2190
    %v2998 = vsel %vm2982, %v1953, %v2195
    %v2999 = vsel %vm2982, %v1958, %v2200
    %v3000 = vsel %vm2982, %v1963, %v2205
    %v3001 = vsel %vm2982, %v1968, %v2210
    %v3002 = vsel %vm2982, %v1973, %v2215
    %v3003 = vsel %vm2982, %v1978, %v2220
    %v3004 = vsel %vm2982, %v1983, %v2225
    %v3005 = vsel %vm2982, %v1988, %v2230
    %v3006 = vsel %vm2982, %v1993, %v2235
    %v3007 = vsel %vm2982, %v1998, %v2240
    %v3008 = vsel %vm2982, %v2003, %v2245
    %v3009 = vsel %vm2982, %v2008, %v2250
    %v3010 = vsel %vm2982, %v2013, %v2255
    %vm3011 = vcmask 15360
    %v3012 = vsel %vm3011, %v2983, %v2362
    %v3013 = vsel %vm3011, %v2984, %v2367
    %v3014 = vsel %vm3011, %v2985, %v2372
    %v3015 = vsel %vm3011, %v2986, %v2377
    %v3016 = vsel %vm3011, %v2987, %v2382
    %v3017 = vsel %vm3011, %v2988, %v2387
    %v3018 = vsel %vm3011, %v2989, %v2392
    %v3019 = vsel %vm3011, %v2990, %v2397
    %v3020 = vsel %vm3011, %v2991, %v2402
    %v3021 = vsel %vm3011, %v2992, %v2407
    %v3022 = vsel %vm3011, %v2993, %v2412
    %v3023 = vsel %vm3011, %v2994, %v2417
    %v3024 = vsel %vm3011, %v2995, %v2422
    %v3025 = vsel %vm3011, %v2996, %v2427
    %v3026 = vsel %vm3011, %v2997, %v2432
    %v3027 = vsel %vm3011, %v2998, %v2437
    %v3028 = vsel %vm3011, %v2999, %v2442
    %v3029 = vsel %vm3011, %v3000, %v2447
    %v3030 = vsel %vm3011, %v3001, %v2452
    %v3031 = vsel %vm3011, %v3002, %v2457
    %v3032 = vsel %vm3011, %v3003, %v2462
    %v3033 = vsel %vm3011, %v3004, %v2467
    %v3034 = vsel %vm3011, %v3005, %v2472
    %v3035 = vsel %vm3011, %v3006, %v2477
    %v3036 = vsel %vm3011, %v3007, %v2482
    %v3037 = vsel %vm3011, %v3008, %v2487
    %v3038 = vsel %vm3011, %v3009, %v2492
    %v3039 = vsel %vm3011, %v3010, %v2497
    %vm3040 = vcmask 23552
    %v3041 = vsel %vm3040, %v3012, %v2604
    %v3042 = vsel %vm3040, %v3013, %v2609
    %v3043 = vsel %vm3040, %v3014, %v2614
    %v3044 = vsel %vm3040, %v3015, %v2619
    %v3045 = vsel %vm3040, %v3016, %v2624
    %v3046 = vsel %vm3040, %v3017, %v2629
    %v3047 = vsel %vm3040, %v3018, %v2634
    %v3048 = vsel %vm3040, %v3019, %v2639
    %v3049 = vsel %vm3040, %v3020, %v2644
    %v3050 = vsel %vm3040, %v3021, %v2649
    %v3051 = vsel %vm3040, %v3022, %v2654
    %v3052 = vsel %vm3040, %v3023, %v2659
    %v3053 = vsel %vm3040, %v3024, %v2664
    %v3054 = vsel %vm3040, %v3025, %v2669
    %v3055 = vsel %vm3040, %v3026, %v2674
    %v3056 = vsel %vm3040, %v3027, %v2679
    %v3057 = vsel %vm3040, %v3028, %v2684
    %v3058 = vsel %vm3040, %v3029, %v2689
    %v3059 = vsel %vm3040, %v3030, %v2694
    %v3060 = vsel %vm3040, %v3031, %v2699
    %v3061 = vsel %vm3040, %v3032, %v2704
    %v3062 = vsel %vm3040, %v3033, %v2709
    %v3063 = vsel %vm3040, %v3034, %v2714
    %v3064 = vsel %vm3040, %v3035, %v2719
    %v3065 = vsel %vm3040, %v3036, %v2724
    %v3066 = vsel %vm3040, %v3037, %v2729
    %v3067 = vsel %vm3040, %v3038, %v2734
    %v3068 = vsel %vm3040, %v3039, %v2739
    %vm3069 = vcmask 31744
    %v3070 = vsel %vm3069, %v3041, %v2846
    %v3071 = vsel %vm3069, %v3042, %v2851
    %v3072 = vsel %vm3069, %v3043, %v2856
    %v3073 = vsel %vm3069, %v3044, %v2861
    %v3074 = vsel %vm3069, %v3045, %v2866
    %v3075 = vsel %vm3069, %v3046, %v2871
    %v3076 = vsel %vm3069, %v3047, %v2876
    %v3077 = vsel %vm3069, %v3048, %v2881
    %v3078 = vsel %vm3069, %v3049, %v2886
    %v3079 = vsel %vm3069, %v3050, %v2891
    %v3080 = vsel %vm3069, %v3051, %v2896
    %v3081 = vsel %vm3069, %v3052, %v2901
    %v3082 = vsel %vm3069, %v3053, %v2906
    %v3083 = vsel %vm3069, %v3054, %v2911
    %v3084 = vsel %vm3069, %v3055, %v2916
    %v3085 = vsel %vm3069, %v3056, %v2921
    %v3086 = vsel %vm3069, %v3057, %v2926
    %v3087 = vsel %vm3069, %v3058, %v2931
    %v3088 = vsel %vm3069, %v3059, %v2936
    %v3089 = vsel %vm3069, %v3060, %v2941
    %v3090 = vsel %vm3069, %v3061, %v2946
    %v3091 = vsel %vm3069, %v3062, %v2951
    %v3092 = vsel %vm3069, %v3063, %v2956
    %v3093 = vsel %vm3069, %v3064, %v2961
    %v3094 = vsel %vm3069, %v3065, %v2966
    %v3095 = vsel %vm3069, %v3066, %v2971
    %v3096 = vsel %vm3069, %v3067, %v2976
    %v3097 = vsel %vm3069, %v3068, %v2981
    %v3098 = vmax.f32 %v3070, 0.0
    %v3099 = vmax.f32 %v3071, 0.0
    %v3100 = vmax.f32 %v3072, 0.0
    %v3101 = vmax.f32 %v3073, 0.0
    %v3102 = vmax.f32 %v3074, 0.0
    %v3103 = vmax.f32 %v3075, 0.0
    %v3104 = vmax.f32 %v3076, 0.0
    %v3105 = vmax.f32 %v3077, 0.0
    %v3106 = vmax.f32 %v3078, 0.0
    %v3107 = vmax.f32 %v3079, 0.0
    %v3108 = vmax.f32 %v3080, 0.0
    %v3109 = vmax.f32 %v3081, 0.0
    %v3110 = vmax.f32 %v3082, 0.0
    %v3111 = vmax.f32 %v3083, 0.0
    %v3112 = vmax.f32 %v3084, 0.0
    %v3113 = vmax.f32 %v3085, 0.0
    %v3114 = vmax.f32 %v3086, 0.0
    %v3115 = vmax.f32 %v3087, 0.0
    %v3116 = vmax.f32 %v3088, 0.0
    %v3117 = vmax.f32 %v3089, 0.0
    %v3118 = vmax.f32 %v3090, 0.0
    %v3119 = vmax.f32 %v3091, 0.0
    %v3120 = vmax.f32 %v3092, 0.0
    %v3121 = vmax.f32 %v3093, 0.0
    %v3122 = vmax.f32 %v3094, 0.0
    %v3123 = vmax.f32 %v3095, 0.0
    %v3124 = vmax.f32 %v3096, 0.0
    %v3125 = vmax.f32 %v3097, 0.0
    %v3126 = vrsqrt.pop %v3098
    %v3127 = vmul.f32 %v3098, %v3126
    %vm3128 = vcmp.eq.f32.partialorder %v3098, inf
    %v3129 = vsel %vm3128, %v3098, %v3127
    %vm3130 = vcmp.eq.f32.partialorder %v3098, 0.0
    %v3131 = vand.u32 %v3098, 2147483648
    %v3132 = vsel %vm3130, %v3131, %v3129
    %v3133 = vrsqrt.pop %v3099
    %v3134 = vmul.f32 %v3099, %v3133
    %vm3135 = vcmp.eq.f32.partialorder %v3099, inf
    %v3136 = vsel %vm3135, %v3099, %v3134
    %vm3137 = vcmp.eq.f32.partialorder %v3099, 0.0
    %v3138 = vand.u32 %v3099, 2147483648
    %v3139 = vsel %vm3137, %v3138, %v3136
    %v3140 = vrsqrt.pop %v3100
    %v3141 = vmul.f32 %v3100, %v3140
    %vm3142 = vcmp.eq.f32.partialorder %v3100, inf
    %v3143 = vsel %vm3142, %v3100, %v3141
    %vm3144 = vcmp.eq.f32.partialorder %v3100, 0.0
    %v3145 = vand.u32 %v3100, 2147483648
    %v3146 = vsel %vm3144, %v3145, %v3143
    %v3147 = vrsqrt.pop %v3101
    %v3148 = vmul.f32 %v3101, %v3147
    %vm3149 = vcmp.eq.f32.partialorder %v3101, inf
    %v3150 = vsel %vm3149, %v3101, %v3148
    %vm3151 = vcmp.eq.f32.partialorder %v3101, 0.0
    %v3152 = vand.u32 %v3101, 2147483648
    %v3153 = vsel %vm3151, %v3152, %v3150
    %v3154 = vrsqrt.pop %v3102
    %v3155 = vmul.f32 %v3102, %v3154
    %vm3156 = vcmp.eq.f32.partialorder %v3102, inf
    %v3157 = vsel %vm3156, %v3102, %v3155
    %vm3158 = vcmp.eq.f32.partialorder %v3102, 0.0
    %v3159 = vand.u32 %v3102, 2147483648
    %v3160 = vsel %vm3158, %v3159, %v3157
    %v3161 = vrsqrt.pop %v3103
    %v3162 = vmul.f32 %v3103, %v3161
    %vm3163 = vcmp.eq.f32.partialorder %v3103, inf
    %v3164 = vsel %vm3163, %v3103, %v3162
    %vm3165 = vcmp.eq.f32.partialorder %v3103, 0.0
    %v3166 = vand.u32 %v3103, 2147483648
    %v3167 = vsel %vm3165, %v3166, %v3164
    %v3168 = vrsqrt.pop %v3104
    %v3169 = vmul.f32 %v3104, %v3168
    %vm3170 = vcmp.eq.f32.partialorder %v3104, inf
    %v3171 = vsel %vm3170, %v3104, %v3169
    %vm3172 = vcmp.eq.f32.partialorder %v3104, 0.0
    %v3173 = vand.u32 %v3104, 2147483648
    %v3174 = vsel %vm3172, %v3173, %v3171
    %v3175 = vrsqrt.pop %v3105
    %v3176 = vmul.f32 %v3105, %v3175
    %vm3177 = vcmp.eq.f32.partialorder %v3105, inf
    %v3178 = vsel %vm3177, %v3105, %v3176
    %vm3179 = vcmp.eq.f32.partialorder %v3105, 0.0
    %v3180 = vand.u32 %v3105, 2147483648
    %v3181 = vsel %vm3179, %v3180, %v3178
    %v3182 = vrsqrt.pop %v3106
    %v3183 = vmul.f32 %v3106, %v3182
    %vm3184 = vcmp.eq.f32.partialorder %v3106, inf
    %v3185 = vsel %vm3184, %v3106, %v3183
    %vm3186 = vcmp.eq.f32.partialorder %v3106, 0.0
    %v3187 = vand.u32 %v3106, 2147483648
    %v3188 = vsel %vm3186, %v3187, %v3185
    %v3189 = vrsqrt.pop %v3107
    %v3190 = vmul.f32 %v3107, %v3189
    %vm3191 = vcmp.eq.f32.partialorder %v3107, inf
    %v3192 = vsel %vm3191, %v3107, %v3190
    %vm3193 = vcmp.eq.f32.partialorder %v3107, 0.0
    %v3194 = vand.u32 %v3107, 2147483648
    %v3195 = vsel %vm3193, %v3194, %v3192
    %v3196 = vrsqrt.pop %v3108
    %v3197 = vmul.f32 %v3108, %v3196
    %vm3198 = vcmp.eq.f32.partialorder %v3108, inf
    %v3199 = vsel %vm3198, %v3108, %v3197
    %vm3200 = vcmp.eq.f32.partialorder %v3108, 0.0
    %v3201 = vand.u32 %v3108, 2147483648
    %v3202 = vsel %vm3200, %v3201, %v3199
    %v3203 = vrsqrt.pop %v3109
    %v3204 = vmul.f32 %v3109, %v3203
    %vm3205 = vcmp.eq.f32.partialorder %v3109, inf
    %v3206 = vsel %vm3205, %v3109, %v3204
    %vm3207 = vcmp.eq.f32.partialorder %v3109, 0.0
    %v3208 = vand.u32 %v3109, 2147483648
    %v3209 = vsel %vm3207, %v3208, %v3206
    %v3210 = vrsqrt.pop %v3110
    %v3211 = vmul.f32 %v3110, %v3210
    %vm3212 = vcmp.eq.f32.partialorder %v3110, inf
    %v3213 = vsel %vm3212, %v3110, %v3211
    %vm3214 = vcmp.eq.f32.partialorder %v3110, 0.0
    %v3215 = vand.u32 %v3110, 2147483648
    %v3216 = vsel %vm3214, %v3215, %v3213
    %v3217 = vrsqrt.pop %v3111
    %v3218 = vmul.f32 %v3111, %v3217
    %vm3219 = vcmp.eq.f32.partialorder %v3111, inf
    %v3220 = vsel %vm3219, %v3111, %v3218
    %vm3221 = vcmp.eq.f32.partialorder %v3111, 0.0
    %v3222 = vand.u32 %v3111, 2147483648
    %v3223 = vsel %vm3221, %v3222, %v3220
    %v3224 = vrsqrt.pop %v3112
    %v3225 = vmul.f32 %v3112, %v3224
    %vm3226 = vcmp.eq.f32.partialorder %v3112, inf
    %v3227 = vsel %vm3226, %v3112, %v3225
    %vm3228 = vcmp.eq.f32.partialorder %v3112, 0.0
    %v3229 = vand.u32 %v3112, 2147483648
    %v3230 = vsel %vm3228, %v3229, %v3227
    %v3231 = vrsqrt.pop %v3113
    %v3232 = vmul.f32 %v3113, %v3231
    %vm3233 = vcmp.eq.f32.partialorder %v3113, inf
    %v3234 = vsel %vm3233, %v3113, %v3232
    %vm3235 = vcmp.eq.f32.partialorder %v3113, 0.0
    %v3236 = vand.u32 %v3113, 2147483648
    %v3237 = vsel %vm3235, %v3236, %v3234
    %v3238 = vrsqrt.pop %v3114
    %v3239 = vmul.f32 %v3114, %v3238
    %vm3240 = vcmp.eq.f32.partialorder %v3114, inf
    %v3241 = vsel %vm3240, %v3114, %v3239
    %vm3242 = vcmp.eq.f32.partialorder %v3114, 0.0
    %v3243 = vand.u32 %v3114, 2147483648
    %v3244 = vsel %vm3242, %v3243, %v3241
    %v3245 = vrsqrt.pop %v3115
    %v3246 = vmul.f32 %v3115, %v3245
    %vm3247 = vcmp.eq.f32.partialorder %v3115, inf
    %v3248 = vsel %vm3247, %v3115, %v3246
    %vm3249 = vcmp.eq.f32.partialorder %v3115, 0.0
    %v3250 = vand.u32 %v3115, 2147483648
    %v3251 = vsel %vm3249, %v3250, %v3248
    %v3252 = vrsqrt.pop %v3116
    %v3253 = vmul.f32 %v3116, %v3252
    %vm3254 = vcmp.eq.f32.partialorder %v3116, inf
    %v3255 = vsel %vm3254, %v3116, %v3253
    %vm3256 = vcmp.eq.f32.partialorder %v3116, 0.0
    %v3257 = vand.u32 %v3116, 2147483648
    %v3258 = vsel %vm3256, %v3257, %v3255
    %v3259 = vrsqrt.pop %v3117
    %v3260 = vmul.f32 %v3117, %v3259
    %vm3261 = vcmp.eq.f32.partialorder %v3117, inf
    %v3262 = vsel %vm3261, %v3117, %v3260
    %vm3263 = vcmp.eq.f32.partialorder %v3117, 0.0
    %v3264 = vand.u32 %v3117, 2147483648
    %v3265 = vsel %vm3263, %v3264, %v3262
    %v3266 = vrsqrt.pop %v3118
    %v3267 = vmul.f32 %v3118, %v3266
    %vm3268 = vcmp.eq.f32.partialorder %v3118, inf
    %v3269 = vsel %vm3268, %v3118, %v3267
    %vm3270 = vcmp.eq.f32.partialorder %v3118, 0.0
    %v3271 = vand.u32 %v3118, 2147483648
    %v3272 = vsel %vm3270, %v3271, %v3269
    %v3273 = vrsqrt.pop %v3119
    %v3274 = vmul.f32 %v3119, %v3273
    %vm3275 = vcmp.eq.f32.partialorder %v3119, inf
    %v3276 = vsel %vm3275, %v3119, %v3274
    %vm3277 = vcmp.eq.f32.partialorder %v3119, 0.0
    %v3278 = vand.u32 %v3119, 2147483648
    %v3279 = vsel %vm3277, %v3278, %v3276
    %v3280 = vrsqrt.pop %v3120
    %v3281 = vmul.f32 %v3120, %v3280
    %vm3282 = vcmp.eq.f32.partialorder %v3120, inf
    %v3283 = vsel %vm3282, %v3120, %v3281
    %vm3284 = vcmp.eq.f32.partialorder %v3120, 0.0
    %v3285 = vand.u32 %v3120, 2147483648
    %v3286 = vsel %vm3284, %v3285, %v3283
    %v3287 = vrsqrt.pop %v3121
    %v3288 = vmul.f32 %v3121, %v3287
    %vm3289 = vcmp.eq.f32.partialorder %v3121, inf
    %v3290 = vsel %vm3289, %v3121, %v3288
    %vm3291 = vcmp.eq.f32.partialorder %v3121, 0.0
    %v3292 = vand.u32 %v3121, 2147483648
    %v3293 = vsel %vm3291, %v3292, %v3290
    %v3294 = vrsqrt.pop %v3122
    %v3295 = vmul.f32 %v3122, %v3294
    %vm3296 = vcmp.eq.f32.partialorder %v3122, inf
    %v3297 = vsel %vm3296, %v3122, %v3295
    %vm3298 = vcmp.eq.f32.partialorder %v3122, 0.0
    %v3299 = vand.u32 %v3122, 2147483648
    %v3300 = vsel %vm3298, %v3299, %v3297
    %v3301 = vrsqrt.pop %v3123
    %v3302 = vmul.f32 %v3123, %v3301
    %vm3303 = vcmp.eq.f32.partialorder %v3123, inf
    %v3304 = vsel %vm3303, %v3123, %v3302
    %vm3305 = vcmp.eq.f32.partialorder %v3123, 0.0
    %v3306 = vand.u32 %v3123, 2147483648
    %v3307 = vsel %vm3305, %v3306, %v3304
    %v3308 = vrsqrt.pop %v3124
    %v3309 = vmul.f32 %v3124, %v3308
    %vm3310 = vcmp.eq.f32.partialorder %v3124, inf
    %v3311 = vsel %vm3310, %v3124, %v3309
    %vm3312 = vcmp.eq.f32.partialorder %v3124, 0.0
    %v3313 = vand.u32 %v3124, 2147483648
    %v3314 = vsel %vm3312, %v3313, %v3311
    %v3315 = vrsqrt.pop %v3125
    %v3316 = vmul.f32 %v3125, %v3315
    %vm3317 = vcmp.eq.f32.partialorder %v3125, inf
    %v3318 = vsel %vm3317, %v3125, %v3316
    %vm3319 = vcmp.eq.f32.partialorder %v3125, 0.0
    %v3320 = vand.u32 %v3125, 2147483648
    %v3321 = vsel %vm3319, %v3320, %v3318
    %v3322 = vld [vmem:[%s4] sm:$0xff]
    %v3324 = vcombine.high %v3322, %v3322
    %v3325 = vsel %vm103, %v3324, 0
    %3327 = vmatprep.subr.mxu0 0.0
    %3328 = vmatpush1.msra.mxu0 %v3132
    %3329 = vmatprep.subr.mxu0 0.0
    %3330 = vmatpush1.msra.mxu0 %v3139
    %3331 = vmatprep.subr.mxu0 0.0
    %3332 = vmatpush1.msra.mxu0 %v3146
    %3333 = vmatprep.subr.mxu0 0.0
    %3334 = vmatpush1.msra.mxu0 %v3153
    %3335 = vmatprep.subr.mxu0 0.0
    %3336 = vmatpush1.msra.mxu0 %v3160
    %3337 = vmatprep.subr.mxu0 0.0
    %3338 = vmatpush1.msra.mxu0 %v3167
    %3339 = vmatprep.subr.mxu0 0.0
    %3340 = vmatpush1.msra.mxu0 %v3174
    %3341 = vmatprep.subr.mxu0 0.0
    %3342 = vmatpush1.msra.mxu0 %v3181
    %3343 = vmatprep.subr.mxu0 0.0
    %3344 = vmatpush1.msra.mxu0 %v3188
    %3345 = vmatprep.subr.mxu0 0.0
    %3346 = vmatpush1.msra.mxu0 %v3195
    %3347 = vmatprep.subr.mxu0 0.0
    %3348 = vmatpush1.msra.mxu0 %v3202
    %3349 = vmatprep.subr.mxu0 0.0
    %3350 = vmatpush1.msra.mxu0 %v3209
    %3351 = vmatprep.subr.mxu0 0.0
    %3352 = vmatpush1.msra.mxu0 %v3216
    %3353 = vmatprep.subr.mxu0 0.0
    %3354 = vmatpush1.msra.mxu0 %v3223
    %3355 = vmatprep.subr.mxu0 0.0
    %3356 = vmatpush1.msra.mxu0 %v3230
    %3357 = vmatprep.subr.mxu0 0.0
    %3358 = vmatpush1.msra.mxu0 %v3237
    %3359 = vmatprep.subr.mxu0 0.0
    %3360 = vmatpush1.msra.mxu0 %v3244
    %3361 = vmatprep.subr.mxu0 0.0
    %3362 = vmatpush1.msra.mxu0 %v3251
    %3363 = vmatprep.subr.mxu0 0.0
    %3364 = vmatpush1.msra.mxu0 %v3258
    %3365 = vmatprep.subr.mxu0 0.0
    %3366 = vmatpush1.msra.mxu0 %v3265
    %3367 = vmatprep.subr.mxu0 0.0
    %3368 = vmatpush1.msra.mxu0 %v3272
    %3369 = vmatprep.subr.mxu0 0.0
    %3370 = vmatpush1.msra.mxu0 %v3279
    %3371 = vmatprep.subr.mxu0 0.0
    %3372 = vmatpush1.msra.mxu0 %v3286
    %3373 = vmatprep.subr.mxu0 0.0
    %3374 = vmatpush1.msra.mxu0 %v3293
    %3375 = vmatprep.subr.mxu0 0.0
    %3376 = vmatpush1.msra.mxu0 %v3300
    %3377 = vmatprep.subr.mxu0 0.0
    %3378 = vmatpush1.msra.mxu0 %v3307
    %3379 = vmatprep.subr.mxu0 0.0
    %3380 = vmatpush1.msra.mxu0 %v3314
    %3381 = vmatprep.subr.mxu0 0.0
    %3382 = vmatpush1.msra.mxu0 %v3321
    %3383 = vmatprep.subr.mxu0 0.0
    %3384 = vmatpush1.msra.mxu0 0.0
    %3385 = vmatprep.subr.mxu0 0.0
    %3386 = vmatpush1.msra.mxu0 0.0
    %3387 = vmatprep.subr.mxu0 0.0
    %3388 = vmatpush1.msra.mxu0 0.0
    %3389 = vmatprep.subr.mxu0 0.0
    %3390 = vmatpush1.msra.mxu0 0.0
    %3391 = vmatprep.mubr.f32.mxu0 %v3325
    %3392 = vmatmul.mubr.f32.gmra.mrb[0].mxu0 %v3322
    %v3393 = vpop.f32.mrb[0].mxu0
    %v3394 = vadd.f32 0.0, %v3393
    %v3395 = vpop.f32.mrb[0].mxu0
    %3396 = vdwg.mxu0
    %vm3397 = vcmask 35840
    %3398 = vst.msk [vmem:[#allocation2] sm:$0xf] %vm3397, %v3394
    // Predicated region
    $region22: #{tpu_custom_call.1} parent=1 // pred_check
      _
    $region23: #{tpu_custom_call.1} parent=1 // pred_check_branch
      %3400 = sbr.rel (0) target = $region25
    $region24: #{tpu_custom_call.1} parent=1 // pred_region
      %s3402 = ssub.s32 64, 64
      %3403 = vsyncadd [#allocation3], %s3402
      %s3405 = sshll.u32 [#allocation2], 4
      %s3406 = int_to_ptr.vmem [resolvable:$true] %s3405
      %3408 = dma.vmem_to_hbm [thread:$0]  %s3406, 64, %s5, [#allocation3]
    $region25: #{tpu_custom_call.1} parent=1 // pred_fallthru
      _
    // Predicated region
    $region26: #{tpu_custom_call.1} parent=1 // pred_check
      _
    $region27: #{tpu_custom_call.1} parent=1 // pred_check_branch
      %3410 = sbr.rel (0) target = $region29
    $region28: #{tpu_custom_call.1} parent=1 // pred_region
      %3411 = dma.done [#allocation3], 64
    $region29: #{tpu_custom_call.1} parent=1 // pred_fallthru
      _
    %3412 = vsyncpa [#allocation3], 1

</llo_original>
